<compile_context>
chip_gen: v7x
topology: tpu7x:2x2x1
jax: 0.10.0
libtpu: 0.0.40
codegen_flags: <defaults>
</compile_context>

<pallas_src>
import math

import numpy as np
import jax
import jax.numpy as jnp
from jax import lax
from jax.experimental import pallas as pl
from jax.experimental.pallas import tpu as pltpu

EPS = 1e-5                     # torch InstanceNorm1d default eps
_INV_SQRT2 = 1.0 / math.sqrt(2.0)
_LANES = 128                   # lane width of the packed param/const slab
_SE_PAD = 8                    # pad SE bottleneck dim to 8 for clean tiles


def _gelu(x):
    # exact GELU (torch.nn.GELU default, approximate='none')
    return 0.5 * x * (1.0 + lax.erf(x * _INV_SQRT2))


# -----------------------------------------------------------------------------
# Host-side constant-matrix builders (numpy; packed once into the slab)
# -----------------------------------------------------------------------------
def _conv_gather_mats(n, t_in, taps, stride, pad):
    """Per-tap gather matrices G_k (N*T_in, N*T_out):
    out[:, n*T_out + t] = in[:, n*T_in + clamp(stride*t + k - pad, 0, T_in-1)].
    Encodes per-sample replicate padding and stride in one matmul."""
    t_out = (t_in + 2 * pad - taps) // stride + 1
    mats = []
    for k in range(taps):
        g = np.zeros((n * t_in, n * t_out), np.float32)
        for s in range(n):
            for t in range(t_out):
                j = min(max(stride * t + k - pad, 0), t_in - 1)
                g[s * t_in + j, s * t_out + t] = 1.0
        mats.append(g)
    return mats, t_out


def _avgpool_mat(n, t_in):
    """AvgPool1d(kernel=2, stride=2) per sample, (N*T_in, N*T_in//2)."""
    t_out = t_in // 2
    a = np.zeros((n * t_in, n * t_out), np.float32)
    for s in range(n):
        for t in range(t_out):
            a[s * t_in + 2 * t, s * t_out + t] = 0.5
            a[s * t_in + 2 * t + 1, s * t_out + t] = 0.5
    return a


def _mean_mat(n, t):
    """Per-sample mean-and-broadcast matrix (N*T, N*T): h @ M = per-sample mean."""
    m = np.zeros((n * t, n * t), np.float32)
    for s in range(n):
        m[s * t:(s + 1) * t, s * t:(s + 1) * t] = 1.0 / t
    return m


def _pool_mat(n, t):
    """SE squeeze matrix (N*T, max(8,N)): h @ P = per-sample mean columns."""
    cols = max(_SE_PAD, n)
    p = np.zeros((n * t, cols), np.float32)
    for s in range(n):
        p[s * t:(s + 1) * t, s] = 1.0 / t
    return p


def _expand_mat(n, t):
    """SE excite broadcast matrix (max(8,N), N*T): gate @ E broadcasts over T."""
    rows = max(_SE_PAD, n)
    e = np.zeros((rows, n * t), np.float32)
    for s in range(n):
        e[s, s * t:(s + 1) * t] = 1.0
    return e


class _SlabBuilder:
    """Packs many small 2-D f32 arrays into one (rows, 128) slab.

    Each array goes at an 8-aligned row offset, columns [0, c); unused lanes
    are zero.  Offsets are static Python ints baked into the kernel."""

    def __init__(self, lanes=_LANES):
        self.lanes = lanes
        self.rows = 0
        self.chunks = []
        self.offsets = {}

    def add(self, name, arr):
        a = np.asarray(arr, np.float32)
        if a.ndim == 1:
            a = a.reshape(-1, 1)
        r, c = a.shape
        assert c <= self.lanes, (name, a.shape)
        rp = ((r + 7) // 8) * 8
        buf = np.zeros((rp, self.lanes), np.float32)
        buf[:r, :c] = a
        self.chunks.append(buf)
        self.offsets[name] = (self.rows, r, c)
        self.rows += rp
        return name

    def build(self):
        return np.concatenate(self.chunks, axis=0)


# -----------------------------------------------------------------------------
# Fused whole-backbone kernel (generated from the static model structure)
# -----------------------------------------------------------------------------
def _build_kernel(offsets, plan):
    lanes = _LANES

    def kernel(x_ref, slab_ref, out_ref):
        def rd(name):
            off, r, c = offsets[name]
            return slab_ref[pl.ds(off, r), pl.ds(0, c)]

        def conv(h, w_name, tap_names):
            # im2col: one (C, N*T_out) block per tap (identity tap reuses h),
            # sublane-concatenated (C is a multiple of 8), then one MXU dot.
            cols = jnp.concatenate(
                [h if nm is None
                 else jnp.dot(h, rd(nm), preferred_element_type=jnp.float32)
                 for nm in tap_names], axis=0)
            return jnp.dot(rd(w_name), cols,
                           preferred_element_type=jnp.float32)

        def inorm(h, mean_name, g_name=None, b_name=None):
            # per-sample biased mean/var via one averaging matrix (broadcast
            # back across each sample's lanes by the same matmul).
            m = rd(mean_name)
            mu = jnp.dot(h, m, preferred_element_type=jnp.float32)
            d = h - mu
            var = jnp.dot(d * d, m, preferred_element_type=jnp.float32)
            y = d * lax.rsqrt(var + EPS)
            if g_name is not None:
                y = y * rd(g_name) + rd(b_name)
            return y

        def se_gate(h, blk):
            # whole-batch squeeze-excitation: pool matmul -> 2 tiny dots ->
            # broadcast-back matmul (padded rows/cols are zero -> exact).
            pool = jnp.dot(h, rd(blk['pool']),
                           preferred_element_type=jnp.float32)
            z = jnp.maximum(
                jnp.dot(rd(blk['sw1']), pool,
                        preferred_element_type=jnp.float32) + rd(blk['sb1']),
                0.0)
            g = jax.nn.sigmoid(
                jnp.dot(rd(blk['sw2']), z,
                        preferred_element_type=jnp.float32) + rd(blk['sb2']))
            return jnp.dot(g, rd(blk['expand']),
                           preferred_element_type=jnp.float32)

        h = x_ref[...].astype(jnp.float32)          # (C_in_pad, N*T)

        # ---- initial conv + InstanceNorm (no affine) + GELU ----
        ini = plan['init']
        h = _gelu(inorm(conv(h, ini['w'], ini['taps']), ini['mean']))

        # ---- ResConv1D levels (all intermediates stay on-chip) ----
        for level in plan['levels']:
            for blk in level['blocks']:
                x_in = h

                # conv1 (kernel K, stride 1, replicate 'same') + IN + GELU
                h1 = _gelu(inorm(conv(x_in, blk['w1'], blk['taps1']),
                                 blk['mean_in'], blk['g1'], blk['b1']))

                # conv2 (+ optional stride-2 downsample) + IN
                h2 = inorm(conv(h1, blk['w2'], blk['taps2']),
                           blk['mean_out'], blk['g2'], blk['b2'])

                # squeeze-excitation gate
                h2 = h2 * se_gate(h2, blk)

                # residual branch (zero channel pad; AvgPool1d(2,2) if ds)
                if blk['pad_ch'] > 0:
                    x_res = jnp.concatenate(
                        [x_in, jnp.zeros((blk['pad_ch'], x_in.shape[1]),
                                         jnp.float32)], axis=0)
                else:
                    x_res = x_in
                if blk['avgpool'] is not None:
                    x_res = jnp.dot(x_res, rd(blk['avgpool']),
                                    preferred_element_type=jnp.float32)

                h = _gelu(h2 + x_res)

            # lane-dense (128-wide, unmasked) store of this level's output
            r0 = level['out_row']
            rows, width = h.shape
            if width < lanes:
                slab_out = jnp.concatenate(
                    [h, jnp.zeros((rows, lanes - width), jnp.float32)], axis=1)
            else:
                slab_out = h
            out_ref[pl.ds(r0, rows), :] = slab_out.astype(out_ref.dtype)

    return kernel


# -----------------------------------------------------------------------------
# Wrapper: one pallas_call (grid=(1,)) for the whole forward
# -----------------------------------------------------------------------------
def backbone_forward(params, x, downsampling_method):
    """x: (N, C_in, T) -> list of per-level outputs [(N, C_l, T_l), ...]."""
    K = params['kernel_size']
    pad = (K - 1) // 2
    N, C_in, T = x.shape
    assert len(downsampling_method) == len(params['levels'])

    # Pad raw input channels to a multiple of 8 so the im2col sublane concats
    # are tile aligned; the matching weight columns are zero, so exact.
    C_in_pad = max(8, ((C_in + 7) // 8) * 8)

    sb = _SlabBuilder()

    def flat_conv_w(w, c_in_pad=None):
        # (C_out, C_in, K) -> (C_out, K*C_in) laid out tap-major then channel.
        w = np.asarray(w, np.float32)
        c_out, c_in_w, _k = w.shape
        if c_in_pad is not None and c_in_pad != c_in_w:
            w = np.pad(w, ((0, 0), (0, c_in_pad - c_in_w), (0, 0)))
        return np.transpose(w, (0, 2, 1)).reshape(c_out, -1)

    const_cache = {}

    def stride1_taps(t_cur):
        key = ('s1', t_cur)
        if key not in const_cache:
            mats, t_out = _conv_gather_mats(N, t_cur, K, 1, pad)
            assert t_out == t_cur
            names = []
            for k in range(K):
                if k == pad:
                    names.append(None)          # identity tap: reuse h
                else:
                    names.append(sb.add(f's1_{t_cur}_{k}', mats[k]))
            const_cache[key] = names
        return const_cache[key]

    def ds_taps(t_cur):
        key = ('ds', t_cur)
        if key not in const_cache:
            mats, t_out = _conv_gather_mats(N, t_cur, 2 * K, 2, K - 1)
            assert t_out == t_cur // 2
            const_cache[key] = [sb.add(f'ds_{t_cur}_{k}', m)
                                for k, m in enumerate(mats)]
        return const_cache[key]

    def cached(kind, t_cur, builder):
        key = (kind, t_cur)
        if key not in const_cache:
            const_cache[key] = sb.add(f'{kind}_{t_cur}', builder(N, t_cur))
        return const_cache[key]

    # ---- initial conv ----
    plan = {'init': {'w': sb.add('init_w',
                                 flat_conv_w(params['init_w'], C_in_pad)),
                     'taps': stride1_taps(T),
                     'mean': cached('mean', T, _mean_mat)}}

    T_cur = T
    levels_plan = []
    out_info = []                      # (row_offset, c_level, T_level)
    out_row = 0
    for li, (level, method) in enumerate(zip(params['levels'],
                                             downsampling_method)):
        blocks_plan = []
        for bi, bp in enumerate(level):
            c_out, c_in_b, _ = np.shape(bp['w1'])
            taps2 = np.shape(bp['w2'])[2]
            ds = bool(bp['downsample'])
            pref = f'l{li}b{bi}_'
            if ds:
                # TODO(synk): downsampling_method 1/2 (odd T) not implemented.
                assert method == 0 and T_cur % 2 == 0, \
                    "only downsampling_method 0 with even T implemented"
            else:
                assert taps2 == K

            blk = {
                'w1': sb.add(pref + 'w1', flat_conv_w(bp['w1'])),
                'g1': sb.add(pref + 'g1', bp['g1']),
                'b1': sb.add(pref + 'b1', bp['b1']),
                'w2': sb.add(pref + 'w2', flat_conv_w(bp['w2'])),
                'g2': sb.add(pref + 'g2', bp['g2']),
                'b2': sb.add(pref + 'b2', bp['b2']),
                'taps1': stride1_taps(T_cur),
                'mean_in': cached('mean', T_cur, _mean_mat),
                'pad_ch': int(c_out - c_in_b),
            }

            # SE weights, padded on the bottleneck dim to 8 (zeros -> exact)
            sw1 = np.asarray(bp['se_w1'], np.float32)
            sb1 = np.asarray(bp['se_b1'], np.float32).reshape(-1, 1)
            sw2 = np.asarray(bp['se_w2'], np.float32)
            sb2 = np.asarray(bp['se_b2'], np.float32).reshape(-1, 1)
            cr = sw1.shape[0]
            if cr < _SE_PAD:
                sw1 = np.pad(sw1, ((0, _SE_PAD - cr), (0, 0)))
                sb1 = np.pad(sb1, ((0, _SE_PAD - cr), (0, 0)))
                sw2 = np.pad(sw2, ((0, 0), (0, _SE_PAD - cr)))
            blk['sw1'] = sb.add(pref + 'sw1', sw1)
            blk['sb1'] = sb.add(pref + 'sb1', sb1)
            blk['sw2'] = sb.add(pref + 'sw2', sw2)
            blk['sb2'] = sb.add(pref + 'sb2', sb2)

            if ds:
                blk['taps2'] = ds_taps(T_cur)
                blk['avgpool'] = cached('ap', T_cur, _avgpool_mat)
                T_next = T_cur // 2
            else:
                blk['taps2'] = stride1_taps(T_cur)
                blk['avgpool'] = None
                T_next = T_cur
            blk['mean_out'] = cached('mean', T_next, _mean_mat)
            blk['pool'] = cached('pool', T_next, _pool_mat)
            blk['expand'] = cached('exp', T_next, _expand_mat)

            blocks_plan.append(blk)
            T_cur = T_next

        c_level = int(np.shape(level[-1]['w1'])[0])
        levels_plan.append({'blocks': blocks_plan, 'out_row': out_row})
        out_info.append((out_row, c_level, T_cur))
        out_row += ((c_level + 7) // 8) * 8
    plan['levels'] = levels_plan

    slab = jnp.asarray(sb.build())                 # (rows, 128) f32, one DMA
    out_rows = out_row

    # input layout: (N, C, T) -> (C_pad, N*T)  (batch folded into lanes)
    xp = jnp.pad(x.astype(jnp.float32),
                 ((0, 0), (0, C_in_pad - C_in), (0, 0)))
    x2d = jnp.transpose(xp, (1, 0, 2)).reshape(C_in_pad, N * T)

    kernel = _build_kernel(sb.offsets, plan)

    out_slab = pl.pallas_call(
        kernel,
        out_shape=jax.ShapeDtypeStruct((out_rows, _LANES), jnp.float32),
        grid=(1,),
        in_specs=[pl.BlockSpec((C_in_pad, N * T), lambda i: (0, 0)),
                  pl.BlockSpec(slab.shape, lambda i: (0, 0))],
        out_specs=pl.BlockSpec((out_rows, _LANES), lambda i: (0, 0)),
        compiler_params=pltpu.CompilerParams(
            dimension_semantics=("arbitrary",)),
    )(x2d, slab)

    # unpack the lane-dense output slab back into per-level (N, C, T) arrays
    outs = []
    for (r0, c, t) in out_info:
        o = out_slab[r0:r0 + c, :N * t].reshape(c, N, t)
        outs.append(jnp.transpose(o, (1, 0, 2)))
    return outs


# -----------------------------------------------------------------------------
# Deterministic parameter init (shapes follow the PyTorch module)
# -----------------------------------------------------------------------------
def _conv_w(key, c_out, c_in, k):
    bound = 1.0 / math.sqrt(c_in * k)
    return jax.random.uniform(key, (c_out, c_in, k), jnp.float32, -bound, bound)


def _lin_w(key, c_out, c_in):
    bound = 1.0 / math.sqrt(c_in)
    return jax.random.uniform(key, (c_out, c_in), jnp.float32, -bound, bound)


def _lin_b(key, c_out, c_in):
    bound = 1.0 / math.sqrt(c_in)
    return jax.random.uniform(key, (c_out,), jnp.float32, -bound, bound)


def init_backbone_params(key, in_channels, hidden_channels, kernel_size, blocks,
                         se_bottleneck_factor=4):
    params = {'kernel_size': kernel_size}
    key, k0 = jax.random.split(key)
    params['init_w'] = _conv_w(k0, hidden_channels[0], in_channels, kernel_size)
    params['init_g'] = jnp.ones((hidden_channels[0],), jnp.float32)   # IN no-affine
    params['init_b'] = jnp.zeros((hidden_channels[0],), jnp.float32)

    levels = []
    prev = hidden_channels[0]
    for li, (hc, nb) in enumerate(zip(hidden_channels, blocks)):
        level = []
        for bi in range(nb):
            c_in = prev if bi == 0 else hc
            downsample = (li > 0 and bi == 0)
            K2 = kernel_size * 2 if downsample else kernel_size
            cr = hc // se_bottleneck_factor
            key, k1, k2, k3, k4, k5, k6 = jax.random.split(key, 7)
            level.append({
                'downsample': downsample,
                'w1': _conv_w(k1, hc, c_in, kernel_size),
                'g1': jnp.ones((hc,), jnp.float32),
                'b1': jnp.zeros((hc,), jnp.float32),
                'w2': _conv_w(k2, hc, hc, K2),
                'g2': jnp.ones((hc,), jnp.float32),
                'b2': jnp.zeros((hc,), jnp.float32),
                'se_w1': _lin_w(k3, cr, hc),
                'se_b1': _lin_b(k4, cr, hc),
                'se_w2': _lin_w(k5, hc, cr),
                'se_b2': _lin_b(k6, hc, cr),
            })
        levels.append(level)
        prev = hc
    params['levels'] = levels
    return params


# -----------------------------------------------------------------------------
# Pure-JAX reference (mirrors the PyTorch forward) for correctness checking
# -----------------------------------------------------------------------------
def _ref_conv1d(x, w, stride, pad):
    xp = jnp.pad(x, ((0, 0), (0, 0), (pad, pad)), mode='edge') if pad > 0 else x
    return lax.conv_general_dilated(xp, w, (stride,), 'VALID',
                                    dimension_numbers=('NCH', 'OIH', 'NCH'),
                                    precision=lax.Precision.HIGHEST)


def _ref_instnorm(x, g, b):
    m = x.mean(-1, keepdims=True)
    v = ((x - m) ** 2).mean(-1, keepdims=True)
    return (x - m) / jnp.sqrt(v + EPS) * g[None, :, None] + b[None, :, None]


def _ref_block(x, bp, K):
    N, C_in, T = x.shape
    C_out = bp['w1'].shape[0]
    x_init = jnp.pad(x, ((0, 0), (0, C_out - C_in), (0, 0))) if C_in < C_out else x
    p = (K - 1) // 2
    h = _gelu(_ref_instnorm(_ref_conv1d(x, bp['w1'], 1, p), bp['g1'], bp['b1']))
    if bp['downsample']:
        h = _ref_instnorm(_ref_conv1d(h, bp['w2'], 2, K - 1), bp['g2'], bp['b2'])
    else:
        h = _ref_instnorm(_ref_conv1d(h, bp['w2'], 1, p), bp['g2'], bp['b2'])
    # squeeze-excitation
    pool = h.mean(-1, keepdims=True)
    z = jnp.einsum('rc,ncq->nrq', bp['se_w1'], pool,
                   precision=lax.Precision.HIGHEST) + bp['se_b1'][None, :, None]
    z = jnp.maximum(z, 0.0)
    g = jnp.einsum('cr,nrq->ncq', bp['se_w2'], z,
                   precision=lax.Precision.HIGHEST) + bp['se_b2'][None, :, None]
    h = h * jax.nn.sigmoid(g)
    if bp['downsample']:
        xi = jnp.pad(x_init, ((0, 0), (0, 0), (0, 1)), mode='edge')
        x_init = (xi[:, :, 0:-1:2] + xi[:, :, 1::2]) / 2.0
    return _gelu(x_init + h)


def ref_backbone_forward(params, x, downsampling_method):
    K = params['kernel_size']
    p = (K - 1) // 2
    h = _gelu(_ref_instnorm(_ref_conv1d(x, params['init_w'], 1, p),
                            params['init_g'], params['init_b']))
    ret = []
    for level, _m in zip(params['levels'], downsampling_method):
        for bp in level:
            h = _ref_block(h, bp, K)
        ret.append(h)
    return ret


# -----------------------------------------------------------------------------
if __name__ == "__main__":
    key = jax.random.PRNGKey(0)
    kp, kx = jax.random.split(key)

    in_channels = 2
    hidden_channels = [8, 16]
    blocks = [1, 2]
    kernel_size = 3
    N, T = 2, 16
    downsampling_method = [0, 0]

    params = init_backbone_params(kp, in_channels, hidden_channels,
                                  kernel_size, blocks)
    x = jax.random.normal(kx, (N, in_channels, T), jnp.float32)

    outs = backbone_forward(params, x, downsampling_method)
    outs = [jax.block_until_ready(o) for o in outs]

    refs = ref_backbone_forward(params, x, downsampling_method)
    expected_shapes = [(N, 8, 16), (N, 16, 8)]
    for o, r, es in zip(outs, refs, expected_shapes):
        assert o.shape == es, (o.shape, es)
        err = float(jnp.max(jnp.abs(o - r)))
        assert err < 5e-3, f"max abs error {err}"

    print("KERNEL_OK")
</pallas_src>

<mosaic_0001>
module attributes {stable_mosaic.version = 11 : i64} {
  func.func @kernel(%arg0: i32, %arg1: memref<8x32xf32, #tpu.memory_space<vmem>>, %arg2: memref<808x128xf32, #tpu.memory_space<vmem>>, %arg3: memref<24x128xf32, #tpu.memory_space<vmem>>) attributes {dimension_semantics = [#tpu.dimension_semantics<arbitrary>], iteration_bounds = array<i64: 1>, scalar_prefetch = 0 : i64, scratch_operands = 0 : i64, tpu.core_type = #tpu.core_type<tc>, window_params = [{pipeline_mode = #tpu.pipeline_mode<synchronous>, transform_indices = @transform_0, window_bounds = array<i64: 8, 32>}, {pipeline_mode = #tpu.pipeline_mode<synchronous>, transform_indices = @transform_1, window_bounds = array<i64: 808, 128>}, {pipeline_mode = #tpu.pipeline_mode<synchronous>, transform_indices = @transform_2, window_bounds = array<i64: 24, 128>}]} {
    %c0 = arith.constant 0 : index
    %c0_0 = arith.constant 0 : index
    %0 = vector.load %arg1[%c0, %c0_0] : memref<8x32xf32, #tpu.memory_space<vmem>>, vector<8x32xf32>
    %c8 = arith.constant 8 : index
    %c0_1 = arith.constant 0 : index
    %1 = vector.load %arg2[%c8, %c0_1] : memref<808x128xf32, #tpu.memory_space<vmem>>, vector<32x32xf32>
    %cst = arith.constant dense<0.000000e+00> : vector<8x32xf32>
    %2 = tpu.matmul %0, %1, %cst {dimension_numbers = #tpu.dot_dimension_numbers<[1], [0], [0], [1], [0, 0, 1, 1], [], []>} : vector<8x32xf32>, vector<32x32xf32>, vector<8x32xf32> -> vector<8x32xf32>
    %c40 = arith.constant 40 : index
    %c0_2 = arith.constant 0 : index
    %3 = vector.load %arg2[%c40, %c0_2] : memref<808x128xf32, #tpu.memory_space<vmem>>, vector<32x32xf32>
    %cst_3 = arith.constant dense<0.000000e+00> : vector<8x32xf32>
    %4 = tpu.matmul %0, %3, %cst_3 {dimension_numbers = #tpu.dot_dimension_numbers<[1], [0], [0], [1], [0, 0, 1, 1], [], []>} : vector<8x32xf32>, vector<32x32xf32>, vector<8x32xf32> -> vector<8x32xf32>
    %5 = tpu.concatenate %2, %0, %4 in 0 : vector<8x32xf32>, vector<8x32xf32>, vector<8x32xf32> -> vector<24x32xf32>
    %c0_4 = arith.constant 0 : index
    %c0_5 = arith.constant 0 : index
    %6 = vector.load %arg2[%c0_4, %c0_5] : memref<808x128xf32, #tpu.memory_space<vmem>>, vector<8x24xf32>
    %cst_6 = arith.constant dense<0.000000e+00> : vector<8x32xf32>
    %7 = tpu.matmul %6, %5, %cst_6 {dimension_numbers = #tpu.dot_dimension_numbers<[1], [0], [0], [1], [0, 0, 1, 1], [], []>} : vector<8x24xf32>, vector<24x32xf32>, vector<8x32xf32> -> vector<8x32xf32>
    %c72 = arith.constant 72 : index
    %c0_7 = arith.constant 0 : index
    %8 = vector.load %arg2[%c72, %c0_7] : memref<808x128xf32, #tpu.memory_space<vmem>>, vector<32x32xf32>
    %cst_8 = arith.constant dense<0.000000e+00> : vector<8x32xf32>
    %9 = tpu.matmul %7, %8, %cst_8 {dimension_numbers = #tpu.dot_dimension_numbers<[1], [0], [0], [1], [0, 0, 1, 1], [], []>} : vector<8x32xf32>, vector<32x32xf32>, vector<8x32xf32> -> vector<8x32xf32>
    %10 = arith.subf %7, %9 : vector<8x32xf32>
    %11 = arith.mulf %10, %10 : vector<8x32xf32>
    %cst_9 = arith.constant dense<0.000000e+00> : vector<8x32xf32>
    %12 = tpu.matmul %11, %8, %cst_9 {dimension_numbers = #tpu.dot_dimension_numbers<[1], [0], [0], [1], [0, 0, 1, 1], [], []>} : vector<8x32xf32>, vector<32x32xf32>, vector<8x32xf32> -> vector<8x32xf32>
    %cst_10 = arith.constant 9.99999974E-6 : f32
    %13 = vector.broadcast %cst_10 : f32 to vector<8x32xf32>
    %14 = arith.addf %12, %13 : vector<8x32xf32>
    %15 = math.rsqrt %14 : vector<8x32xf32>
    %16 = arith.mulf %10, %15 : vector<8x32xf32>
    %cst_11 = arith.constant 5.000000e-01 : f32
    %17 = vector.broadcast %cst_11 : f32 to vector<8x32xf32>
    %18 = arith.mulf %17, %16 : vector<8x32xf32>
    %cst_12 = arith.constant 0.707106769 : f32
    %19 = vector.broadcast %cst_12 : f32 to vector<8x32xf32>
    %20 = arith.mulf %16, %19 : vector<8x32xf32>
    %21 = math.erf %20 : vector<8x32xf32>
    %cst_13 = arith.constant 1.000000e+00 : f32
    %22 = vector.broadcast %cst_13 : f32 to vector<8x32xf32>
    %23 = arith.addf %22, %21 : vector<8x32xf32>
    %24 = arith.mulf %18, %23 : vector<8x32xf32>
    %c8_14 = arith.constant 8 : index
    %c0_15 = arith.constant 0 : index
    %25 = vector.load %arg2[%c8_14, %c0_15] : memref<808x128xf32, #tpu.memory_space<vmem>>, vector<32x32xf32>
    %cst_16 = arith.constant dense<0.000000e+00> : vector<8x32xf32>
    %26 = tpu.matmul %24, %25, %cst_16 {dimension_numbers = #tpu.dot_dimension_numbers<[1], [0], [0], [1], [0, 0, 1, 1], [], []>} : vector<8x32xf32>, vector<32x32xf32>, vector<8x32xf32> -> vector<8x32xf32>
    %c40_17 = arith.constant 40 : index
    %c0_18 = arith.constant 0 : index
    %27 = vector.load %arg2[%c40_17, %c0_18] : memref<808x128xf32, #tpu.memory_space<vmem>>, vector<32x32xf32>
    %cst_19 = arith.constant dense<0.000000e+00> : vector<8x32xf32>
    %28 = tpu.matmul %24, %27, %cst_19 {dimension_numbers = #tpu.dot_dimension_numbers<[1], [0], [0], [1], [0, 0, 1, 1], [], []>} : vector<8x32xf32>, vector<32x32xf32>, vector<8x32xf32> -> vector<8x32xf32>
    %29 = tpu.concatenate %26, %24, %28 in 0 : vector<8x32xf32>, vector<8x32xf32>, vector<8x32xf32> -> vector<24x32xf32>
    %c104 = arith.constant 104 : index
    %c0_20 = arith.constant 0 : index
    %30 = vector.load %arg2[%c104, %c0_20] : memref<808x128xf32, #tpu.memory_space<vmem>>, vector<8x24xf32>
    %cst_21 = arith.constant dense<0.000000e+00> : vector<8x32xf32>
    %31 = tpu.matmul %30, %29, %cst_21 {dimension_numbers = #tpu.dot_dimension_numbers<[1], [0], [0], [1], [0, 0, 1, 1], [], []>} : vector<8x24xf32>, vector<24x32xf32>, vector<8x32xf32> -> vector<8x32xf32>
    %c72_22 = arith.constant 72 : index
    %c0_23 = arith.constant 0 : index
    %32 = vector.load %arg2[%c72_22, %c0_23] : memref<808x128xf32, #tpu.memory_space<vmem>>, vector<32x32xf32>
    %cst_24 = arith.constant dense<0.000000e+00> : vector<8x32xf32>
    %33 = tpu.matmul %31, %32, %cst_24 {dimension_numbers = #tpu.dot_dimension_numbers<[1], [0], [0], [1], [0, 0, 1, 1], [], []>} : vector<8x32xf32>, vector<32x32xf32>, vector<8x32xf32> -> vector<8x32xf32>
    %34 = arith.subf %31, %33 : vector<8x32xf32>
    %35 = arith.mulf %34, %34 : vector<8x32xf32>
    %cst_25 = arith.constant dense<0.000000e+00> : vector<8x32xf32>
    %36 = tpu.matmul %35, %32, %cst_25 {dimension_numbers = #tpu.dot_dimension_numbers<[1], [0], [0], [1], [0, 0, 1, 1], [], []>} : vector<8x32xf32>, vector<32x32xf32>, vector<8x32xf32> -> vector<8x32xf32>
    %cst_26 = arith.constant 9.99999974E-6 : f32
    %37 = vector.broadcast %cst_26 : f32 to vector<8x32xf32>
    %38 = arith.addf %36, %37 : vector<8x32xf32>
    %39 = math.rsqrt %38 : vector<8x32xf32>
    %40 = arith.mulf %34, %39 : vector<8x32xf32>
    %c112 = arith.constant 112 : index
    %c0_27 = arith.constant 0 : index
    %41 = vector.load %arg2[%c112, %c0_27] : memref<808x128xf32, #tpu.memory_space<vmem>>, vector<8x1xf32>
    %42 = vector.broadcast %41 : vector<8x1xf32> to vector<8x32xf32>
    %43 = arith.mulf %40, %42 : vector<8x32xf32>
    %c120 = arith.constant 120 : index
    %c0_28 = arith.constant 0 : index
    %44 = vector.load %arg2[%c120, %c0_28] : memref<808x128xf32, #tpu.memory_space<vmem>>, vector<8x1xf32>
    %45 = vector.broadcast %44 : vector<8x1xf32> to vector<8x32xf32>
    %46 = arith.addf %43, %45 : vector<8x32xf32>
    %cst_29 = arith.constant 5.000000e-01 : f32
    %47 = vector.broadcast %cst_29 : f32 to vector<8x32xf32>
    %48 = arith.mulf %47, %46 : vector<8x32xf32>
    %cst_30 = arith.constant 0.707106769 : f32
    %49 = vector.broadcast %cst_30 : f32 to vector<8x32xf32>
    %50 = arith.mulf %46, %49 : vector<8x32xf32>
    %51 = math.erf %50 : vector<8x32xf32>
    %cst_31 = arith.constant 1.000000e+00 : f32
    %52 = vector.broadcast %cst_31 : f32 to vector<8x32xf32>
    %53 = arith.addf %52, %51 : vector<8x32xf32>
    %54 = arith.mulf %48, %53 : vector<8x32xf32>
    %c8_32 = arith.constant 8 : index
    %c0_33 = arith.constant 0 : index
    %55 = vector.load %arg2[%c8_32, %c0_33] : memref<808x128xf32, #tpu.memory_space<vmem>>, vector<32x32xf32>
    %cst_34 = arith.constant dense<0.000000e+00> : vector<8x32xf32>
    %56 = tpu.matmul %54, %55, %cst_34 {dimension_numbers = #tpu.dot_dimension_numbers<[1], [0], [0], [1], [0, 0, 1, 1], [], []>} : vector<8x32xf32>, vector<32x32xf32>, vector<8x32xf32> -> vector<8x32xf32>
    %c40_35 = arith.constant 40 : index
    %c0_36 = arith.constant 0 : index
    %57 = vector.load %arg2[%c40_35, %c0_36] : memref<808x128xf32, #tpu.memory_space<vmem>>, vector<32x32xf32>
    %cst_37 = arith.constant dense<0.000000e+00> : vector<8x32xf32>
    %58 = tpu.matmul %54, %57, %cst_37 {dimension_numbers = #tpu.dot_dimension_numbers<[1], [0], [0], [1], [0, 0, 1, 1], [], []>} : vector<8x32xf32>, vector<32x32xf32>, vector<8x32xf32> -> vector<8x32xf32>
    %59 = tpu.concatenate %56, %54, %58 in 0 : vector<8x32xf32>, vector<8x32xf32>, vector<8x32xf32> -> vector<24x32xf32>
    %c128 = arith.constant 128 : index
    %c0_38 = arith.constant 0 : index
    %60 = vector.load %arg2[%c128, %c0_38] : memref<808x128xf32, #tpu.memory_space<vmem>>, vector<8x24xf32>
    %cst_39 = arith.constant dense<0.000000e+00> : vector<8x32xf32>
    %61 = tpu.matmul %60, %59, %cst_39 {dimension_numbers = #tpu.dot_dimension_numbers<[1], [0], [0], [1], [0, 0, 1, 1], [], []>} : vector<8x24xf32>, vector<24x32xf32>, vector<8x32xf32> -> vector<8x32xf32>
    %c72_40 = arith.constant 72 : index
    %c0_41 = arith.constant 0 : index
    %62 = vector.load %arg2[%c72_40, %c0_41] : memref<808x128xf32, #tpu.memory_space<vmem>>, vector<32x32xf32>
    %cst_42 = arith.constant dense<0.000000e+00> : vector<8x32xf32>
    %63 = tpu.matmul %61, %62, %cst_42 {dimension_numbers = #tpu.dot_dimension_numbers<[1], [0], [0], [1], [0, 0, 1, 1], [], []>} : vector<8x32xf32>, vector<32x32xf32>, vector<8x32xf32> -> vector<8x32xf32>
    %64 = arith.subf %61, %63 : vector<8x32xf32>
    %65 = arith.mulf %64, %64 : vector<8x32xf32>
    %cst_43 = arith.constant dense<0.000000e+00> : vector<8x32xf32>
    %66 = tpu.matmul %65, %62, %cst_43 {dimension_numbers = #tpu.dot_dimension_numbers<[1], [0], [0], [1], [0, 0, 1, 1], [], []>} : vector<8x32xf32>, vector<32x32xf32>, vector<8x32xf32> -> vector<8x32xf32>
    %cst_44 = arith.constant 9.99999974E-6 : f32
    %67 = vector.broadcast %cst_44 : f32 to vector<8x32xf32>
    %68 = arith.addf %66, %67 : vector<8x32xf32>
    %69 = math.rsqrt %68 : vector<8x32xf32>
    %70 = arith.mulf %64, %69 : vector<8x32xf32>
    %c136 = arith.constant 136 : index
    %c0_45 = arith.constant 0 : index
    %71 = vector.load %arg2[%c136, %c0_45] : memref<808x128xf32, #tpu.memory_space<vmem>>, vector<8x1xf32>
    %72 = vector.broadcast %71 : vector<8x1xf32> to vector<8x32xf32>
    %73 = arith.mulf %70, %72 : vector<8x32xf32>
    %c144 = arith.constant 144 : index
    %c0_46 = arith.constant 0 : index
    %74 = vector.load %arg2[%c144, %c0_46] : memref<808x128xf32, #tpu.memory_space<vmem>>, vector<8x1xf32>
    %75 = vector.broadcast %74 : vector<8x1xf32> to vector<8x32xf32>
    %76 = arith.addf %73, %75 : vector<8x32xf32>
    %c184 = arith.constant 184 : index
    %c0_47 = arith.constant 0 : index
    %77 = vector.load %arg2[%c184, %c0_47] : memref<808x128xf32, #tpu.memory_space<vmem>>, vector<32x8xf32>
    %cst_48 = arith.constant dense<0.000000e+00> : vector<8x8xf32>
    %78 = tpu.matmul %76, %77, %cst_48 {dimension_numbers = #tpu.dot_dimension_numbers<[1], [0], [0], [1], [0, 0, 1, 1], [], []>} : vector<8x32xf32>, vector<32x8xf32>, vector<8x8xf32> -> vector<8x8xf32>
    %c152 = arith.constant 152 : index
    %c0_49 = arith.constant 0 : index
    %79 = vector.load %arg2[%c152, %c0_49] : memref<808x128xf32, #tpu.memory_space<vmem>>, vector<8x8xf32>
    %cst_50 = arith.constant dense<0.000000e+00> : vector<8x8xf32>
    %80 = tpu.matmul %79, %78, %cst_50 {dimension_numbers = #tpu.dot_dimension_numbers<[1], [0], [0], [1], [0, 0, 1, 1], [], []>} : vector<8x8xf32>, vector<8x8xf32>, vector<8x8xf32> -> vector<8x8xf32>
    %c160 = arith.constant 160 : index
    %c0_51 = arith.constant 0 : index
    %81 = vector.load %arg2[%c160, %c0_51] : memref<808x128xf32, #tpu.memory_space<vmem>>, vector<8x1xf32>
    %82 = vector.broadcast %81 : vector<8x1xf32> to vector<8x8xf32>
    %83 = arith.addf %80, %82 : vector<8x8xf32>
    %cst_52 = arith.constant 0.000000e+00 : f32
    %84 = vector.broadcast %cst_52 : f32 to vector<8x8xf32>
    %85 = arith.maximumf %83, %84 : vector<8x8xf32>
    %c168 = arith.constant 168 : index
    %c0_53 = arith.constant 0 : index
    %86 = vector.load %arg2[%c168, %c0_53] : memref<808x128xf32, #tpu.memory_space<vmem>>, vector<8x8xf32>
    %cst_54 = arith.constant dense<0.000000e+00> : vector<8x8xf32>
    %87 = tpu.matmul %86, %85, %cst_54 {dimension_numbers = #tpu.dot_dimension_numbers<[1], [0], [0], [1], [0, 0, 1, 1], [], []>} : vector<8x8xf32>, vector<8x8xf32>, vector<8x8xf32> -> vector<8x8xf32>
    %c176 = arith.constant 176 : index
    %c0_55 = arith.constant 0 : index
    %88 = vector.load %arg2[%c176, %c0_55] : memref<808x128xf32, #tpu.memory_space<vmem>>, vector<8x1xf32>
    %89 = vector.broadcast %88 : vector<8x1xf32> to vector<8x8xf32>
    %90 = arith.addf %87, %89 : vector<8x8xf32>
    %91 = arith.negf %90 : vector<8x8xf32>
    %92 = math.exp %91 : vector<8x8xf32>
    %cst_56 = arith.constant 1.000000e+00 : f32
    %93 = vector.broadcast %cst_56 : f32 to vector<8x8xf32>
    %94 = arith.addf %93, %92 : vector<8x8xf32>
    %95 = arith.divf %93, %94 : vector<8x8xf32>
    %c216 = arith.constant 216 : index
    %c0_57 = arith.constant 0 : index
    %96 = vector.load %arg2[%c216, %c0_57] : memref<808x128xf32, #tpu.memory_space<vmem>>, vector<8x32xf32>
    %cst_58 = arith.constant dense<0.000000e+00> : vector<8x32xf32>
    %97 = tpu.matmul %95, %96, %cst_58 {dimension_numbers = #tpu.dot_dimension_numbers<[1], [0], [0], [1], [0, 0, 1, 1], [], []>} : vector<8x8xf32>, vector<8x32xf32>, vector<8x32xf32> -> vector<8x32xf32>
    %98 = arith.mulf %76, %97 : vector<8x32xf32>
    %99 = arith.addf %98, %24 : vector<8x32xf32>
    %cst_59 = arith.constant 5.000000e-01 : f32
    %100 = vector.broadcast %cst_59 : f32 to vector<8x32xf32>
    %101 = arith.mulf %100, %99 : vector<8x32xf32>
    %cst_60 = arith.constant 0.707106769 : f32
    %102 = vector.broadcast %cst_60 : f32 to vector<8x32xf32>
    %103 = arith.mulf %99, %102 : vector<8x32xf32>
    %104 = math.erf %103 : vector<8x32xf32>
    %cst_61 = arith.constant 1.000000e+00 : f32
    %105 = vector.broadcast %cst_61 : f32 to vector<8x32xf32>
    %106 = arith.addf %105, %104 : vector<8x32xf32>
    %107 = arith.mulf %101, %106 : vector<8x32xf32>
    %cst_62 = arith.constant 0.000000e+00 : f32
    %108 = vector.broadcast %cst_62 : f32 to vector<8x96xf32>
    %109 = tpu.concatenate %107, %108 in 1 : vector<8x32xf32>, vector<8x96xf32> -> vector<8x128xf32>
    %c0_63 = arith.constant 0 : index
    %c0_64 = arith.constant 0 : index
    %110 = vector.load %arg3[%c0_63, %c0_64] : memref<24x128xf32, #tpu.memory_space<vmem>>, vector<8x128xf32>
    tpu.vector_store %arg3[%c0_63, %c0_64], %109 {strides = array<i32>} : memref<24x128xf32, #tpu.memory_space<vmem>>, vector<8x128xf32>,
    %c8_65 = arith.constant 8 : index
    %c0_66 = arith.constant 0 : index
    %111 = vector.load %arg2[%c8_65, %c0_66] : memref<808x128xf32, #tpu.memory_space<vmem>>, vector<32x32xf32>
    %cst_67 = arith.constant dense<0.000000e+00> : vector<8x32xf32>
    %112 = tpu.matmul %107, %111, %cst_67 {dimension_numbers = #tpu.dot_dimension_numbers<[1], [0], [0], [1], [0, 0, 1, 1], [], []>} : vector<8x32xf32>, vector<32x32xf32>, vector<8x32xf32> -> vector<8x32xf32>
    %c40_68 = arith.constant 40 : index
    %c0_69 = arith.constant 0 : index
    %113 = vector.load %arg2[%c40_68, %c0_69] : memref<808x128xf32, #tpu.memory_space<vmem>>, vector<32x32xf32>
    %cst_70 = arith.constant dense<0.000000e+00> : vector<8x32xf32>
    %114 = tpu.matmul %107, %113, %cst_70 {dimension_numbers = #tpu.dot_dimension_numbers<[1], [0], [0], [1], [0, 0, 1, 1], [], []>} : vector<8x32xf32>, vector<32x32xf32>, vector<8x32xf32> -> vector<8x32xf32>
    %115 = tpu.concatenate %112, %107, %114 in 0 : vector<8x32xf32>, vector<8x32xf32>, vector<8x32xf32> -> vector<24x32xf32>
    %c224 = arith.constant 224 : index
    %c0_71 = arith.constant 0 : index
    %116 = vector.load %arg2[%c224, %c0_71] : memref<808x128xf32, #tpu.memory_space<vmem>>, vector<16x24xf32>
    %cst_72 = arith.constant dense<0.000000e+00> : vector<16x32xf32>
    %117 = tpu.matmul %116, %115, %cst_72 {dimension_numbers = #tpu.dot_dimension_numbers<[1], [0], [0], [1], [0, 0, 1, 1], [], []>} : vector<16x24xf32>, vector<24x32xf32>, vector<16x32xf32> -> vector<16x32xf32>
    %c72_73 = arith.constant 72 : index
    %c0_74 = arith.constant 0 : index
    %118 = vector.load %arg2[%c72_73, %c0_74] : memref<808x128xf32, #tpu.memory_space<vmem>>, vector<32x32xf32>
    %cst_75 = arith.constant dense<0.000000e+00> : vector<16x32xf32>
    %119 = tpu.matmul %117, %118, %cst_75 {dimension_numbers = #tpu.dot_dimension_numbers<[1], [0], [0], [1], [0, 0, 1, 1], [], []>} : vector<16x32xf32>, vector<32x32xf32>, vector<16x32xf32> -> vector<16x32xf32>
    %120 = arith.subf %117, %119 : vector<16x32xf32>
    %121 = arith.mulf %120, %120 : vector<16x32xf32>
    %cst_76 = arith.constant dense<0.000000e+00> : vector<16x32xf32>
    %122 = tpu.matmul %121, %118, %cst_76 {dimension_numbers = #tpu.dot_dimension_numbers<[1], [0], [0], [1], [0, 0, 1, 1], [], []>} : vector<16x32xf32>, vector<32x32xf32>, vector<16x32xf32> -> vector<16x32xf32>
    %cst_77 = arith.constant 9.99999974E-6 : f32
    %123 = vector.broadcast %cst_77 : f32 to vector<16x32xf32>
    %124 = arith.addf %122, %123 : vector<16x32xf32>
    %125 = math.rsqrt %124 : vector<16x32xf32>
    %126 = arith.mulf %120, %125 : vector<16x32xf32>
    %c240 = arith.constant 240 : index
    %c0_78 = arith.constant 0 : index
    %127 = vector.load %arg2[%c240, %c0_78] : memref<808x128xf32, #tpu.memory_space<vmem>>, vector<16x1xf32>
    %128 = vector.broadcast %127 : vector<16x1xf32> to vector<16x32xf32>
    %129 = arith.mulf %126, %128 : vector<16x32xf32>
    %c256 = arith.constant 256 : index
    %c0_79 = arith.constant 0 : index
    %130 = vector.load %arg2[%c256, %c0_79] : memref<808x128xf32, #tpu.memory_space<vmem>>, vector<16x1xf32>
    %131 = vector.broadcast %130 : vector<16x1xf32> to vector<16x32xf32>
    %132 = arith.addf %129, %131 : vector<16x32xf32>
    %cst_80 = arith.constant 5.000000e-01 : f32
    %133 = vector.broadcast %cst_80 : f32 to vector<16x32xf32>
    %134 = arith.mulf %133, %132 : vector<16x32xf32>
    %cst_81 = arith.constant 0.707106769 : f32
    %135 = vector.broadcast %cst_81 : f32 to vector<16x32xf32>
    %136 = arith.mulf %132, %135 : vector<16x32xf32>
    %137 = math.erf %136 : vector<16x32xf32>
    %cst_82 = arith.constant 1.000000e+00 : f32
    %138 = vector.broadcast %cst_82 : f32 to vector<16x32xf32>
    %139 = arith.addf %138, %137 : vector<16x32xf32>
    %140 = arith.mulf %134, %139 : vector<16x32xf32>
    %c368 = arith.constant 368 : index
    %c0_83 = arith.constant 0 : index
    %141 = vector.load %arg2[%c368, %c0_83] : memref<808x128xf32, #tpu.memory_space<vmem>>, vector<32x16xf32>
    %cst_84 = arith.constant dense<0.000000e+00> : vector<16x16xf32>
    %142 = tpu.matmul %140, %141, %cst_84 {dimension_numbers = #tpu.dot_dimension_numbers<[1], [0], [0], [1], [0, 0, 1, 1], [], []>} : vector<16x32xf32>, vector<32x16xf32>, vector<16x16xf32> -> vector<16x16xf32>
    %c400 = arith.constant 400 : index
    %c0_85 = arith.constant 0 : index
    %143 = vector.load %arg2[%c400, %c0_85] : memref<808x128xf32, #tpu.memory_space<vmem>>, vector<32x16xf32>
    %cst_86 = arith.constant dense<0.000000e+00> : vector<16x16xf32>
    %144 = tpu.matmul %140, %143, %cst_86 {dimension_numbers = #tpu.dot_dimension_numbers<[1], [0], [0], [1], [0, 0, 1, 1], [], []>} : vector<16x32xf32>, vector<32x16xf32>, vector<16x16xf32> -> vector<16x16xf32>
    %c432 = arith.constant 432 : index
    %c0_87 = arith.constant 0 : index
    %145 = vector.load %arg2[%c432, %c0_87] : memref<808x128xf32, #tpu.memory_space<vmem>>, vector<32x16xf32>
    %cst_88 = arith.constant dense<0.000000e+00> : vector<16x16xf32>
    %146 = tpu.matmul %140, %145, %cst_88 {dimension_numbers = #tpu.dot_dimension_numbers<[1], [0], [0], [1], [0, 0, 1, 1], [], []>} : vector<16x32xf32>, vector<32x16xf32>, vector<16x16xf32> -> vector<16x16xf32>
    %c464 = arith.constant 464 : index
    %c0_89 = arith.constant 0 : index
    %147 = vector.load %arg2[%c464, %c0_89] : memref<808x128xf32, #tpu.memory_space<vmem>>, vector<32x16xf32>
    %cst_90 = arith.constant dense<0.000000e+00> : vector<16x16xf32>
    %148 = tpu.matmul %140, %147, %cst_90 {dimension_numbers = #tpu.dot_dimension_numbers<[1], [0], [0], [1], [0, 0, 1, 1], [], []>} : vector<16x32xf32>, vector<32x16xf32>, vector<16x16xf32> -> vector<16x16xf32>
    %c496 = arith.constant 496 : index
    %c0_91 = arith.constant 0 : index
    %149 = vector.load %arg2[%c496, %c0_91] : memref<808x128xf32, #tpu.memory_space<vmem>>, vector<32x16xf32>
    %cst_92 = arith.constant dense<0.000000e+00> : vector<16x16xf32>
    %150 = tpu.matmul %140, %149, %cst_92 {dimension_numbers = #tpu.dot_dimension_numbers<[1], [0], [0], [1], [0, 0, 1, 1], [], []>} : vector<16x32xf32>, vector<32x16xf32>, vector<16x16xf32> -> vector<16x16xf32>
    %c528 = arith.constant 528 : index
    %c0_93 = arith.constant 0 : index
    %151 = vector.load %arg2[%c528, %c0_93] : memref<808x128xf32, #tpu.memory_space<vmem>>, vector<32x16xf32>
    %cst_94 = arith.constant dense<0.000000e+00> : vector<16x16xf32>
    %152 = tpu.matmul %140, %151, %cst_94 {dimension_numbers = #tpu.dot_dimension_numbers<[1], [0], [0], [1], [0, 0, 1, 1], [], []>} : vector<16x32xf32>, vector<32x16xf32>, vector<16x16xf32> -> vector<16x16xf32>
    %153 = tpu.concatenate %142, %144, %146, %148, %150, %152 in 0 : vector<16x16xf32>, vector<16x16xf32>, vector<16x16xf32>, vector<16x16xf32>, vector<16x16xf32>, vector<16x16xf32> -> vector<96x16xf32>
    %c272 = arith.constant 272 : index
    %c0_95 = arith.constant 0 : index
    %154 = vector.load %arg2[%c272, %c0_95] : memref<808x128xf32, #tpu.memory_space<vmem>>, vector<16x96xf32>
    %cst_96 = arith.constant dense<0.000000e+00> : vector<16x16xf32>
    %155 = tpu.matmul %154, %153, %cst_96 {dimension_numbers = #tpu.dot_dimension_numbers<[1], [0], [0], [1], [0, 0, 1, 1], [], []>} : vector<16x96xf32>, vector<96x16xf32>, vector<16x16xf32> -> vector<16x16xf32>
    %c592 = arith.constant 592 : index
    %c0_97 = arith.constant 0 : index
    %156 = vector.load %arg2[%c592, %c0_97] : memref<808x128xf32, #tpu.memory_space<vmem>>, vector<16x16xf32>
    %cst_98 = arith.constant dense<0.000000e+00> : vector<16x16xf32>
    %157 = tpu.matmul %155, %156, %cst_98 {dimension_numbers = #tpu.dot_dimension_numbers<[1], [0], [0], [1], [0, 0, 1, 1], [], []>} : vector<16x16xf32>, vector<16x16xf32>, vector<16x16xf32> -> vector<16x16xf32>
    %158 = arith.subf %155, %157 : vector<16x16xf32>
    %159 = arith.mulf %158, %158 : vector<16x16xf32>
    %cst_99 = arith.constant dense<0.000000e+00> : vector<16x16xf32>
    %160 = tpu.matmul %159, %156, %cst_99 {dimension_numbers = #tpu.dot_dimension_numbers<[1], [0], [0], [1], [0, 0, 1, 1], [], []>} : vector<16x16xf32>, vector<16x16xf32>, vector<16x16xf32> -> vector<16x16xf32>
    %cst_100 = arith.constant 9.99999974E-6 : f32
    %161 = vector.broadcast %cst_100 : f32 to vector<16x16xf32>
    %162 = arith.addf %160, %161 : vector<16x16xf32>
    %163 = math.rsqrt %162 : vector<16x16xf32>
    %164 = arith.mulf %158, %163 : vector<16x16xf32>
    %c288 = arith.constant 288 : index
    %c0_101 = arith.constant 0 : index
    %165 = vector.load %arg2[%c288, %c0_101] : memref<808x128xf32, #tpu.memory_space<vmem>>, vector<16x1xf32>
    %166 = vector.broadcast %165 : vector<16x1xf32> to vector<16x16xf32>
    %167 = arith.mulf %164, %166 : vector<16x16xf32>
    %c304 = arith.constant 304 : index
    %c0_102 = arith.constant 0 : index
    %168 = vector.load %arg2[%c304, %c0_102] : memref<808x128xf32, #tpu.memory_space<vmem>>, vector<16x1xf32>
    %169 = vector.broadcast %168 : vector<16x1xf32> to vector<16x16xf32>
    %170 = arith.addf %167, %169 : vector<16x16xf32>
    %c608 = arith.constant 608 : index
    %c0_103 = arith.constant 0 : index
    %171 = vector.load %arg2[%c608, %c0_103] : memref<808x128xf32, #tpu.memory_space<vmem>>, vector<16x8xf32>
    %cst_104 = arith.constant dense<0.000000e+00> : vector<16x8xf32>
    %172 = tpu.matmul %170, %171, %cst_104 {dimension_numbers = #tpu.dot_dimension_numbers<[1], [0], [0], [1], [0, 0, 1, 1], [], []>} : vector<16x16xf32>, vector<16x8xf32>, vector<16x8xf32> -> vector<16x8xf32>
    %c320 = arith.constant 320 : index
    %c0_105 = arith.constant 0 : index
    %173 = vector.load %arg2[%c320, %c0_105] : memref<808x128xf32, #tpu.memory_space<vmem>>, vector<8x16xf32>
    %cst_106 = arith.constant dense<0.000000e+00> : vector<8x8xf32>
    %174 = tpu.matmul %173, %172, %cst_106 {dimension_numbers = #tpu.dot_dimension_numbers<[1], [0], [0], [1], [0, 0, 1, 1], [], []>} : vector<8x16xf32>, vector<16x8xf32>, vector<8x8xf32> -> vector<8x8xf32>
    %c328 = arith.constant 328 : index
    %c0_107 = arith.constant 0 : index
    %175 = vector.load %arg2[%c328, %c0_107] : memref<808x128xf32, #tpu.memory_space<vmem>>, vector<8x1xf32>
    %176 = vector.broadcast %175 : vector<8x1xf32> to vector<8x8xf32>
    %177 = arith.addf %174, %176 : vector<8x8xf32>
    %cst_108 = arith.constant 0.000000e+00 : f32
    %178 = vector.broadcast %cst_108 : f32 to vector<8x8xf32>
    %179 = arith.maximumf %177, %178 : vector<8x8xf32>
    %c336 = arith.constant 336 : index
    %c0_109 = arith.constant 0 : index
    %180 = vector.load %arg2[%c336, %c0_109] : memref<808x128xf32, #tpu.memory_space<vmem>>, vector<16x8xf32>
    %cst_110 = arith.constant dense<0.000000e+00> : vector<16x8xf32>
    %181 = tpu.matmul %180, %179, %cst_110 {dimension_numbers = #tpu.dot_dimension_numbers<[1], [0], [0], [1], [0, 0, 1, 1], [], []>} : vector<16x8xf32>, vector<8x8xf32>, vector<16x8xf32> -> vector<16x8xf32>
    %c352 = arith.constant 352 : index
    %c0_111 = arith.constant 0 : index
    %182 = vector.load %arg2[%c352, %c0_111] : memref<808x128xf32, #tpu.memory_space<vmem>>, vector<16x1xf32>
    %183 = vector.broadcast %182 : vector<16x1xf32> to vector<16x8xf32>
    %184 = arith.addf %181, %183 : vector<16x8xf32>
    %185 = arith.negf %184 : vector<16x8xf32>
    %186 = math.exp %185 : vector<16x8xf32>
    %cst_112 = arith.constant 1.000000e+00 : f32
    %187 = vector.broadcast %cst_112 : f32 to vector<16x8xf32>
    %188 = arith.addf %187, %186 : vector<16x8xf32>
    %189 = arith.divf %187, %188 : vector<16x8xf32>
    %c624 = arith.constant 624 : index
    %c0_113 = arith.constant 0 : index
    %190 = vector.load %arg2[%c624, %c0_113] : memref<808x128xf32, #tpu.memory_space<vmem>>, vector<8x16xf32>
    %cst_114 = arith.constant dense<0.000000e+00> : vector<16x16xf32>
    %191 = tpu.matmul %189, %190, %cst_114 {dimension_numbers = #tpu.dot_dimension_numbers<[1], [0], [0], [1], [0, 0, 1, 1], [], []>} : vector<16x8xf32>, vector<8x16xf32>, vector<16x16xf32> -> vector<16x16xf32>
    %192 = arith.mulf %170, %191 : vector<16x16xf32>
    %cst_115 = arith.constant 0.000000e+00 : f32
    %193 = vector.broadcast %cst_115 : f32 to vector<8x32xf32>
    %194 = tpu.concatenate %107, %193 in 0 : vector<8x32xf32>, vector<8x32xf32> -> vector<16x32xf32>
    %c560 = arith.constant 560 : index
    %c0_116 = arith.constant 0 : index
    %195 = vector.load %arg2[%c560, %c0_116] : memref<808x128xf32, #tpu.memory_space<vmem>>, vector<32x16xf32>
    %cst_117 = arith.constant dense<0.000000e+00> : vector<16x16xf32>
    %196 = tpu.matmul %194, %195, %cst_117 {dimension_numbers = #tpu.dot_dimension_numbers<[1], [0], [0], [1], [0, 0, 1, 1], [], []>} : vector<16x32xf32>, vector<32x16xf32>, vector<16x16xf32> -> vector<16x16xf32>
    %197 = arith.addf %192, %196 : vector<16x16xf32>
    %cst_118 = arith.constant 5.000000e-01 : f32
    %198 = vector.broadcast %cst_118 : f32 to vector<16x16xf32>
    %199 = arith.mulf %198, %197 : vector<16x16xf32>
    %cst_119 = arith.constant 0.707106769 : f32
    %200 = vector.broadcast %cst_119 : f32 to vector<16x16xf32>
    %201 = arith.mulf %197, %200 : vector<16x16xf32>
    %202 = math.erf %201 : vector<16x16xf32>
    %cst_120 = arith.constant 1.000000e+00 : f32
    %203 = vector.broadcast %cst_120 : f32 to vector<16x16xf32>
    %204 = arith.addf %203, %202 : vector<16x16xf32>
    %205 = arith.mulf %199, %204 : vector<16x16xf32>
    %c728 = arith.constant 728 : index
    %c0_121 = arith.constant 0 : index
    %206 = vector.load %arg2[%c728, %c0_121] : memref<808x128xf32, #tpu.memory_space<vmem>>, vector<16x16xf32>
    %cst_122 = arith.constant dense<0.000000e+00> : vector<16x16xf32>
    %207 = tpu.matmul %205, %206, %cst_122 {dimension_numbers = #tpu.dot_dimension_numbers<[1], [0], [0], [1], [0, 0, 1, 1], [], []>} : vector<16x16xf32>, vector<16x16xf32>, vector<16x16xf32> -> vector<16x16xf32>
    %c744 = arith.constant 744 : index
    %c0_123 = arith.constant 0 : index
    %208 = vector.load %arg2[%c744, %c0_123] : memref<808x128xf32, #tpu.memory_space<vmem>>, vector<16x16xf32>
    %cst_124 = arith.constant dense<0.000000e+00> : vector<16x16xf32>
    %209 = tpu.matmul %205, %208, %cst_124 {dimension_numbers = #tpu.dot_dimension_numbers<[1], [0], [0], [1], [0, 0, 1, 1], [], []>} : vector<16x16xf32>, vector<16x16xf32>, vector<16x16xf32> -> vector<16x16xf32>
    %210 = tpu.concatenate %207, %205, %209 in 0 : vector<16x16xf32>, vector<16x16xf32>, vector<16x16xf32> -> vector<48x16xf32>
    %c632 = arith.constant 632 : index
    %c0_125 = arith.constant 0 : index
    %211 = vector.load %arg2[%c632, %c0_125] : memref<808x128xf32, #tpu.memory_space<vmem>>, vector<16x48xf32>
    %cst_126 = arith.constant dense<0.000000e+00> : vector<16x16xf32>
    %212 = tpu.matmul %211, %210, %cst_126 {dimension_numbers = #tpu.dot_dimension_numbers<[1], [0], [0], [1], [0, 0, 1, 1], [], []>} : vector<16x48xf32>, vector<48x16xf32>, vector<16x16xf32> -> vector<16x16xf32>
    %c592_127 = arith.constant 592 : index
    %c0_128 = arith.constant 0 : index
    %213 = vector.load %arg2[%c592_127, %c0_128] : memref<808x128xf32, #tpu.memory_space<vmem>>, vector<16x16xf32>
    %cst_129 = arith.constant dense<0.000000e+00> : vector<16x16xf32>
    %214 = tpu.matmul %212, %213, %cst_129 {dimension_numbers = #tpu.dot_dimension_numbers<[1], [0], [0], [1], [0, 0, 1, 1], [], []>} : vector<16x16xf32>, vector<16x16xf32>, vector<16x16xf32> -> vector<16x16xf32>
    %215 = arith.subf %212, %214 : vector<16x16xf32>
    %216 = arith.mulf %215, %215 : vector<16x16xf32>
    %cst_130 = arith.constant dense<0.000000e+00> : vector<16x16xf32>
    %217 = tpu.matmul %216, %213, %cst_130 {dimension_numbers = #tpu.dot_dimension_numbers<[1], [0], [0], [1], [0, 0, 1, 1], [], []>} : vector<16x16xf32>, vector<16x16xf32>, vector<16x16xf32> -> vector<16x16xf32>
    %cst_131 = arith.constant 9.99999974E-6 : f32
    %218 = vector.broadcast %cst_131 : f32 to vector<16x16xf32>
    %219 = arith.addf %217, %218 : vector<16x16xf32>
    %220 = math.rsqrt %219 : vector<16x16xf32>
    %221 = arith.mulf %215, %220 : vector<16x16xf32>
    %c648 = arith.constant 648 : index
    %c0_132 = arith.constant 0 : index
    %222 = vector.load %arg2[%c648, %c0_132] : memref<808x128xf32, #tpu.memory_space<vmem>>, vector<16x1xf32>
    %223 = vector.broadcast %222 : vector<16x1xf32> to vector<16x16xf32>
    %224 = arith.mulf %221, %223 : vector<16x16xf32>
    %c664 = arith.constant 664 : index
    %c0_133 = arith.constant 0 : index
    %225 = vector.load %arg2[%c664, %c0_133] : memref<808x128xf32, #tpu.memory_space<vmem>>, vector<16x1xf32>
    %226 = vector.broadcast %225 : vector<16x1xf32> to vector<16x16xf32>
    %227 = arith.addf %224, %226 : vector<16x16xf32>
    %cst_134 = arith.constant 5.000000e-01 : f32
    %228 = vector.broadcast %cst_134 : f32 to vector<16x16xf32>
    %229 = arith.mulf %228, %227 : vector<16x16xf32>
    %cst_135 = arith.constant 0.707106769 : f32
    %230 = vector.broadcast %cst_135 : f32 to vector<16x16xf32>
    %231 = arith.mulf %227, %230 : vector<16x16xf32>
    %232 = math.erf %231 : vector<16x16xf32>
    %cst_136 = arith.constant 1.000000e+00 : f32
    %233 = vector.broadcast %cst_136 : f32 to vector<16x16xf32>
    %234 = arith.addf %233, %232 : vector<16x16xf32>
    %235 = arith.mulf %229, %234 : vector<16x16xf32>
    %c728_137 = arith.constant 728 : index
    %c0_138 = arith.constant 0 : index
    %236 = vector.load %arg2[%c728_137, %c0_138] : memref<808x128xf32, #tpu.memory_space<vmem>>, vector<16x16xf32>
    %cst_139 = arith.constant dense<0.000000e+00> : vector<16x16xf32>
    %237 = tpu.matmul %235, %236, %cst_139 {dimension_numbers = #tpu.dot_dimension_numbers<[1], [0], [0], [1], [0, 0, 1, 1], [], []>} : vector<16x16xf32>, vector<16x16xf32>, vector<16x16xf32> -> vector<16x16xf32>
    %c744_140 = arith.constant 744 : index
    %c0_141 = arith.constant 0 : index
    %238 = vector.load %arg2[%c744_140, %c0_141] : memref<808x128xf32, #tpu.memory_space<vmem>>, vector<16x16xf32>
    %cst_142 = arith.constant dense<0.000000e+00> : vector<16x16xf32>
    %239 = tpu.matmul %235, %238, %cst_142 {dimension_numbers = #tpu.dot_dimension_numbers<[1], [0], [0], [1], [0, 0, 1, 1], [], []>} : vector<16x16xf32>, vector<16x16xf32>, vector<16x16xf32> -> vector<16x16xf32>
    %240 = tpu.concatenate %237, %235, %239 in 0 : vector<16x16xf32>, vector<16x16xf32>, vector<16x16xf32> -> vector<48x16xf32>
    %c680 = arith.constant 680 : index
    %c0_143 = arith.constant 0 : index
    %241 = vector.load %arg2[%c680, %c0_143] : memref<808x128xf32, #tpu.memory_space<vmem>>, vector<16x48xf32>
    %cst_144 = arith.constant dense<0.000000e+00> : vector<16x16xf32>
    %242 = tpu.matmul %241, %240, %cst_144 {dimension_numbers = #tpu.dot_dimension_numbers<[1], [0], [0], [1], [0, 0, 1, 1], [], []>} : vector<16x48xf32>, vector<48x16xf32>, vector<16x16xf32> -> vector<16x16xf32>
    %c592_145 = arith.constant 592 : index
    %c0_146 = arith.constant 0 : index
    %243 = vector.load %arg2[%c592_145, %c0_146] : memref<808x128xf32, #tpu.memory_space<vmem>>, vector<16x16xf32>
    %cst_147 = arith.constant dense<0.000000e+00> : vector<16x16xf32>
    %244 = tpu.matmul %242, %243, %cst_147 {dimension_numbers = #tpu.dot_dimension_numbers<[1], [0], [0], [1], [0, 0, 1, 1], [], []>} : vector<16x16xf32>, vector<16x16xf32>, vector<16x16xf32> -> vector<16x16xf32>
    %245 = arith.subf %242, %244 : vector<16x16xf32>
    %246 = arith.mulf %245, %245 : vector<16x16xf32>
    %cst_148 = arith.constant dense<0.000000e+00> : vector<16x16xf32>
    %247 = tpu.matmul %246, %243, %cst_148 {dimension_numbers = #tpu.dot_dimension_numbers<[1], [0], [0], [1], [0, 0, 1, 1], [], []>} : vector<16x16xf32>, vector<16x16xf32>, vector<16x16xf32> -> vector<16x16xf32>
    %cst_149 = arith.constant 9.99999974E-6 : f32
    %248 = vector.broadcast %cst_149 : f32 to vector<16x16xf32>
    %249 = arith.addf %247, %248 : vector<16x16xf32>
    %250 = math.rsqrt %249 : vector<16x16xf32>
    %251 = arith.mulf %245, %250 : vector<16x16xf32>
    %c696 = arith.constant 696 : index
    %c0_150 = arith.constant 0 : index
    %252 = vector.load %arg2[%c696, %c0_150] : memref<808x128xf32, #tpu.memory_space<vmem>>, vector<16x1xf32>
    %253 = vector.broadcast %252 : vector<16x1xf32> to vector<16x16xf32>
    %254 = arith.mulf %251, %253 : vector<16x16xf32>
    %c712 = arith.constant 712 : index
    %c0_151 = arith.constant 0 : index
    %255 = vector.load %arg2[%c712, %c0_151] : memref<808x128xf32, #tpu.memory_space<vmem>>, vector<16x1xf32>
    %256 = vector.broadcast %255 : vector<16x1xf32> to vector<16x16xf32>
    %257 = arith.addf %254, %256 : vector<16x16xf32>
    %c608_152 = arith.constant 608 : index
    %c0_153 = arith.constant 0 : index
    %258 = vector.load %arg2[%c608_152, %c0_153] : memref<808x128xf32, #tpu.memory_space<vmem>>, vector<16x8xf32>
    %cst_154 = arith.constant dense<0.000000e+00> : vector<16x8xf32>
    %259 = tpu.matmul %257, %258, %cst_154 {dimension_numbers = #tpu.dot_dimension_numbers<[1], [0], [0], [1], [0, 0, 1, 1], [], []>} : vector<16x16xf32>, vector<16x8xf32>, vector<16x8xf32> -> vector<16x8xf32>
    %c760 = arith.constant 760 : index
    %c0_155 = arith.constant 0 : index
    %260 = vector.load %arg2[%c760, %c0_155] : memref<808x128xf32, #tpu.memory_space<vmem>>, vector<8x16xf32>
    %cst_156 = arith.constant dense<0.000000e+00> : vector<8x8xf32>
    %261 = tpu.matmul %260, %259, %cst_156 {dimension_numbers = #tpu.dot_dimension_numbers<[1], [0], [0], [1], [0, 0, 1, 1], [], []>} : vector<8x16xf32>, vector<16x8xf32>, vector<8x8xf32> -> vector<8x8xf32>
    %c768 = arith.constant 768 : index
    %c0_157 = arith.constant 0 : index
    %262 = vector.load %arg2[%c768, %c0_157] : memref<808x128xf32, #tpu.memory_space<vmem>>, vector<8x1xf32>
    %263 = vector.broadcast %262 : vector<8x1xf32> to vector<8x8xf32>
    %264 = arith.addf %261, %263 : vector<8x8xf32>
    %cst_158 = arith.constant 0.000000e+00 : f32
    %265 = vector.broadcast %cst_158 : f32 to vector<8x8xf32>
    %266 = arith.maximumf %264, %265 : vector<8x8xf32>
    %c776 = arith.constant 776 : index
    %c0_159 = arith.constant 0 : index
    %267 = vector.load %arg2[%c776, %c0_159] : memref<808x128xf32, #tpu.memory_space<vmem>>, vector<16x8xf32>
    %cst_160 = arith.constant dense<0.000000e+00> : vector<16x8xf32>
    %268 = tpu.matmul %267, %266, %cst_160 {dimension_numbers = #tpu.dot_dimension_numbers<[1], [0], [0], [1], [0, 0, 1, 1], [], []>} : vector<16x8xf32>, vector<8x8xf32>, vector<16x8xf32> -> vector<16x8xf32>
    %c792 = arith.constant 792 : index
    %c0_161 = arith.constant 0 : index
    %269 = vector.load %arg2[%c792, %c0_161] : memref<808x128xf32, #tpu.memory_space<vmem>>, vector<16x1xf32>
    %270 = vector.broadcast %269 : vector<16x1xf32> to vector<16x8xf32>
    %271 = arith.addf %268, %270 : vector<16x8xf32>
    %272 = arith.negf %271 : vector<16x8xf32>
    %273 = math.exp %272 : vector<16x8xf32>
    %cst_162 = arith.constant 1.000000e+00 : f32
    %274 = vector.broadcast %cst_162 : f32 to vector<16x8xf32>
    %275 = arith.addf %274, %273 : vector<16x8xf32>
    %276 = arith.divf %274, %275 : vector<16x8xf32>
    %c624_163 = arith.constant 624 : index
    %c0_164 = arith.constant 0 : index
    %277 = vector.load %arg2[%c624_163, %c0_164] : memref<808x128xf32, #tpu.memory_space<vmem>>, vector<8x16xf32>
    %cst_165 = arith.constant dense<0.000000e+00> : vector<16x16xf32>
    %278 = tpu.matmul %276, %277, %cst_165 {dimension_numbers = #tpu.dot_dimension_numbers<[1], [0], [0], [1], [0, 0, 1, 1], [], []>} : vector<16x8xf32>, vector<8x16xf32>, vector<16x16xf32> -> vector<16x16xf32>
    %279 = arith.mulf %257, %278 : vector<16x16xf32>
    %280 = arith.addf %279, %205 : vector<16x16xf32>
    %cst_166 = arith.constant 5.000000e-01 : f32
    %281 = vector.broadcast %cst_166 : f32 to vector<16x16xf32>
    %282 = arith.mulf %281, %280 : vector<16x16xf32>
    %cst_167 = arith.constant 0.707106769 : f32
    %283 = vector.broadcast %cst_167 : f32 to vector<16x16xf32>
    %284 = arith.mulf %280, %283 : vector<16x16xf32>
    %285 = math.erf %284 : vector<16x16xf32>
    %cst_168 = arith.constant 1.000000e+00 : f32
    %286 = vector.broadcast %cst_168 : f32 to vector<16x16xf32>
    %287 = arith.addf %286, %285 : vector<16x16xf32>
    %288 = arith.mulf %282, %287 : vector<16x16xf32>
    %cst_169 = arith.constant 0.000000e+00 : f32
    %289 = vector.broadcast %cst_169 : f32 to vector<16x112xf32>
    %290 = tpu.concatenate %288, %289 in 1 : vector<16x16xf32>, vector<16x112xf32> -> vector<16x128xf32>
    %c8_170 = arith.constant 8 : index
    %c0_171 = arith.constant 0 : index
    %291 = vector.load %arg3[%c8_170, %c0_171] : memref<24x128xf32, #tpu.memory_space<vmem>>, vector<16x128xf32>
    tpu.vector_store %arg3[%c8_170, %c0_171], %290 {strides = array<i32>} : memref<24x128xf32, #tpu.memory_space<vmem>>, vector<16x128xf32>,
    return
  }
  func.func @transform_0(%arg0: i32) -> (i32, i32) {
    %c0_i32 = arith.constant 0 : i32
    %c0_i32_0 = arith.constant 0 : i32
    %c0_i32_1 = arith.constant 0 : i32
    return %c0_i32, %c0_i32_0 : i32, i32
  }
  func.func @transform_1(%arg0: i32) -> (i32, i32) {
    %c0_i32 = arith.constant 0 : i32
    %c0_i32_0 = arith.constant 0 : i32
    %c0_i32_1 = arith.constant 0 : i32
    return %c0_i32, %c0_i32_0 : i32, i32
  }
  func.func @transform_2(%arg0: i32) -> (i32, i32) {
    %c0_i32 = arith.constant 0 : i32
    %c0_i32_0 = arith.constant 0 : i32
    %c0_i32_1 = arith.constant 0 : i32
    return %c0_i32, %c0_i32_0 : i32, i32
  }
}

</mosaic_0001>

<llo_original>
// kernel: tpu_custom_call.1
$region0: #{tpu_custom_call.1}
  #allocation0 [shape = 'u32[]', space=smem, size = 0x4, offset = 0x4, fixed_abs, tag = 'smem constant byte address 0x4 - core index']
  #allocation1 [shape = 'u32[144,128]{1,0:T(1,128)}', space=vmem, size = 0x12000, scoped, tag = 'internal scratch']
  %s0 = inlined_call_operand.hbm [shape: f32[8,32], index: 0, kind: input, shape index: {}]
  %s1 = inlined_call_operand.hbm [shape: f32[808,128], index: 1, kind: input, shape index: {}]
  %s2 = inlined_call_operand.hbm [shape: f32[24,128], index: 2, kind: output, shape index: {}]
  %s3 = sld [smem:[#allocation0]]
  $region26: #{tpu_custom_call.1} parent=0
    _
  %s5 = ssub.s32 1, %s3
  %s6 = scalar_select 0, %s5, %s3
  $region1: #{tpu_custom_call.1} parent=0
    #allocation2 [shape = 'u8[4096]{0}', space=vmem, size = 0x1000, scoped, tag = 'input window, operand 0, single buffered']
    #allocation3 [shape = 's32[1]{0}', space=sflag, size = 0x4, scoped, tag = 'scoped memory for tpu_custom_call.1']
    #allocation4 [shape = 's32[1]{0}', space=sflag, size = 0x4, scoped, tag = 'scoped memory for tpu_custom_call.1']
    #allocation5 [shape = 'u8[413696]{0}', space=vmem, size = 0x65000, scoped, tag = 'input window, operand 1, single buffered']
    #allocation6 [shape = 's32[1]{0}', space=sflag, size = 0x4, scoped, tag = 'scoped memory for tpu_custom_call.1']
    #allocation7 [shape = 'u8[12288]{0}', space=vmem, size = 0x3000, scoped, tag = 'output window, operand 0, single buffered']
    %7 = vsyncpa [#allocation3], 0
    %8 = vsyncpa [#allocation6], 0
    %9 = vsyncpa [#allocation4], 0
    // Predicated region
    $region2: #{tpu_custom_call.1} parent=1 // pred_check
      _
    $region3: #{tpu_custom_call.1} parent=1 // pred_check_branch
      %11 = sbr.rel (0) target = $region5
    $region4: #{tpu_custom_call.1} parent=1 // pred_region
      %s13 = ssub.s32 128, 128
      %14 = vsyncadd [#allocation3], %s13
      %s16 = sshll.u32 [#allocation2], 4
      %s17 = int_to_ptr.vmem [resolvable:$true] %s16
      %19 = dma.hbm_to_vmem [thread:$0]  %s0, 128, %s17, [#allocation3]
    $region5: #{tpu_custom_call.1} parent=1 // pred_fallthru
      _
    // Predicated region
    $region6: #{tpu_custom_call.1} parent=1 // pred_check
      _
    $region7: #{tpu_custom_call.1} parent=1 // pred_check_branch
      %21 = sbr.rel (0) target = $region9
    $region8: #{tpu_custom_call.1} parent=1 // pred_region
      %s23 = ssub.s32 12928, 12928
      %24 = vsyncadd [#allocation6], %s23
      %s25 = sshll.u32 [#allocation5], 4
      %s26 = int_to_ptr.vmem [resolvable:$true] %s25
      %31 = dma.hbm_to_vmem [thread:$0]  %s1, 12928, %s26, [#allocation6], 128, 128, 8
    $region9: #{tpu_custom_call.1} parent=1 // pred_fallthru
      _
    // Predicated region
    $region10: #{tpu_custom_call.1} parent=1 // pred_check
      _
    $region11: #{tpu_custom_call.1} parent=1 // pred_check_branch
      %33 = sbr.rel (0) target = $region13
    $region12: #{tpu_custom_call.1} parent=1 // pred_region
      %34 = dma.done [#allocation3], 128
    $region13: #{tpu_custom_call.1} parent=1 // pred_fallthru
      _
    // Predicated region
    $region14: #{tpu_custom_call.1} parent=1 // pred_check
      _
    $region15: #{tpu_custom_call.1} parent=1 // pred_check_branch
      %36 = sbr.rel (0) target = $region17
    $region16: #{tpu_custom_call.1} parent=1 // pred_region
      %37 = dma.done [#allocation6], 12928
    $region17: #{tpu_custom_call.1} parent=1 // pred_fallthru
      _
    %v38 = vld [vmem:[#allocation2] sm:$0xff]
    %v39 = vld [vmem:[#allocation5 + $0x8] sm:$0xff]
    %v40 = vld [vmem:[#allocation5 + $0x10] sm:$0xff]
    %v41 = vld [vmem:[#allocation5 + $0x18] sm:$0xff]
    %v42 = vld [vmem:[#allocation5 + $0x20] sm:$0xff]
    %vm43 = vcmask 261120
    %v45 = vsel %vm43, %v38, 0
    %47 = vmatprep.subr.mxu0 0.0
    %48 = vmatpush1.msra.mxu0 %v39
    %49 = vmatprep.subr.mxu0 0.0
    %50 = vmatpush1.msra.mxu0 %v40
    %51 = vmatprep.subr.mxu0 0.0
    %52 = vmatpush1.msra.mxu0 %v41
    %53 = vmatprep.subr.mxu0 0.0
    %54 = vmatpush1.msra.mxu0 %v42
    %55 = vmatprep.subr.mxu0 0.0
    %56 = vmatpush1.msra.mxu0 0.0
    %57 = vmatprep.subr.mxu0 0.0
    %58 = vmatpush1.msra.mxu0 0.0
    %59 = vmatprep.subr.mxu0 0.0
    %60 = vmatpush1.msra.mxu0 0.0
    %61 = vmatprep.subr.mxu0 0.0
    %62 = vmatpush1.msra.mxu0 0.0
    %63 = vmatprep.subr.mxu0 0.0
    %64 = vmatpush1.msra.mxu0 0.0
    %65 = vmatprep.subr.mxu0 0.0
    %66 = vmatpush1.msra.mxu0 0.0
    %67 = vmatprep.subr.mxu0 0.0
    %68 = vmatpush1.msra.mxu0 0.0
    %69 = vmatprep.subr.mxu0 0.0
    %70 = vmatpush1.msra.mxu0 0.0
    %71 = vmatprep.subr.mxu0 0.0
    %72 = vmatpush1.msra.mxu0 0.0
    %73 = vmatprep.subr.mxu0 0.0
    %74 = vmatpush1.msra.mxu0 0.0
    %75 = vmatprep.subr.mxu0 0.0
    %76 = vmatpush1.msra.mxu0 0.0
    %77 = vmatprep.subr.mxu0 0.0
    %78 = vmatpush1.msra.mxu0 0.0
    %79 = vmatprep.subr.mxu0 0.0
    %80 = vmatpush1.msra.mxu0 0.0
    %81 = vmatprep.subr.mxu0 0.0
    %82 = vmatpush1.msra.mxu0 0.0
    %83 = vmatprep.subr.mxu0 0.0
    %84 = vmatpush1.msra.mxu0 0.0
    %85 = vmatprep.subr.mxu0 0.0
    %86 = vmatpush1.msra.mxu0 0.0
    %87 = vmatprep.subr.mxu0 0.0
    %88 = vmatpush1.msra.mxu0 0.0
    %89 = vmatprep.subr.mxu0 0.0
    %90 = vmatpush1.msra.mxu0 0.0
    %91 = vmatprep.subr.mxu0 0.0
    %92 = vmatpush1.msra.mxu0 0.0
    %93 = vmatprep.subr.mxu0 0.0
    %94 = vmatpush1.msra.mxu0 0.0
    %95 = vmatprep.subr.mxu0 0.0
    %96 = vmatpush1.msra.mxu0 0.0
    %97 = vmatprep.subr.mxu0 0.0
    %98 = vmatpush1.msra.mxu0 0.0
    %99 = vmatprep.subr.mxu0 0.0
    %100 = vmatpush1.msra.mxu0 0.0
    %101 = vmatprep.subr.mxu0 0.0
    %102 = vmatpush1.msra.mxu0 0.0
    %103 = vmatprep.subr.mxu0 0.0
    %104 = vmatpush1.msra.mxu0 0.0
    %105 = vmatprep.subr.mxu0 0.0
    %106 = vmatpush1.msra.mxu0 0.0
    %107 = vmatprep.subr.mxu0 0.0
    %108 = vmatpush1.msra.mxu0 0.0
    %109 = vmatprep.subr.mxu0 0.0
    %110 = vmatpush1.msra.mxu0 0.0
    %111 = vmatprep.mubr.f32.mxu0 0.0
    %112 = vmatmul.mubr.f32.gmra.mrb[0].mxu0 %v45
    %v113 = vpop.f32.mrb[0].mxu0
    %v114 = vadd.f32 0.0, %v113
    %v115 = vpop.f32.mrb[0].mxu0
    %116 = vdwg.mxu0
    %v117 = vld [vmem:[#allocation5 + $0x28] sm:$0xff]
    %v118 = vld [vmem:[#allocation5 + $0x30] sm:$0xff]
    %v119 = vld [vmem:[#allocation5 + $0x38] sm:$0xff]
    %v120 = vld [vmem:[#allocation5 + $0x40] sm:$0xff]
    %121 = vmatprep.subr.mxu0 0.0
    %122 = vmatpush1.msra.mxu0 %v117
    %123 = vmatprep.subr.mxu0 0.0
    %124 = vmatpush1.msra.mxu0 %v118
    %125 = vmatprep.subr.mxu0 0.0
    %126 = vmatpush1.msra.mxu0 %v119
    %127 = vmatprep.subr.mxu0 0.0
    %128 = vmatpush1.msra.mxu0 %v120
    %129 = vmatprep.subr.mxu0 0.0
    %130 = vmatpush1.msra.mxu0 0.0
    %131 = vmatprep.subr.mxu0 0.0
    %132 = vmatpush1.msra.mxu0 0.0
    %133 = vmatprep.subr.mxu0 0.0
    %134 = vmatpush1.msra.mxu0 0.0
    %135 = vmatprep.subr.mxu0 0.0
    %136 = vmatpush1.msra.mxu0 0.0
    %137 = vmatprep.subr.mxu0 0.0
    %138 = vmatpush1.msra.mxu0 0.0
    %139 = vmatprep.subr.mxu0 0.0
    %140 = vmatpush1.msra.mxu0 0.0
    %141 = vmatprep.subr.mxu0 0.0
    %142 = vmatpush1.msra.mxu0 0.0
    %143 = vmatprep.subr.mxu0 0.0
    %144 = vmatpush1.msra.mxu0 0.0
    %145 = vmatprep.subr.mxu0 0.0
    %146 = vmatpush1.msra.mxu0 0.0
    %147 = vmatprep.subr.mxu0 0.0
    %148 = vmatpush1.msra.mxu0 0.0
    %149 = vmatprep.subr.mxu0 0.0
    %150 = vmatpush1.msra.mxu0 0.0
    %151 = vmatprep.subr.mxu0 0.0
    %152 = vmatpush1.msra.mxu0 0.0
    %153 = vmatprep.subr.mxu0 0.0
    %154 = vmatpush1.msra.mxu0 0.0
    %155 = vmatprep.subr.mxu0 0.0
    %156 = vmatpush1.msra.mxu0 0.0
    %157 = vmatprep.subr.mxu0 0.0
    %158 = vmatpush1.msra.mxu0 0.0
    %159 = vmatprep.subr.mxu0 0.0
    %160 = vmatpush1.msra.mxu0 0.0
    %161 = vmatprep.subr.mxu0 0.0
    %162 = vmatpush1.msra.mxu0 0.0
    %163 = vmatprep.subr.mxu0 0.0
    %164 = vmatpush1.msra.mxu0 0.0
    %165 = vmatprep.subr.mxu0 0.0
    %166 = vmatpush1.msra.mxu0 0.0
    %167 = vmatprep.subr.mxu0 0.0
    %168 = vmatpush1.msra.mxu0 0.0
    %169 = vmatprep.subr.mxu0 0.0
    %170 = vmatpush1.msra.mxu0 0.0
    %171 = vmatprep.subr.mxu0 0.0
    %172 = vmatpush1.msra.mxu0 0.0
    %173 = vmatprep.subr.mxu0 0.0
    %174 = vmatpush1.msra.mxu0 0.0
    %175 = vmatprep.subr.mxu0 0.0
    %176 = vmatpush1.msra.mxu0 0.0
    %177 = vmatprep.subr.mxu0 0.0
    %178 = vmatpush1.msra.mxu0 0.0
    %179 = vmatprep.subr.mxu0 0.0
    %180 = vmatpush1.msra.mxu0 0.0
    %181 = vmatprep.subr.mxu0 0.0
    %182 = vmatpush1.msra.mxu0 0.0
    %183 = vmatprep.subr.mxu0 0.0
    %184 = vmatpush1.msra.mxu0 0.0
    %185 = vmatprep.mubr.f32.mxu0 0.0
    %186 = vmatmul.mubr.f32.gmra.mrb[0].mxu0 %v45
    %v187 = vpop.f32.mrb[0].mxu0
    %v188 = vadd.f32 0.0, %v187
    %v189 = vpop.f32.mrb[0].mxu0
    %190 = vdwg.mxu0
    %v191 = vld [vmem:[#allocation5] sm:$0xff]
    %vm192 = vcmask 195584
    %v194 = vsel %vm192, %v191, 0
    %196 = vmatprep.subr.mxu0 0.0
    %197 = vmatpush1.msra.mxu0 %v114
    %198 = vmatprep.subr.mxu0 0.0
    %199 = vmatpush1.msra.mxu0 %v38
    %200 = vmatprep.subr.mxu0 0.0
    %201 = vmatpush1.msra.mxu0 %v188
    %202 = vmatprep.subr.mxu0 0.0
    %203 = vmatpush1.msra.mxu0 0.0
    %204 = vmatprep.subr.mxu0 0.0
    %205 = vmatpush1.msra.mxu0 0.0
    %206 = vmatprep.subr.mxu0 0.0
    %207 = vmatpush1.msra.mxu0 0.0
    %208 = vmatprep.subr.mxu0 0.0
    %209 = vmatpush1.msra.mxu0 0.0
    %210 = vmatprep.subr.mxu0 0.0
    %211 = vmatpush1.msra.mxu0 0.0
    %212 = vmatprep.subr.mxu0 0.0
    %213 = vmatpush1.msra.mxu0 0.0
    %214 = vmatprep.subr.mxu0 0.0
    %215 = vmatpush1.msra.mxu0 0.0
    %216 = vmatprep.subr.mxu0 0.0
    %217 = vmatpush1.msra.mxu0 0.0
    %218 = vmatprep.subr.mxu0 0.0
    %219 = vmatpush1.msra.mxu0 0.0
    %220 = vmatprep.subr.mxu0 0.0
    %221 = vmatpush1.msra.mxu0 0.0
    %222 = vmatprep.subr.mxu0 0.0
    %223 = vmatpush1.msra.mxu0 0.0
    %224 = vmatprep.subr.mxu0 0.0
    %225 = vmatpush1.msra.mxu0 0.0
    %226 = vmatprep.subr.mxu0 0.0
    %227 = vmatpush1.msra.mxu0 0.0
    %228 = vmatprep.subr.mxu0 0.0
    %229 = vmatpush1.msra.mxu0 0.0
    %230 = vmatprep.subr.mxu0 0.0
    %231 = vmatpush1.msra.mxu0 0.0
    %232 = vmatprep.subr.mxu0 0.0
    %233 = vmatpush1.msra.mxu0 0.0
    %234 = vmatprep.subr.mxu0 0.0
    %235 = vmatpush1.msra.mxu0 0.0
    %236 = vmatprep.subr.mxu0 0.0
    %237 = vmatpush1.msra.mxu0 0.0
    %238 = vmatprep.subr.mxu0 0.0
    %239 = vmatpush1.msra.mxu0 0.0
    %240 = vmatprep.subr.mxu0 0.0
    %241 = vmatpush1.msra.mxu0 0.0
    %242 = vmatprep.subr.mxu0 0.0
    %243 = vmatpush1.msra.mxu0 0.0
    %244 = vmatprep.subr.mxu0 0.0
    %245 = vmatpush1.msra.mxu0 0.0
    %246 = vmatprep.subr.mxu0 0.0
    %247 = vmatpush1.msra.mxu0 0.0
    %248 = vmatprep.subr.mxu0 0.0
    %249 = vmatpush1.msra.mxu0 0.0
    %250 = vmatprep.subr.mxu0 0.0
    %251 = vmatpush1.msra.mxu0 0.0
    %252 = vmatprep.subr.mxu0 0.0
    %253 = vmatpush1.msra.mxu0 0.0
    %254 = vmatprep.subr.mxu0 0.0
    %255 = vmatpush1.msra.mxu0 0.0
    %256 = vmatprep.subr.mxu0 0.0
    %257 = vmatpush1.msra.mxu0 0.0
    %258 = vmatprep.subr.mxu0 0.0
    %259 = vmatpush1.msra.mxu0 0.0
    %260 = vmatprep.mubr.f32.mxu0 0.0
    %261 = vmatmul.mubr.f32.gmra.mrb[0].mxu0 %v194
    %v262 = vpop.f32.mrb[0].mxu0
    %v263 = vadd.f32 0.0, %v262
    %v264 = vpop.f32.mrb[0].mxu0
    %265 = vdwg.mxu0
    %v266 = vld [vmem:[#allocation5 + $0x48] sm:$0xff]
    %v267 = vld [vmem:[#allocation5 + $0x50] sm:$0xff]
    %v268 = vld [vmem:[#allocation5 + $0x58] sm:$0xff]
    %v269 = vld [vmem:[#allocation5 + $0x60] sm:$0xff]
    %v271 = vsel %vm43, %v263, 0
    %273 = vmatprep.subr.mxu0 0.0
    %274 = vmatpush1.msra.mxu0 %v266
    %275 = vmatprep.subr.mxu0 0.0
    %276 = vmatpush1.msra.mxu0 %v267
    %277 = vmatprep.subr.mxu0 0.0
    %278 = vmatpush1.msra.mxu0 %v268
    %279 = vmatprep.subr.mxu0 0.0
    %280 = vmatpush1.msra.mxu0 %v269
    %281 = vmatprep.subr.mxu0 0.0
    %282 = vmatpush1.msra.mxu0 0.0
    %283 = vmatprep.subr.mxu0 0.0
    %284 = vmatpush1.msra.mxu0 0.0
    %285 = vmatprep.subr.mxu0 0.0
    %286 = vmatpush1.msra.mxu0 0.0
    %287 = vmatprep.subr.mxu0 0.0
    %288 = vmatpush1.msra.mxu0 0.0
    %289 = vmatprep.subr.mxu0 0.0
    %290 = vmatpush1.msra.mxu0 0.0
    %291 = vmatprep.subr.mxu0 0.0
    %292 = vmatpush1.msra.mxu0 0.0
    %293 = vmatprep.subr.mxu0 0.0
    %294 = vmatpush1.msra.mxu0 0.0
    %295 = vmatprep.subr.mxu0 0.0
    %296 = vmatpush1.msra.mxu0 0.0
    %297 = vmatprep.subr.mxu0 0.0
    %298 = vmatpush1.msra.mxu0 0.0
    %299 = vmatprep.subr.mxu0 0.0
    %300 = vmatpush1.msra.mxu0 0.0
    %301 = vmatprep.subr.mxu0 0.0
    %302 = vmatpush1.msra.mxu0 0.0
    %303 = vmatprep.subr.mxu0 0.0
    %304 = vmatpush1.msra.mxu0 0.0
    %305 = vmatprep.subr.mxu0 0.0
    %306 = vmatpush1.msra.mxu0 0.0
    %307 = vmatprep.subr.mxu0 0.0
    %308 = vmatpush1.msra.mxu0 0.0
    %309 = vmatprep.subr.mxu0 0.0
    %310 = vmatpush1.msra.mxu0 0.0
    %311 = vmatprep.subr.mxu0 0.0
    %312 = vmatpush1.msra.mxu0 0.0
    %313 = vmatprep.subr.mxu0 0.0
    %314 = vmatpush1.msra.mxu0 0.0
    %315 = vmatprep.subr.mxu0 0.0
    %316 = vmatpush1.msra.mxu0 0.0
    %317 = vmatprep.subr.mxu0 0.0
    %318 = vmatpush1.msra.mxu0 0.0
    %319 = vmatprep.subr.mxu0 0.0
    %320 = vmatpush1.msra.mxu0 0.0
    %321 = vmatprep.subr.mxu0 0.0
    %322 = vmatpush1.msra.mxu0 0.0
    %323 = vmatprep.subr.mxu0 0.0
    %324 = vmatpush1.msra.mxu0 0.0
    %325 = vmatprep.subr.mxu0 0.0
    %326 = vmatpush1.msra.mxu0 0.0
    %327 = vmatprep.subr.mxu0 0.0
    %328 = vmatpush1.msra.mxu0 0.0
    %329 = vmatprep.subr.mxu0 0.0
    %330 = vmatpush1.msra.mxu0 0.0
    %331 = vmatprep.subr.mxu0 0.0
    %332 = vmatpush1.msra.mxu0 0.0
    %333 = vmatprep.subr.mxu0 0.0
    %334 = vmatpush1.msra.mxu0 0.0
    %335 = vmatprep.subr.mxu0 0.0
    %336 = vmatpush1.msra.mxu0 0.0
    %337 = vmatprep.mubr.f32.mxu0 0.0
    %338 = vmatmul.mubr.f32.gmra.mrb[0].mxu0 %v271
    %v339 = vpop.f32.mrb[0].mxu0
    %v340 = vadd.f32 0.0, %v339
    %v341 = vpop.f32.mrb[0].mxu0
    %342 = vdwg.mxu0
    %v343 = vsub.f32 %v263, %v340
    %v344 = vmul.f32 %v343, %v343
    %v346 = vsel %vm43, %v344, 0
    %348 = vmatprep.subr.mxu0 0.0
    %349 = vmatpush1.msra.mxu0 %v266
    %350 = vmatprep.subr.mxu0 0.0
    %351 = vmatpush1.msra.mxu0 %v267
    %352 = vmatprep.subr.mxu0 0.0
    %353 = vmatpush1.msra.mxu0 %v268
    %354 = vmatprep.subr.mxu0 0.0
    %355 = vmatpush1.msra.mxu0 %v269
    %356 = vmatprep.subr.mxu0 0.0
    %357 = vmatpush1.msra.mxu0 0.0
    %358 = vmatprep.subr.mxu0 0.0
    %359 = vmatpush1.msra.mxu0 0.0
    %360 = vmatprep.subr.mxu0 0.0
    %361 = vmatpush1.msra.mxu0 0.0
    %362 = vmatprep.subr.mxu0 0.0
    %363 = vmatpush1.msra.mxu0 0.0
    %364 = vmatprep.subr.mxu0 0.0
    %365 = vmatpush1.msra.mxu0 0.0
    %366 = vmatprep.subr.mxu0 0.0
    %367 = vmatpush1.msra.mxu0 0.0
    %368 = vmatprep.subr.mxu0 0.0
    %369 = vmatpush1.msra.mxu0 0.0
    %370 = vmatprep.subr.mxu0 0.0
    %371 = vmatpush1.msra.mxu0 0.0
    %372 = vmatprep.subr.mxu0 0.0
    %373 = vmatpush1.msra.mxu0 0.0
    %374 = vmatprep.subr.mxu0 0.0
    %375 = vmatpush1.msra.mxu0 0.0
    %376 = vmatprep.subr.mxu0 0.0
    %377 = vmatpush1.msra.mxu0 0.0
    %378 = vmatprep.subr.mxu0 0.0
    %379 = vmatpush1.msra.mxu0 0.0
    %380 = vmatprep.subr.mxu0 0.0
    %381 = vmatpush1.msra.mxu0 0.0
    %382 = vmatprep.subr.mxu0 0.0
    %383 = vmatpush1.msra.mxu0 0.0
    %384 = vmatprep.subr.mxu0 0.0
    %385 = vmatpush1.msra.mxu0 0.0
    %386 = vmatprep.subr.mxu0 0.0
    %387 = vmatpush1.msra.mxu0 0.0
    %388 = vmatprep.subr.mxu0 0.0
    %389 = vmatpush1.msra.mxu0 0.0
    %390 = vmatprep.subr.mxu0 0.0
    %391 = vmatpush1.msra.mxu0 0.0
    %392 = vmatprep.subr.mxu0 0.0
    %393 = vmatpush1.msra.mxu0 0.0
    %394 = vmatprep.subr.mxu0 0.0
    %395 = vmatpush1.msra.mxu0 0.0
    %396 = vmatprep.subr.mxu0 0.0
    %397 = vmatpush1.msra.mxu0 0.0
    %398 = vmatprep.subr.mxu0 0.0
    %399 = vmatpush1.msra.mxu0 0.0
    %400 = vmatprep.subr.mxu0 0.0
    %401 = vmatpush1.msra.mxu0 0.0
    %402 = vmatprep.subr.mxu0 0.0
    %403 = vmatpush1.msra.mxu0 0.0
    %404 = vmatprep.subr.mxu0 0.0
    %405 = vmatpush1.msra.mxu0 0.0
    %406 = vmatprep.subr.mxu0 0.0
    %407 = vmatpush1.msra.mxu0 0.0
    %408 = vmatprep.subr.mxu0 0.0
    %409 = vmatpush1.msra.mxu0 0.0
    %410 = vmatprep.subr.mxu0 0.0
    %411 = vmatpush1.msra.mxu0 0.0
    %412 = vmatprep.mubr.f32.mxu0 0.0
    %413 = vmatmul.mubr.f32.gmra.mrb[0].mxu0 %v346
    %v414 = vpop.f32.mrb[0].mxu0
    %v415 = vadd.f32 1e-05, %v414
    %v416 = vpop.f32.mrb[0].mxu0
    %417 = vdwg.mxu0
    %v418 = vrsqrt.pop %v415
    %v419 = vmul.f32 %v343, %v418
    %v420 = vmul.f32 %v419, 0.5
    %v421 = vmul.f32 %v419, 0.70710677
    %v422 = verf.f32.pop %v421
    %v423 = vadd.f32 %v422, 1.0
    %v424 = vmul.f32 %v420, %v423
    %v426 = vsel %vm43, %v424, 0
    %428 = vmatprep.subr.mxu0 0.0
    %429 = vmatpush1.msra.mxu0 %v39
    %430 = vmatprep.subr.mxu0 0.0
    %431 = vmatpush1.msra.mxu0 %v40
    %432 = vmatprep.subr.mxu0 0.0
    %433 = vmatpush1.msra.mxu0 %v41
    %434 = vmatprep.subr.mxu0 0.0
    %435 = vmatpush1.msra.mxu0 %v42
    %436 = vmatprep.subr.mxu0 0.0
    %437 = vmatpush1.msra.mxu0 0.0
    %438 = vmatprep.subr.mxu0 0.0
    %439 = vmatpush1.msra.mxu0 0.0
    %440 = vmatprep.subr.mxu0 0.0
    %441 = vmatpush1.msra.mxu0 0.0
    %442 = vmatprep.subr.mxu0 0.0
    %443 = vmatpush1.msra.mxu0 0.0
    %444 = vmatprep.subr.mxu0 0.0
    %445 = vmatpush1.msra.mxu0 0.0
    %446 = vmatprep.subr.mxu0 0.0
    %447 = vmatpush1.msra.mxu0 0.0
    %448 = vmatprep.subr.mxu0 0.0
    %449 = vmatpush1.msra.mxu0 0.0
    %450 = vmatprep.subr.mxu0 0.0
    %451 = vmatpush1.msra.mxu0 0.0
    %452 = vmatprep.subr.mxu0 0.0
    %453 = vmatpush1.msra.mxu0 0.0
    %454 = vmatprep.subr.mxu0 0.0
    %455 = vmatpush1.msra.mxu0 0.0
    %456 = vmatprep.subr.mxu0 0.0
    %457 = vmatpush1.msra.mxu0 0.0
    %458 = vmatprep.subr.mxu0 0.0
    %459 = vmatpush1.msra.mxu0 0.0
    %460 = vmatprep.subr.mxu0 0.0
    %461 = vmatpush1.msra.mxu0 0.0
    %462 = vmatprep.subr.mxu0 0.0
    %463 = vmatpush1.msra.mxu0 0.0
    %464 = vmatprep.subr.mxu0 0.0
    %465 = vmatpush1.msra.mxu0 0.0
    %466 = vmatprep.subr.mxu0 0.0
    %467 = vmatpush1.msra.mxu0 0.0
    %468 = vmatprep.subr.mxu0 0.0
    %469 = vmatpush1.msra.mxu0 0.0
    %470 = vmatprep.subr.mxu0 0.0
    %471 = vmatpush1.msra.mxu0 0.0
    %472 = vmatprep.subr.mxu0 0.0
    %473 = vmatpush1.msra.mxu0 0.0
    %474 = vmatprep.subr.mxu0 0.0
    %475 = vmatpush1.msra.mxu0 0.0
    %476 = vmatprep.subr.mxu0 0.0
    %477 = vmatpush1.msra.mxu0 0.0
    %478 = vmatprep.subr.mxu0 0.0
    %479 = vmatpush1.msra.mxu0 0.0
    %480 = vmatprep.subr.mxu0 0.0
    %481 = vmatpush1.msra.mxu0 0.0
    %482 = vmatprep.subr.mxu0 0.0
    %483 = vmatpush1.msra.mxu0 0.0
    %484 = vmatprep.subr.mxu0 0.0
    %485 = vmatpush1.msra.mxu0 0.0
    %486 = vmatprep.subr.mxu0 0.0
    %487 = vmatpush1.msra.mxu0 0.0
    %488 = vmatprep.subr.mxu0 0.0
    %489 = vmatpush1.msra.mxu0 0.0
    %490 = vmatprep.subr.mxu0 0.0
    %491 = vmatpush1.msra.mxu0 0.0
    %492 = vmatprep.mubr.f32.mxu0 0.0
    %493 = vmatmul.mubr.f32.gmra.mrb[0].mxu0 %v426
    %v494 = vpop.f32.mrb[0].mxu0
    %v495 = vadd.f32 0.0, %v494
    %v496 = vpop.f32.mrb[0].mxu0
    %497 = vdwg.mxu0
    %498 = vmatprep.subr.mxu0 0.0
    %499 = vmatpush1.msra.mxu0 %v117
    %500 = vmatprep.subr.mxu0 0.0
    %501 = vmatpush1.msra.mxu0 %v118
    %502 = vmatprep.subr.mxu0 0.0
    %503 = vmatpush1.msra.mxu0 %v119
    %504 = vmatprep.subr.mxu0 0.0
    %505 = vmatpush1.msra.mxu0 %v120
    %506 = vmatprep.subr.mxu0 0.0
    %507 = vmatpush1.msra.mxu0 0.0
    %508 = vmatprep.subr.mxu0 0.0
    %509 = vmatpush1.msra.mxu0 0.0
    %510 = vmatprep.subr.mxu0 0.0
    %511 = vmatpush1.msra.mxu0 0.0
    %512 = vmatprep.subr.mxu0 0.0
    %513 = vmatpush1.msra.mxu0 0.0
    %514 = vmatprep.subr.mxu0 0.0
    %515 = vmatpush1.msra.mxu0 0.0
    %516 = vmatprep.subr.mxu0 0.0
    %517 = vmatpush1.msra.mxu0 0.0
    %518 = vmatprep.subr.mxu0 0.0
    %519 = vmatpush1.msra.mxu0 0.0
    %520 = vmatprep.subr.mxu0 0.0
    %521 = vmatpush1.msra.mxu0 0.0
    %522 = vmatprep.subr.mxu0 0.0
    %523 = vmatpush1.msra.mxu0 0.0
    %524 = vmatprep.subr.mxu0 0.0
    %525 = vmatpush1.msra.mxu0 0.0
    %526 = vmatprep.subr.mxu0 0.0
    %527 = vmatpush1.msra.mxu0 0.0
    %528 = vmatprep.subr.mxu0 0.0
    %529 = vmatpush1.msra.mxu0 0.0
    %530 = vmatprep.subr.mxu0 0.0
    %531 = vmatpush1.msra.mxu0 0.0
    %532 = vmatprep.subr.mxu0 0.0
    %533 = vmatpush1.msra.mxu0 0.0
    %534 = vmatprep.subr.mxu0 0.0
    %535 = vmatpush1.msra.mxu0 0.0
    %536 = vmatprep.subr.mxu0 0.0
    %537 = vmatpush1.msra.mxu0 0.0
    %538 = vmatprep.subr.mxu0 0.0
    %539 = vmatpush1.msra.mxu0 0.0
    %540 = vmatprep.subr.mxu0 0.0
    %541 = vmatpush1.msra.mxu0 0.0
    %542 = vmatprep.subr.mxu0 0.0
    %543 = vmatpush1.msra.mxu0 0.0
    %544 = vmatprep.subr.mxu0 0.0
    %545 = vmatpush1.msra.mxu0 0.0
    %546 = vmatprep.subr.mxu0 0.0
    %547 = vmatpush1.msra.mxu0 0.0
    %548 = vmatprep.subr.mxu0 0.0
    %549 = vmatpush1.msra.mxu0 0.0
    %550 = vmatprep.subr.mxu0 0.0
    %551 = vmatpush1.msra.mxu0 0.0
    %552 = vmatprep.subr.mxu0 0.0
    %553 = vmatpush1.msra.mxu0 0.0
    %554 = vmatprep.subr.mxu0 0.0
    %555 = vmatpush1.msra.mxu0 0.0
    %556 = vmatprep.subr.mxu0 0.0
    %557 = vmatpush1.msra.mxu0 0.0
    %558 = vmatprep.subr.mxu0 0.0
    %559 = vmatpush1.msra.mxu0 0.0
    %560 = vmatprep.subr.mxu0 0.0
    %561 = vmatpush1.msra.mxu0 0.0
    %562 = vmatprep.mubr.f32.mxu0 0.0
    %563 = vmatmul.mubr.f32.gmra.mrb[0].mxu0 %v426
    %v564 = vpop.f32.mrb[0].mxu0
    %v565 = vadd.f32 0.0, %v564
    %v566 = vpop.f32.mrb[0].mxu0
    %567 = vdwg.mxu0
    %v568 = vld [vmem:[#allocation5 + $0x68] sm:$0xff]
    %v570 = vsel %vm192, %v568, 0
    %572 = vmatprep.subr.mxu0 0.0
    %573 = vmatpush1.msra.mxu0 %v495
    %574 = vmatprep.subr.mxu0 0.0
    %575 = vmatpush1.msra.mxu0 %v424
    %576 = vmatprep.subr.mxu0 0.0
    %577 = vmatpush1.msra.mxu0 %v565
    %578 = vmatprep.subr.mxu0 0.0
    %579 = vmatpush1.msra.mxu0 0.0
    %580 = vmatprep.subr.mxu0 0.0
    %581 = vmatpush1.msra.mxu0 0.0
    %582 = vmatprep.subr.mxu0 0.0
    %583 = vmatpush1.msra.mxu0 0.0
    %584 = vmatprep.subr.mxu0 0.0
    %585 = vmatpush1.msra.mxu0 0.0
    %586 = vmatprep.subr.mxu0 0.0
    %587 = vmatpush1.msra.mxu0 0.0
    %588 = vmatprep.subr.mxu0 0.0
    %589 = vmatpush1.msra.mxu0 0.0
    %590 = vmatprep.subr.mxu0 0.0
    %591 = vmatpush1.msra.mxu0 0.0
    %592 = vmatprep.subr.mxu0 0.0
    %593 = vmatpush1.msra.mxu0 0.0
    %594 = vmatprep.subr.mxu0 0.0
    %595 = vmatpush1.msra.mxu0 0.0
    %596 = vmatprep.subr.mxu0 0.0
    %597 = vmatpush1.msra.mxu0 0.0
    %598 = vmatprep.subr.mxu0 0.0
    %599 = vmatpush1.msra.mxu0 0.0
    %600 = vmatprep.subr.mxu0 0.0
    %601 = vmatpush1.msra.mxu0 0.0
    %602 = vmatprep.subr.mxu0 0.0
    %603 = vmatpush1.msra.mxu0 0.0
    %604 = vmatprep.subr.mxu0 0.0
    %605 = vmatpush1.msra.mxu0 0.0
    %606 = vmatprep.subr.mxu0 0.0
    %607 = vmatpush1.msra.mxu0 0.0
    %608 = vmatprep.subr.mxu0 0.0
    %609 = vmatpush1.msra.mxu0 0.0
    %610 = vmatprep.subr.mxu0 0.0
    %611 = vmatpush1.msra.mxu0 0.0
    %612 = vmatprep.subr.mxu0 0.0
    %613 = vmatpush1.msra.mxu0 0.0
    %614 = vmatprep.subr.mxu0 0.0
    %615 = vmatpush1.msra.mxu0 0.0
    %616 = vmatprep.subr.mxu0 0.0
    %617 = vmatpush1.msra.mxu0 0.0
    %618 = vmatprep.subr.mxu0 0.0
    %619 = vmatpush1.msra.mxu0 0.0
    %620 = vmatprep.subr.mxu0 0.0
    %621 = vmatpush1.msra.mxu0 0.0
    %622 = vmatprep.subr.mxu0 0.0
    %623 = vmatpush1.msra.mxu0 0.0
    %624 = vmatprep.subr.mxu0 0.0
    %625 = vmatpush1.msra.mxu0 0.0
    %626 = vmatprep.subr.mxu0 0.0
    %627 = vmatpush1.msra.mxu0 0.0
    %628 = vmatprep.subr.mxu0 0.0
    %629 = vmatpush1.msra.mxu0 0.0
    %630 = vmatprep.subr.mxu0 0.0
    %631 = vmatpush1.msra.mxu0 0.0
    %632 = vmatprep.subr.mxu0 0.0
    %633 = vmatpush1.msra.mxu0 0.0
    %634 = vmatprep.subr.mxu0 0.0
    %635 = vmatpush1.msra.mxu0 0.0
    %636 = vmatprep.mubr.f32.mxu0 0.0
    %637 = vmatmul.mubr.f32.gmra.mrb[0].mxu0 %v570
    %v638 = vpop.f32.mrb[0].mxu0
    %v639 = vadd.f32 0.0, %v638
    %v640 = vpop.f32.mrb[0].mxu0
    %641 = vdwg.mxu0
    %v643 = vsel %vm43, %v639, 0
    %645 = vmatprep.subr.mxu0 0.0
    %646 = vmatpush1.msra.mxu0 %v266
    %647 = vmatprep.subr.mxu0 0.0
    %648 = vmatpush1.msra.mxu0 %v267
    %649 = vmatprep.subr.mxu0 0.0
    %650 = vmatpush1.msra.mxu0 %v268
    %651 = vmatprep.subr.mxu0 0.0
    %652 = vmatpush1.msra.mxu0 %v269
    %653 = vmatprep.subr.mxu0 0.0
    %654 = vmatpush1.msra.mxu0 0.0
    %655 = vmatprep.subr.mxu0 0.0
    %656 = vmatpush1.msra.mxu0 0.0
    %657 = vmatprep.subr.mxu0 0.0
    %658 = vmatpush1.msra.mxu0 0.0
    %659 = vmatprep.subr.mxu0 0.0
    %660 = vmatpush1.msra.mxu0 0.0
    %661 = vmatprep.subr.mxu0 0.0
    %662 = vmatpush1.msra.mxu0 0.0
    %663 = vmatprep.subr.mxu0 0.0
    %664 = vmatpush1.msra.mxu0 0.0
    %665 = vmatprep.subr.mxu0 0.0
    %666 = vmatpush1.msra.mxu0 0.0
    %667 = vmatprep.subr.mxu0 0.0
    %668 = vmatpush1.msra.mxu0 0.0
    %669 = vmatprep.subr.mxu0 0.0
    %670 = vmatpush1.msra.mxu0 0.0
    %671 = vmatprep.subr.mxu0 0.0
    %672 = vmatpush1.msra.mxu0 0.0
    %673 = vmatprep.subr.mxu0 0.0
    %674 = vmatpush1.msra.mxu0 0.0
    %675 = vmatprep.subr.mxu0 0.0
    %676 = vmatpush1.msra.mxu0 0.0
    %677 = vmatprep.subr.mxu0 0.0
    %678 = vmatpush1.msra.mxu0 0.0
    %679 = vmatprep.subr.mxu0 0.0
    %680 = vmatpush1.msra.mxu0 0.0
    %681 = vmatprep.subr.mxu0 0.0
    %682 = vmatpush1.msra.mxu0 0.0
    %683 = vmatprep.subr.mxu0 0.0
    %684 = vmatpush1.msra.mxu0 0.0
    %685 = vmatprep.subr.mxu0 0.0
    %686 = vmatpush1.msra.mxu0 0.0
    %687 = vmatprep.subr.mxu0 0.0
    %688 = vmatpush1.msra.mxu0 0.0
    %689 = vmatprep.subr.mxu0 0.0
    %690 = vmatpush1.msra.mxu0 0.0
    %691 = vmatprep.subr.mxu0 0.0
    %692 = vmatpush1.msra.mxu0 0.0
    %693 = vmatprep.subr.mxu0 0.0
    %694 = vmatpush1.msra.mxu0 0.0
    %695 = vmatprep.subr.mxu0 0.0
    %696 = vmatpush1.msra.mxu0 0.0
    %697 = vmatprep.subr.mxu0 0.0
    %698 = vmatpush1.msra.mxu0 0.0
    %699 = vmatprep.subr.mxu0 0.0
    %700 = vmatpush1.msra.mxu0 0.0
    %701 = vmatprep.subr.mxu0 0.0
    %702 = vmatpush1.msra.mxu0 0.0
    %703 = vmatprep.subr.mxu0 0.0
    %704 = vmatpush1.msra.mxu0 0.0
    %705 = vmatprep.subr.mxu0 0.0
    %706 = vmatpush1.msra.mxu0 0.0
    %707 = vmatprep.subr.mxu0 0.0
    %708 = vmatpush1.msra.mxu0 0.0
    %709 = vmatprep.mubr.f32.mxu0 0.0
    %710 = vmatmul.mubr.f32.gmra.mrb[0].mxu0 %v643
    %v711 = vpop.f32.mrb[0].mxu0
    %v712 = vadd.f32 0.0, %v711
    %v713 = vpop.f32.mrb[0].mxu0
    %714 = vdwg.mxu0
    %v715 = vsub.f32 %v639, %v712
    %v716 = vmul.f32 %v715, %v715
    %v718 = vsel %vm43, %v716, 0
    %720 = vmatprep.subr.mxu0 0.0
    %721 = vmatpush1.msra.mxu0 %v266
    %722 = vmatprep.subr.mxu0 0.0
    %723 = vmatpush1.msra.mxu0 %v267
    %724 = vmatprep.subr.mxu0 0.0
    %725 = vmatpush1.msra.mxu0 %v268
    %726 = vmatprep.subr.mxu0 0.0
    %727 = vmatpush1.msra.mxu0 %v269
    %728 = vmatprep.subr.mxu0 0.0
    %729 = vmatpush1.msra.mxu0 0.0
    %730 = vmatprep.subr.mxu0 0.0
    %731 = vmatpush1.msra.mxu0 0.0
    %732 = vmatprep.subr.mxu0 0.0
    %733 = vmatpush1.msra.mxu0 0.0
    %734 = vmatprep.subr.mxu0 0.0
    %735 = vmatpush1.msra.mxu0 0.0
    %736 = vmatprep.subr.mxu0 0.0
    %737 = vmatpush1.msra.mxu0 0.0
    %738 = vmatprep.subr.mxu0 0.0
    %739 = vmatpush1.msra.mxu0 0.0
    %740 = vmatprep.subr.mxu0 0.0
    %741 = vmatpush1.msra.mxu0 0.0
    %742 = vmatprep.subr.mxu0 0.0
    %743 = vmatpush1.msra.mxu0 0.0
    %744 = vmatprep.subr.mxu0 0.0
    %745 = vmatpush1.msra.mxu0 0.0
    %746 = vmatprep.subr.mxu0 0.0
    %747 = vmatpush1.msra.mxu0 0.0
    %748 = vmatprep.subr.mxu0 0.0
    %749 = vmatpush1.msra.mxu0 0.0
    %750 = vmatprep.subr.mxu0 0.0
    %751 = vmatpush1.msra.mxu0 0.0
    %752 = vmatprep.subr.mxu0 0.0
    %753 = vmatpush1.msra.mxu0 0.0
    %754 = vmatprep.subr.mxu0 0.0
    %755 = vmatpush1.msra.mxu0 0.0
    %756 = vmatprep.subr.mxu0 0.0
    %757 = vmatpush1.msra.mxu0 0.0
    %758 = vmatprep.subr.mxu0 0.0
    %759 = vmatpush1.msra.mxu0 0.0
    %760 = vmatprep.subr.mxu0 0.0
    %761 = vmatpush1.msra.mxu0 0.0
    %762 = vmatprep.subr.mxu0 0.0
    %763 = vmatpush1.msra.mxu0 0.0
    %764 = vmatprep.subr.mxu0 0.0
    %765 = vmatpush1.msra.mxu0 0.0
    %766 = vmatprep.subr.mxu0 0.0
    %767 = vmatpush1.msra.mxu0 0.0
    %768 = vmatprep.subr.mxu0 0.0
    %769 = vmatpush1.msra.mxu0 0.0
    %770 = vmatprep.subr.mxu0 0.0
    %771 = vmatpush1.msra.mxu0 0.0
    %772 = vmatprep.subr.mxu0 0.0
    %773 = vmatpush1.msra.mxu0 0.0
    %774 = vmatprep.subr.mxu0 0.0
    %775 = vmatpush1.msra.mxu0 0.0
    %776 = vmatprep.subr.mxu0 0.0
    %777 = vmatpush1.msra.mxu0 0.0
    %778 = vmatprep.subr.mxu0 0.0
    %779 = vmatpush1.msra.mxu0 0.0
    %780 = vmatprep.subr.mxu0 0.0
    %781 = vmatpush1.msra.mxu0 0.0
    %782 = vmatprep.subr.mxu0 0.0
    %783 = vmatpush1.msra.mxu0 0.0
    %784 = vmatprep.mubr.f32.mxu0 0.0
    %785 = vmatmul.mubr.f32.gmra.mrb[0].mxu0 %v718
    %v786 = vpop.f32.mrb[0].mxu0
    %v787 = vadd.f32 1e-05, %v786
    %v788 = vpop.f32.mrb[0].mxu0
    %789 = vdwg.mxu0
    %v790 = vrsqrt.pop %v787
    %v791 = vmul.f32 %v715, %v790
    %v792 = vld [vmem:[#allocation5 + $0x70] sm:$0xff]
    %794 = vset.pattern.permute.xlu0 0
    %795 = vperm.xlu0 %794, %v792
    %v796 = vpop.permute.xlu0 %795
    %v798 = vmul.f32 %v791, %v796
    %v799 = vld [vmem:[#allocation5 + $0x78] sm:$0xff]
    %801 = vset.pattern.permute.xlu0 0
    %802 = vperm.xlu0 %801, %v799
    %v803 = vpop.permute.xlu0 %802
    %v805 = vadd.f32 %v798, %v803
    %v806 = vmul.f32 %v805, 0.5
    %v807 = vmul.f32 %v805, 0.70710677
    %v808 = verf.f32.pop %v807
    %v809 = vadd.f32 %v808, 1.0
    %v810 = vmul.f32 %v806, %v809
    %v812 = vsel %vm43, %v810, 0
    %814 = vmatprep.subr.mxu0 0.0
    %815 = vmatpush1.msra.mxu0 %v39
    %816 = vmatprep.subr.mxu0 0.0
    %817 = vmatpush1.msra.mxu0 %v40
    %818 = vmatprep.subr.mxu0 0.0
    %819 = vmatpush1.msra.mxu0 %v41
    %820 = vmatprep.subr.mxu0 0.0
    %821 = vmatpush1.msra.mxu0 %v42
    %822 = vmatprep.subr.mxu0 0.0
    %823 = vmatpush1.msra.mxu0 0.0
    %824 = vmatprep.subr.mxu0 0.0
    %825 = vmatpush1.msra.mxu0 0.0
    %826 = vmatprep.subr.mxu0 0.0
    %827 = vmatpush1.msra.mxu0 0.0
    %828 = vmatprep.subr.mxu0 0.0
    %829 = vmatpush1.msra.mxu0 0.0
    %830 = vmatprep.subr.mxu0 0.0
    %831 = vmatpush1.msra.mxu0 0.0
    %832 = vmatprep.subr.mxu0 0.0
    %833 = vmatpush1.msra.mxu0 0.0
    %834 = vmatprep.subr.mxu0 0.0
    %835 = vmatpush1.msra.mxu0 0.0
    %836 = vmatprep.subr.mxu0 0.0
    %837 = vmatpush1.msra.mxu0 0.0
    %838 = vmatprep.subr.mxu0 0.0
    %839 = vmatpush1.msra.mxu0 0.0
    %840 = vmatprep.subr.mxu0 0.0
    %841 = vmatpush1.msra.mxu0 0.0
    %842 = vmatprep.subr.mxu0 0.0
    %843 = vmatpush1.msra.mxu0 0.0
    %844 = vmatprep.subr.mxu0 0.0
    %845 = vmatpush1.msra.mxu0 0.0
    %846 = vmatprep.subr.mxu0 0.0
    %847 = vmatpush1.msra.mxu0 0.0
    %848 = vmatprep.subr.mxu0 0.0
    %849 = vmatpush1.msra.mxu0 0.0
    %850 = vmatprep.subr.mxu0 0.0
    %851 = vmatpush1.msra.mxu0 0.0
    %852 = vmatprep.subr.mxu0 0.0
    %853 = vmatpush1.msra.mxu0 0.0
    %854 = vmatprep.subr.mxu0 0.0
    %855 = vmatpush1.msra.mxu0 0.0
    %856 = vmatprep.subr.mxu0 0.0
    %857 = vmatpush1.msra.mxu0 0.0
    %858 = vmatprep.subr.mxu0 0.0
    %859 = vmatpush1.msra.mxu0 0.0
    %860 = vmatprep.subr.mxu0 0.0
    %861 = vmatpush1.msra.mxu0 0.0
    %862 = vmatprep.subr.mxu0 0.0
    %863 = vmatpush1.msra.mxu0 0.0
    %864 = vmatprep.subr.mxu0 0.0
    %865 = vmatpush1.msra.mxu0 0.0
    %866 = vmatprep.subr.mxu0 0.0
    %867 = vmatpush1.msra.mxu0 0.0
    %868 = vmatprep.subr.mxu0 0.0
    %869 = vmatpush1.msra.mxu0 0.0
    %870 = vmatprep.subr.mxu0 0.0
    %871 = vmatpush1.msra.mxu0 0.0
    %872 = vmatprep.subr.mxu0 0.0
    %873 = vmatpush1.msra.mxu0 0.0
    %874 = vmatprep.subr.mxu0 0.0
    %875 = vmatpush1.msra.mxu0 0.0
    %876 = vmatprep.subr.mxu0 0.0
    %877 = vmatpush1.msra.mxu0 0.0
    %878 = vmatprep.mubr.f32.mxu0 0.0
    %879 = vmatmul.mubr.f32.gmra.mrb[0].mxu0 %v812
    %v880 = vpop.f32.mrb[0].mxu0
    %v881 = vadd.f32 0.0, %v880
    %v882 = vpop.f32.mrb[0].mxu0
    %883 = vdwg.mxu0
    %884 = vmatprep.subr.mxu0 0.0
    %885 = vmatpush1.msra.mxu0 %v117
    %886 = vmatprep.subr.mxu0 0.0
    %887 = vmatpush1.msra.mxu0 %v118
    %888 = vmatprep.subr.mxu0 0.0
    %889 = vmatpush1.msra.mxu0 %v119
    %890 = vmatprep.subr.mxu0 0.0
    %891 = vmatpush1.msra.mxu0 %v120
    %892 = vmatprep.subr.mxu0 0.0
    %893 = vmatpush1.msra.mxu0 0.0
    %894 = vmatprep.subr.mxu0 0.0
    %895 = vmatpush1.msra.mxu0 0.0
    %896 = vmatprep.subr.mxu0 0.0
    %897 = vmatpush1.msra.mxu0 0.0
    %898 = vmatprep.subr.mxu0 0.0
    %899 = vmatpush1.msra.mxu0 0.0
    %900 = vmatprep.subr.mxu0 0.0
    %901 = vmatpush1.msra.mxu0 0.0
    %902 = vmatprep.subr.mxu0 0.0
    %903 = vmatpush1.msra.mxu0 0.0
    %904 = vmatprep.subr.mxu0 0.0
    %905 = vmatpush1.msra.mxu0 0.0
    %906 = vmatprep.subr.mxu0 0.0
    %907 = vmatpush1.msra.mxu0 0.0
    %908 = vmatprep.subr.mxu0 0.0
    %909 = vmatpush1.msra.mxu0 0.0
    %910 = vmatprep.subr.mxu0 0.0
    %911 = vmatpush1.msra.mxu0 0.0
    %912 = vmatprep.subr.mxu0 0.0
    %913 = vmatpush1.msra.mxu0 0.0
    %914 = vmatprep.subr.mxu0 0.0
    %915 = vmatpush1.msra.mxu0 0.0
    %916 = vmatprep.subr.mxu0 0.0
    %917 = vmatpush1.msra.mxu0 0.0
    %918 = vmatprep.subr.mxu0 0.0
    %919 = vmatpush1.msra.mxu0 0.0
    %920 = vmatprep.subr.mxu0 0.0
    %921 = vmatpush1.msra.mxu0 0.0
    %922 = vmatprep.subr.mxu0 0.0
    %923 = vmatpush1.msra.mxu0 0.0
    %924 = vmatprep.subr.mxu0 0.0
    %925 = vmatpush1.msra.mxu0 0.0
    %926 = vmatprep.subr.mxu0 0.0
    %927 = vmatpush1.msra.mxu0 0.0
    %928 = vmatprep.subr.mxu0 0.0
    %929 = vmatpush1.msra.mxu0 0.0
    %930 = vmatprep.subr.mxu0 0.0
    %931 = vmatpush1.msra.mxu0 0.0
    %932 = vmatprep.subr.mxu0 0.0
    %933 = vmatpush1.msra.mxu0 0.0
    %934 = vmatprep.subr.mxu0 0.0
    %935 = vmatpush1.msra.mxu0 0.0
    %936 = vmatprep.subr.mxu0 0.0
    %937 = vmatpush1.msra.mxu0 0.0
    %938 = vmatprep.subr.mxu0 0.0
    %939 = vmatpush1.msra.mxu0 0.0
    %940 = vmatprep.subr.mxu0 0.0
    %941 = vmatpush1.msra.mxu0 0.0
    %942 = vmatprep.subr.mxu0 0.0
    %943 = vmatpush1.msra.mxu0 0.0
    %944 = vmatprep.subr.mxu0 0.0
    %945 = vmatpush1.msra.mxu0 0.0
    %946 = vmatprep.subr.mxu0 0.0
    %947 = vmatpush1.msra.mxu0 0.0
    %948 = vmatprep.mubr.f32.mxu0 0.0
    %949 = vmatmul.mubr.f32.gmra.mrb[0].mxu0 %v812
    %v950 = vpop.f32.mrb[0].mxu0
    %v951 = vadd.f32 0.0, %v950
    %v952 = vpop.f32.mrb[0].mxu0
    %953 = vdwg.mxu0
    %v954 = vld [vmem:[#allocation5 + $0x80] sm:$0xff]
    %v956 = vsel %vm192, %v954, 0
    %958 = vmatprep.subr.mxu0 0.0
    %959 = vmatpush1.msra.mxu0 %v881
    %960 = vmatprep.subr.mxu0 0.0
    %961 = vmatpush1.msra.mxu0 %v810
    %962 = vmatprep.subr.mxu0 0.0
    %963 = vmatpush1.msra.mxu0 %v951
    %964 = vmatprep.subr.mxu0 0.0
    %965 = vmatpush1.msra.mxu0 0.0
    %966 = vmatprep.subr.mxu0 0.0
    %967 = vmatpush1.msra.mxu0 0.0
    %968 = vmatprep.subr.mxu0 0.0
    %969 = vmatpush1.msra.mxu0 0.0
    %970 = vmatprep.subr.mxu0 0.0
    %971 = vmatpush1.msra.mxu0 0.0
    %972 = vmatprep.subr.mxu0 0.0
    %973 = vmatpush1.msra.mxu0 0.0
    %974 = vmatprep.subr.mxu0 0.0
    %975 = vmatpush1.msra.mxu0 0.0
    %976 = vmatprep.subr.mxu0 0.0
    %977 = vmatpush1.msra.mxu0 0.0
    %978 = vmatprep.subr.mxu0 0.0
    %979 = vmatpush1.msra.mxu0 0.0
    %980 = vmatprep.subr.mxu0 0.0
    %981 = vmatpush1.msra.mxu0 0.0
    %982 = vmatprep.subr.mxu0 0.0
    %983 = vmatpush1.msra.mxu0 0.0
    %984 = vmatprep.subr.mxu0 0.0
    %985 = vmatpush1.msra.mxu0 0.0
    %986 = vmatprep.subr.mxu0 0.0
    %987 = vmatpush1.msra.mxu0 0.0
    %988 = vmatprep.subr.mxu0 0.0
    %989 = vmatpush1.msra.mxu0 0.0
    %990 = vmatprep.subr.mxu0 0.0
    %991 = vmatpush1.msra.mxu0 0.0
    %992 = vmatprep.subr.mxu0 0.0
    %993 = vmatpush1.msra.mxu0 0.0
    %994 = vmatprep.subr.mxu0 0.0
    %995 = vmatpush1.msra.mxu0 0.0
    %996 = vmatprep.subr.mxu0 0.0
    %997 = vmatpush1.msra.mxu0 0.0
    %998 = vmatprep.subr.mxu0 0.0
    %999 = vmatpush1.msra.mxu0 0.0
    %1000 = vmatprep.subr.mxu0 0.0
    %1001 = vmatpush1.msra.mxu0 0.0
    %1002 = vmatprep.subr.mxu0 0.0
    %1003 = vmatpush1.msra.mxu0 0.0
    %1004 = vmatprep.subr.mxu0 0.0
    %1005 = vmatpush1.msra.mxu0 0.0
    %1006 = vmatprep.subr.mxu0 0.0
    %1007 = vmatpush1.msra.mxu0 0.0
    %1008 = vmatprep.subr.mxu0 0.0
    %1009 = vmatpush1.msra.mxu0 0.0
    %1010 = vmatprep.subr.mxu0 0.0
    %1011 = vmatpush1.msra.mxu0 0.0
    %1012 = vmatprep.subr.mxu0 0.0
    %1013 = vmatpush1.msra.mxu0 0.0
    %1014 = vmatprep.subr.mxu0 0.0
    %1015 = vmatpush1.msra.mxu0 0.0
    %1016 = vmatprep.subr.mxu0 0.0
    %1017 = vmatpush1.msra.mxu0 0.0
    %1018 = vmatprep.subr.mxu0 0.0
    %1019 = vmatpush1.msra.mxu0 0.0
    %1020 = vmatprep.subr.mxu0 0.0
    %1021 = vmatpush1.msra.mxu0 0.0
    %1022 = vmatprep.mubr.f32.mxu0 0.0
    %1023 = vmatmul.mubr.f32.gmra.mrb[0].mxu0 %v956
    %v1024 = vpop.f32.mrb[0].mxu0
    %v1025 = vadd.f32 0.0, %v1024
    %v1026 = vpop.f32.mrb[0].mxu0
    %1027 = vdwg.mxu0
    %v1029 = vsel %vm43, %v1025, 0
    %1031 = vmatprep.subr.mxu0 0.0
    %1032 = vmatpush1.msra.mxu0 %v266
    %1033 = vmatprep.subr.mxu0 0.0
    %1034 = vmatpush1.msra.mxu0 %v267
    %1035 = vmatprep.subr.mxu0 0.0
    %1036 = vmatpush1.msra.mxu0 %v268
    %1037 = vmatprep.subr.mxu0 0.0
    %1038 = vmatpush1.msra.mxu0 %v269
    %1039 = vmatprep.subr.mxu0 0.0
    %1040 = vmatpush1.msra.mxu0 0.0
    %1041 = vmatprep.subr.mxu0 0.0
    %1042 = vmatpush1.msra.mxu0 0.0
    %1043 = vmatprep.subr.mxu0 0.0
    %1044 = vmatpush1.msra.mxu0 0.0
    %1045 = vmatprep.subr.mxu0 0.0
    %1046 = vmatpush1.msra.mxu0 0.0
    %1047 = vmatprep.subr.mxu0 0.0
    %1048 = vmatpush1.msra.mxu0 0.0
    %1049 = vmatprep.subr.mxu0 0.0
    %1050 = vmatpush1.msra.mxu0 0.0
    %1051 = vmatprep.subr.mxu0 0.0
    %1052 = vmatpush1.msra.mxu0 0.0
    %1053 = vmatprep.subr.mxu0 0.0
    %1054 = vmatpush1.msra.mxu0 0.0
    %1055 = vmatprep.subr.mxu0 0.0
    %1056 = vmatpush1.msra.mxu0 0.0
    %1057 = vmatprep.subr.mxu0 0.0
    %1058 = vmatpush1.msra.mxu0 0.0
    %1059 = vmatprep.subr.mxu0 0.0
    %1060 = vmatpush1.msra.mxu0 0.0
    %1061 = vmatprep.subr.mxu0 0.0
    %1062 = vmatpush1.msra.mxu0 0.0
    %1063 = vmatprep.subr.mxu0 0.0
    %1064 = vmatpush1.msra.mxu0 0.0
    %1065 = vmatprep.subr.mxu0 0.0
    %1066 = vmatpush1.msra.mxu0 0.0
    %1067 = vmatprep.subr.mxu0 0.0
    %1068 = vmatpush1.msra.mxu0 0.0
    %1069 = vmatprep.subr.mxu0 0.0
    %1070 = vmatpush1.msra.mxu0 0.0
    %1071 = vmatprep.subr.mxu0 0.0
    %1072 = vmatpush1.msra.mxu0 0.0
    %1073 = vmatprep.subr.mxu0 0.0
    %1074 = vmatpush1.msra.mxu0 0.0
    %1075 = vmatprep.subr.mxu0 0.0
    %1076 = vmatpush1.msra.mxu0 0.0
    %1077 = vmatprep.subr.mxu0 0.0
    %1078 = vmatpush1.msra.mxu0 0.0
    %1079 = vmatprep.subr.mxu0 0.0
    %1080 = vmatpush1.msra.mxu0 0.0
    %1081 = vmatprep.subr.mxu0 0.0
    %1082 = vmatpush1.msra.mxu0 0.0
    %1083 = vmatprep.subr.mxu0 0.0
    %1084 = vmatpush1.msra.mxu0 0.0
    %1085 = vmatprep.subr.mxu0 0.0
    %1086 = vmatpush1.msra.mxu0 0.0
    %1087 = vmatprep.subr.mxu0 0.0
    %1088 = vmatpush1.msra.mxu0 0.0
    %1089 = vmatprep.subr.mxu0 0.0
    %1090 = vmatpush1.msra.mxu0 0.0
    %1091 = vmatprep.subr.mxu0 0.0
    %1092 = vmatpush1.msra.mxu0 0.0
    %1093 = vmatprep.subr.mxu0 0.0
    %1094 = vmatpush1.msra.mxu0 0.0
    %1095 = vmatprep.mubr.f32.mxu0 0.0
    %1096 = vmatmul.mubr.f32.gmra.mrb[0].mxu0 %v1029
    %v1097 = vpop.f32.mrb[0].mxu0
    %v1098 = vadd.f32 0.0, %v1097
    %v1099 = vpop.f32.mrb[0].mxu0
    %1100 = vdwg.mxu0
    %v1101 = vsub.f32 %v1025, %v1098
    %v1102 = vmul.f32 %v1101, %v1101
    %v1104 = vsel %vm43, %v1102, 0
    %1106 = vmatprep.subr.mxu0 0.0
    %1107 = vmatpush1.msra.mxu0 %v266
    %1108 = vmatprep.subr.mxu0 0.0
    %1109 = vmatpush1.msra.mxu0 %v267
    %1110 = vmatprep.subr.mxu0 0.0
    %1111 = vmatpush1.msra.mxu0 %v268
    %1112 = vmatprep.subr.mxu0 0.0
    %1113 = vmatpush1.msra.mxu0 %v269
    %1114 = vmatprep.subr.mxu0 0.0
    %1115 = vmatpush1.msra.mxu0 0.0
    %1116 = vmatprep.subr.mxu0 0.0
    %1117 = vmatpush1.msra.mxu0 0.0
    %1118 = vmatprep.subr.mxu0 0.0
    %1119 = vmatpush1.msra.mxu0 0.0
    %1120 = vmatprep.subr.mxu0 0.0
    %1121 = vmatpush1.msra.mxu0 0.0
    %1122 = vmatprep.subr.mxu0 0.0
    %1123 = vmatpush1.msra.mxu0 0.0
    %1124 = vmatprep.subr.mxu0 0.0
    %1125 = vmatpush1.msra.mxu0 0.0
    %1126 = vmatprep.subr.mxu0 0.0
    %1127 = vmatpush1.msra.mxu0 0.0
    %1128 = vmatprep.subr.mxu0 0.0
    %1129 = vmatpush1.msra.mxu0 0.0
    %1130 = vmatprep.subr.mxu0 0.0
    %1131 = vmatpush1.msra.mxu0 0.0
    %1132 = vmatprep.subr.mxu0 0.0
    %1133 = vmatpush1.msra.mxu0 0.0
    %1134 = vmatprep.subr.mxu0 0.0
    %1135 = vmatpush1.msra.mxu0 0.0
    %1136 = vmatprep.subr.mxu0 0.0
    %1137 = vmatpush1.msra.mxu0 0.0
    %1138 = vmatprep.subr.mxu0 0.0
    %1139 = vmatpush1.msra.mxu0 0.0
    %1140 = vmatprep.subr.mxu0 0.0
    %1141 = vmatpush1.msra.mxu0 0.0
    %1142 = vmatprep.subr.mxu0 0.0
    %1143 = vmatpush1.msra.mxu0 0.0
    %1144 = vmatprep.subr.mxu0 0.0
    %1145 = vmatpush1.msra.mxu0 0.0
    %1146 = vmatprep.subr.mxu0 0.0
    %1147 = vmatpush1.msra.mxu0 0.0
    %1148 = vmatprep.subr.mxu0 0.0
    %1149 = vmatpush1.msra.mxu0 0.0
    %1150 = vmatprep.subr.mxu0 0.0
    %1151 = vmatpush1.msra.mxu0 0.0
    %1152 = vmatprep.subr.mxu0 0.0
    %1153 = vmatpush1.msra.mxu0 0.0
    %1154 = vmatprep.subr.mxu0 0.0
    %1155 = vmatpush1.msra.mxu0 0.0
    %1156 = vmatprep.subr.mxu0 0.0
    %1157 = vmatpush1.msra.mxu0 0.0
    %1158 = vmatprep.subr.mxu0 0.0
    %1159 = vmatpush1.msra.mxu0 0.0
    %1160 = vmatprep.subr.mxu0 0.0
    %1161 = vmatpush1.msra.mxu0 0.0
    %1162 = vmatprep.subr.mxu0 0.0
    %1163 = vmatpush1.msra.mxu0 0.0
    %1164 = vmatprep.subr.mxu0 0.0
    %1165 = vmatpush1.msra.mxu0 0.0
    %1166 = vmatprep.subr.mxu0 0.0
    %1167 = vmatpush1.msra.mxu0 0.0
    %1168 = vmatprep.subr.mxu0 0.0
    %1169 = vmatpush1.msra.mxu0 0.0
    %1170 = vmatprep.mubr.f32.mxu0 0.0
    %1171 = vmatmul.mubr.f32.gmra.mrb[0].mxu0 %v1104
    %v1172 = vpop.f32.mrb[0].mxu0
    %v1173 = vadd.f32 1e-05, %v1172
    %v1174 = vpop.f32.mrb[0].mxu0
    %1175 = vdwg.mxu0
    %v1176 = vrsqrt.pop %v1173
    %v1177 = vmul.f32 %v1101, %v1176
    %v1178 = vld [vmem:[#allocation5 + $0x88] sm:$0xff]
    %1180 = vset.pattern.permute.xlu0 0
    %1181 = vperm.xlu0 %1180, %v1178
    %v1182 = vpop.permute.xlu0 %1181
    %v1184 = vmul.f32 %v1177, %v1182
    %v1185 = vld [vmem:[#allocation5 + $0x90] sm:$0xff]
    %1187 = vset.pattern.permute.xlu0 0
    %1188 = vperm.xlu0 %1187, %v1185
    %v1189 = vpop.permute.xlu0 %1188
    %v1191 = vadd.f32 %v1184, %v1189
    %v1192 = vld [vmem:[#allocation5 + $0xb8] sm:$0xff]
    %v1193 = vld [vmem:[#allocation5 + $0xc0] sm:$0xff]
    %v1194 = vld [vmem:[#allocation5 + $0xc8] sm:$0xff]
    %v1195 = vld [vmem:[#allocation5 + $0xd0] sm:$0xff]
    %v1197 = vsel %vm43, %v1191, 0
    %1199 = vmatprep.subr.mxu0 0.0
    %1200 = vmatpush1.msra.mxu0 %v1192
    %1201 = vmatprep.subr.mxu0 0.0
    %1202 = vmatpush1.msra.mxu0 %v1193
    %1203 = vmatprep.subr.mxu0 0.0
    %1204 = vmatpush1.msra.mxu0 %v1194
    %1205 = vmatprep.subr.mxu0 0.0
    %1206 = vmatpush1.msra.mxu0 %v1195
    %1207 = vmatprep.subr.mxu0 0.0
    %1208 = vmatpush1.msra.mxu0 0.0
    %1209 = vmatprep.subr.mxu0 0.0
    %1210 = vmatpush1.msra.mxu0 0.0
    %1211 = vmatprep.subr.mxu0 0.0
    %1212 = vmatpush1.msra.mxu0 0.0
    %1213 = vmatprep.subr.mxu0 0.0
    %1214 = vmatpush1.msra.mxu0 0.0
    %1215 = vmatprep.subr.mxu0 0.0
    %1216 = vmatpush1.msra.mxu0 0.0
    %1217 = vmatprep.subr.mxu0 0.0
    %1218 = vmatpush1.msra.mxu0 0.0
    %1219 = vmatprep.subr.mxu0 0.0
    %1220 = vmatpush1.msra.mxu0 0.0
    %1221 = vmatprep.subr.mxu0 0.0
    %1222 = vmatpush1.msra.mxu0 0.0
    %1223 = vmatprep.subr.mxu0 0.0
    %1224 = vmatpush1.msra.mxu0 0.0
    %1225 = vmatprep.subr.mxu0 0.0
    %1226 = vmatpush1.msra.mxu0 0.0
    %1227 = vmatprep.subr.mxu0 0.0
    %1228 = vmatpush1.msra.mxu0 0.0
    %1229 = vmatprep.subr.mxu0 0.0
    %1230 = vmatpush1.msra.mxu0 0.0
    %1231 = vmatprep.subr.mxu0 0.0
    %1232 = vmatpush1.msra.mxu0 0.0
    %1233 = vmatprep.subr.mxu0 0.0
    %1234 = vmatpush1.msra.mxu0 0.0
    %1235 = vmatprep.subr.mxu0 0.0
    %1236 = vmatpush1.msra.mxu0 0.0
    %1237 = vmatprep.subr.mxu0 0.0
    %1238 = vmatpush1.msra.mxu0 0.0
    %1239 = vmatprep.subr.mxu0 0.0
    %1240 = vmatpush1.msra.mxu0 0.0
    %1241 = vmatprep.subr.mxu0 0.0
    %1242 = vmatpush1.msra.mxu0 0.0
    %1243 = vmatprep.subr.mxu0 0.0
    %1244 = vmatpush1.msra.mxu0 0.0
    %1245 = vmatprep.subr.mxu0 0.0
    %1246 = vmatpush1.msra.mxu0 0.0
    %1247 = vmatprep.subr.mxu0 0.0
    %1248 = vmatpush1.msra.mxu0 0.0
    %1249 = vmatprep.subr.mxu0 0.0
    %1250 = vmatpush1.msra.mxu0 0.0
    %1251 = vmatprep.subr.mxu0 0.0
    %1252 = vmatpush1.msra.mxu0 0.0
    %1253 = vmatprep.subr.mxu0 0.0
    %1254 = vmatpush1.msra.mxu0 0.0
    %1255 = vmatprep.subr.mxu0 0.0
    %1256 = vmatpush1.msra.mxu0 0.0
    %1257 = vmatprep.subr.mxu0 0.0
    %1258 = vmatpush1.msra.mxu0 0.0
    %1259 = vmatprep.subr.mxu0 0.0
    %1260 = vmatpush1.msra.mxu0 0.0
    %1261 = vmatprep.subr.mxu0 0.0
    %1262 = vmatpush1.msra.mxu0 0.0
    %1263 = vmatprep.mubr.f32.mxu0 0.0
    %1264 = vmatmul.mubr.f32.gmra.mrb[0].mxu0 %v1197
    %v1265 = vpop.f32.mrb[0].mxu0
    %v1266 = vadd.f32 0.0, %v1265
    %v1267 = vpop.f32.mrb[0].mxu0
    %1268 = vdwg.mxu0
    %v1269 = vld [vmem:[#allocation5 + $0x98] sm:$0xff]
    %v1270 = vld [vmem:[#allocation5 + $0xa0] sm:$0xff]
    %1272 = vset.pattern.permute.xlu0 0
    %1273 = vperm.xlu0 %1272, %v1270
    %v1274 = vpop.permute.xlu0 %1273
    %vm1276 = vcmask 64512
    %v1278 = vsel %vm1276, %v1269, 0
    %1280 = vmatprep.subr.mxu0 0.0
    %1281 = vmatpush1.msra.mxu0 %v1266
    %1282 = vmatprep.subr.mxu0 0.0
    %1283 = vmatpush1.msra.mxu0 0.0
    %1284 = vmatprep.subr.mxu0 0.0
    %1285 = vmatpush1.msra.mxu0 0.0
    %1286 = vmatprep.subr.mxu0 0.0
    %1287 = vmatpush1.msra.mxu0 0.0
    %1288 = vmatprep.subr.mxu0 0.0
    %1289 = vmatpush1.msra.mxu0 0.0
    %1290 = vmatprep.subr.mxu0 0.0
    %1291 = vmatpush1.msra.mxu0 0.0
    %1292 = vmatprep.subr.mxu0 0.0
    %1293 = vmatpush1.msra.mxu0 0.0
    %1294 = vmatprep.subr.mxu0 0.0
    %1295 = vmatpush1.msra.mxu0 0.0
    %1296 = vmatprep.subr.mxu0 0.0
    %1297 = vmatpush1.msra.mxu0 0.0
    %1298 = vmatprep.subr.mxu0 0.0
    %1299 = vmatpush1.msra.mxu0 0.0
    %1300 = vmatprep.subr.mxu0 0.0
    %1301 = vmatpush1.msra.mxu0 0.0
    %1302 = vmatprep.subr.mxu0 0.0
    %1303 = vmatpush1.msra.mxu0 0.0
    %1304 = vmatprep.subr.mxu0 0.0
    %1305 = vmatpush1.msra.mxu0 0.0
    %1306 = vmatprep.subr.mxu0 0.0
    %1307 = vmatpush1.msra.mxu0 0.0
    %1308 = vmatprep.subr.mxu0 0.0
    %1309 = vmatpush1.msra.mxu0 0.0
    %1310 = vmatprep.subr.mxu0 0.0
    %1311 = vmatpush1.msra.mxu0 0.0
    %1312 = vmatprep.subr.mxu0 0.0
    %1313 = vmatpush1.msra.mxu0 0.0
    %1314 = vmatprep.subr.mxu0 0.0
    %1315 = vmatpush1.msra.mxu0 0.0
    %1316 = vmatprep.subr.mxu0 0.0
    %1317 = vmatpush1.msra.mxu0 0.0
    %1318 = vmatprep.subr.mxu0 0.0
    %1319 = vmatpush1.msra.mxu0 0.0
    %1320 = vmatprep.subr.mxu0 0.0
    %1321 = vmatpush1.msra.mxu0 0.0
    %1322 = vmatprep.subr.mxu0 0.0
    %1323 = vmatpush1.msra.mxu0 0.0
    %1324 = vmatprep.subr.mxu0 0.0
    %1325 = vmatpush1.msra.mxu0 0.0
    %1326 = vmatprep.subr.mxu0 0.0
    %1327 = vmatpush1.msra.mxu0 0.0
    %1328 = vmatprep.subr.mxu0 0.0
    %1329 = vmatpush1.msra.mxu0 0.0
    %1330 = vmatprep.subr.mxu0 0.0
    %1331 = vmatpush1.msra.mxu0 0.0
    %1332 = vmatprep.subr.mxu0 0.0
    %1333 = vmatpush1.msra.mxu0 0.0
    %1334 = vmatprep.subr.mxu0 0.0
    %1335 = vmatpush1.msra.mxu0 0.0
    %1336 = vmatprep.subr.mxu0 0.0
    %1337 = vmatpush1.msra.mxu0 0.0
    %1338 = vmatprep.subr.mxu0 0.0
    %1339 = vmatpush1.msra.mxu0 0.0
    %1340 = vmatprep.subr.mxu0 0.0
    %1341 = vmatpush1.msra.mxu0 0.0
    %1342 = vmatprep.subr.mxu0 0.0
    %1343 = vmatpush1.msra.mxu0 0.0
    %1344 = vmatprep.mubr.f32.mxu0 0.0
    %1345 = vmatmul.mubr.f32.gmra.mrb[0].mxu0 %v1278
    %v1346 = vpop.f32.mrb[0].mxu0
    %v1347 = vadd.f32 %v1274, %v1346
    %v1348 = vpop.f32.mrb[0].mxu0
    %1349 = vdwg.mxu0
    %v1350 = vmax.f32 %v1347, 0.0
    %v1351 = vld [vmem:[#allocation5 + $0xa8] sm:$0xff]
    %v1352 = vld [vmem:[#allocation5 + $0xb0] sm:$0xff]
    %1354 = vset.pattern.permute.xlu0 0
    %1355 = vperm.xlu0 %1354, %v1352
    %v1356 = vpop.permute.xlu0 %1355
    %v1359 = vsel %vm1276, %v1351, 0
    %1361 = vmatprep.subr.mxu0 0.0
    %1362 = vmatpush1.msra.mxu0 %v1350
    %1363 = vmatprep.subr.mxu0 0.0
    %1364 = vmatpush1.msra.mxu0 0.0
    %1365 = vmatprep.subr.mxu0 0.0
    %1366 = vmatpush1.msra.mxu0 0.0
    %1367 = vmatprep.subr.mxu0 0.0
    %1368 = vmatpush1.msra.mxu0 0.0
    %1369 = vmatprep.subr.mxu0 0.0
    %1370 = vmatpush1.msra.mxu0 0.0
    %1371 = vmatprep.subr.mxu0 0.0
    %1372 = vmatpush1.msra.mxu0 0.0
    %1373 = vmatprep.subr.mxu0 0.0
    %1374 = vmatpush1.msra.mxu0 0.0
    %1375 = vmatprep.subr.mxu0 0.0
    %1376 = vmatpush1.msra.mxu0 0.0
    %1377 = vmatprep.subr.mxu0 0.0
    %1378 = vmatpush1.msra.mxu0 0.0
    %1379 = vmatprep.subr.mxu0 0.0
    %1380 = vmatpush1.msra.mxu0 0.0
    %1381 = vmatprep.subr.mxu0 0.0
    %1382 = vmatpush1.msra.mxu0 0.0
    %1383 = vmatprep.subr.mxu0 0.0
    %1384 = vmatpush1.msra.mxu0 0.0
    %1385 = vmatprep.subr.mxu0 0.0
    %1386 = vmatpush1.msra.mxu0 0.0
    %1387 = vmatprep.subr.mxu0 0.0
    %1388 = vmatpush1.msra.mxu0 0.0
    %1389 = vmatprep.subr.mxu0 0.0
    %1390 = vmatpush1.msra.mxu0 0.0
    %1391 = vmatprep.subr.mxu0 0.0
    %1392 = vmatpush1.msra.mxu0 0.0
    %1393 = vmatprep.subr.mxu0 0.0
    %1394 = vmatpush1.msra.mxu0 0.0
    %1395 = vmatprep.subr.mxu0 0.0
    %1396 = vmatpush1.msra.mxu0 0.0
    %1397 = vmatprep.subr.mxu0 0.0
    %1398 = vmatpush1.msra.mxu0 0.0
    %1399 = vmatprep.subr.mxu0 0.0
    %1400 = vmatpush1.msra.mxu0 0.0
    %1401 = vmatprep.subr.mxu0 0.0
    %1402 = vmatpush1.msra.mxu0 0.0
    %1403 = vmatprep.subr.mxu0 0.0
    %1404 = vmatpush1.msra.mxu0 0.0
    %1405 = vmatprep.subr.mxu0 0.0
    %1406 = vmatpush1.msra.mxu0 0.0
    %1407 = vmatprep.subr.mxu0 0.0
    %1408 = vmatpush1.msra.mxu0 0.0
    %1409 = vmatprep.subr.mxu0 0.0
    %1410 = vmatpush1.msra.mxu0 0.0
    %1411 = vmatprep.subr.mxu0 0.0
    %1412 = vmatpush1.msra.mxu0 0.0
    %1413 = vmatprep.subr.mxu0 0.0
    %1414 = vmatpush1.msra.mxu0 0.0
    %1415 = vmatprep.subr.mxu0 0.0
    %1416 = vmatpush1.msra.mxu0 0.0
    %1417 = vmatprep.subr.mxu0 0.0
    %1418 = vmatpush1.msra.mxu0 0.0
    %1419 = vmatprep.subr.mxu0 0.0
    %1420 = vmatpush1.msra.mxu0 0.0
    %1421 = vmatprep.subr.mxu0 0.0
    %1422 = vmatpush1.msra.mxu0 0.0
    %1423 = vmatprep.subr.mxu0 0.0
    %1424 = vmatpush1.msra.mxu0 0.0
    %1425 = vmatprep.mubr.f32.mxu0 0.0
    %1426 = vmatmul.mubr.f32.gmra.mrb[0].mxu0 %v1359
    %v1427 = vpop.f32.mrb[0].mxu0
    %v1428 = vadd.f32 %v1356, %v1427
    %v1429 = vpop.f32.mrb[0].mxu0
    %1430 = vdwg.mxu0
    %v1431 = vxor.u32 %v1428, 2147483648
    %v1432 = vmul.f32 %v1431, 1.442695
    %v1433 = vpow.pop %v1432
    %v1434 = vadd.f32 %v1433, 1.0
    %v1435 = vrcp.pop %v1434
    %v1436 = vmul.f32 1.0, %v1435
    %v1437 = vld [vmem:[#allocation5 + $0xd8] sm:$0xff]
    %v1439 = vsel %vm1276, %v1436, 0
    %1441 = vmatprep.subr.mxu0 0.0
    %1442 = vmatpush1.msra.mxu0 %v1437
    %1443 = vmatprep.subr.mxu0 0.0
    %1444 = vmatpush1.msra.mxu0 0.0
    %1445 = vmatprep.subr.mxu0 0.0
    %1446 = vmatpush1.msra.mxu0 0.0
    %1447 = vmatprep.subr.mxu0 0.0
    %1448 = vmatpush1.msra.mxu0 0.0
    %1449 = vmatprep.subr.mxu0 0.0
    %1450 = vmatpush1.msra.mxu0 0.0
    %1451 = vmatprep.subr.mxu0 0.0
    %1452 = vmatpush1.msra.mxu0 0.0
    %1453 = vmatprep.subr.mxu0 0.0
    %1454 = vmatpush1.msra.mxu0 0.0
    %1455 = vmatprep.subr.mxu0 0.0
    %1456 = vmatpush1.msra.mxu0 0.0
    %1457 = vmatprep.subr.mxu0 0.0
    %1458 = vmatpush1.msra.mxu0 0.0
    %1459 = vmatprep.subr.mxu0 0.0
    %1460 = vmatpush1.msra.mxu0 0.0
    %1461 = vmatprep.subr.mxu0 0.0
    %1462 = vmatpush1.msra.mxu0 0.0
    %1463 = vmatprep.subr.mxu0 0.0
    %1464 = vmatpush1.msra.mxu0 0.0
    %1465 = vmatprep.subr.mxu0 0.0
    %1466 = vmatpush1.msra.mxu0 0.0
    %1467 = vmatprep.subr.mxu0 0.0
    %1468 = vmatpush1.msra.mxu0 0.0
    %1469 = vmatprep.subr.mxu0 0.0
    %1470 = vmatpush1.msra.mxu0 0.0
    %1471 = vmatprep.subr.mxu0 0.0
    %1472 = vmatpush1.msra.mxu0 0.0
    %1473 = vmatprep.subr.mxu0 0.0
    %1474 = vmatpush1.msra.mxu0 0.0
    %1475 = vmatprep.subr.mxu0 0.0
    %1476 = vmatpush1.msra.mxu0 0.0
    %1477 = vmatprep.subr.mxu0 0.0
    %1478 = vmatpush1.msra.mxu0 0.0
    %1479 = vmatprep.subr.mxu0 0.0
    %1480 = vmatpush1.msra.mxu0 0.0
    %1481 = vmatprep.subr.mxu0 0.0
    %1482 = vmatpush1.msra.mxu0 0.0
    %1483 = vmatprep.subr.mxu0 0.0
    %1484 = vmatpush1.msra.mxu0 0.0
    %1485 = vmatprep.subr.mxu0 0.0
    %1486 = vmatpush1.msra.mxu0 0.0
    %1487 = vmatprep.subr.mxu0 0.0
    %1488 = vmatpush1.msra.mxu0 0.0
    %1489 = vmatprep.subr.mxu0 0.0
    %1490 = vmatpush1.msra.mxu0 0.0
    %1491 = vmatprep.subr.mxu0 0.0
    %1492 = vmatpush1.msra.mxu0 0.0
    %1493 = vmatprep.subr.mxu0 0.0
    %1494 = vmatpush1.msra.mxu0 0.0
    %1495 = vmatprep.subr.mxu0 0.0
    %1496 = vmatpush1.msra.mxu0 0.0
    %1497 = vmatprep.subr.mxu0 0.0
    %1498 = vmatpush1.msra.mxu0 0.0
    %1499 = vmatprep.subr.mxu0 0.0
    %1500 = vmatpush1.msra.mxu0 0.0
    %1501 = vmatprep.subr.mxu0 0.0
    %1502 = vmatpush1.msra.mxu0 0.0
    %1503 = vmatprep.subr.mxu0 0.0
    %1504 = vmatpush1.msra.mxu0 0.0
    %1505 = vmatprep.mubr.f32.mxu0 0.0
    %1506 = vmatmul.mubr.f32.gmra.mrb[0].mxu0 %v1439
    %v1507 = vpop.f32.mrb[0].mxu0
    %v1508 = vadd.f32 0.0, %v1507
    %v1509 = vpop.f32.mrb[0].mxu0
    %1510 = vdwg.mxu0
    %v1511 = vmul.f32 %v1191, %v1508
    %v1512 = vadd.f32 %v1511, %v424
    %v1513 = vmul.f32 %v1512, 0.5
    %v1514 = vmul.f32 %v1512, 0.70710677
    %v1515 = verf.f32.pop %v1514
    %v1516 = vadd.f32 %v1515, 1.0
    %v1517 = vmul.f32 %v1513, %v1516
    %v1518 = vsel %vm43, %v1517, 0.0
    %1519 = vst [vmem:[#allocation7] sm:$0xff] %v1518
    %v1520 = vld [vmem:[#allocation5 + $0x8] sm:$0xff]
    %v1521 = vld [vmem:[#allocation5 + $0x10] sm:$0xff]
    %v1522 = vld [vmem:[#allocation5 + $0x18] sm:$0xff]
    %v1523 = vld [vmem:[#allocation5 + $0x20] sm:$0xff]
    %v1525 = vsel %vm43, %v1517, 0
    %1527 = vmatprep.subr.mxu0 0.0
    %1528 = vmatpush1.msra.mxu0 %v1520
    %1529 = vmatprep.subr.mxu0 0.0
    %1530 = vmatpush1.msra.mxu0 %v1521
    %1531 = vmatprep.subr.mxu0 0.0
    %1532 = vmatpush1.msra.mxu0 %v1522
    %1533 = vmatprep.subr.mxu0 0.0
    %1534 = vmatpush1.msra.mxu0 %v1523
    %1535 = vmatprep.subr.mxu0 0.0
    %1536 = vmatpush1.msra.mxu0 0.0
    %1537 = vmatprep.subr.mxu0 0.0
    %1538 = vmatpush1.msra.mxu0 0.0
    %1539 = vmatprep.subr.mxu0 0.0
    %1540 = vmatpush1.msra.mxu0 0.0
    %1541 = vmatprep.subr.mxu0 0.0
    %1542 = vmatpush1.msra.mxu0 0.0
    %1543 = vmatprep.subr.mxu0 0.0
    %1544 = vmatpush1.msra.mxu0 0.0
    %1545 = vmatprep.subr.mxu0 0.0
    %1546 = vmatpush1.msra.mxu0 0.0
    %1547 = vmatprep.subr.mxu0 0.0
    %1548 = vmatpush1.msra.mxu0 0.0
    %1549 = vmatprep.subr.mxu0 0.0
    %1550 = vmatpush1.msra.mxu0 0.0
    %1551 = vmatprep.subr.mxu0 0.0
    %1552 = vmatpush1.msra.mxu0 0.0
    %1553 = vmatprep.subr.mxu0 0.0
    %1554 = vmatpush1.msra.mxu0 0.0
    %1555 = vmatprep.subr.mxu0 0.0
    %1556 = vmatpush1.msra.mxu0 0.0
    %1557 = vmatprep.subr.mxu0 0.0
    %1558 = vmatpush1.msra.mxu0 0.0
    %1559 = vmatprep.subr.mxu0 0.0
    %1560 = vmatpush1.msra.mxu0 0.0
    %1561 = vmatprep.subr.mxu0 0.0
    %1562 = vmatpush1.msra.mxu0 0.0
    %1563 = vmatprep.subr.mxu0 0.0
    %1564 = vmatpush1.msra.mxu0 0.0
    %1565 = vmatprep.subr.mxu0 0.0
    %1566 = vmatpush1.msra.mxu0 0.0
    %1567 = vmatprep.subr.mxu0 0.0
    %1568 = vmatpush1.msra.mxu0 0.0
    %1569 = vmatprep.subr.mxu0 0.0
    %1570 = vmatpush1.msra.mxu0 0.0
    %1571 = vmatprep.subr.mxu0 0.0
    %1572 = vmatpush1.msra.mxu0 0.0
    %1573 = vmatprep.subr.mxu0 0.0
    %1574 = vmatpush1.msra.mxu0 0.0
    %1575 = vmatprep.subr.mxu0 0.0
    %1576 = vmatpush1.msra.mxu0 0.0
    %1577 = vmatprep.subr.mxu0 0.0
    %1578 = vmatpush1.msra.mxu0 0.0
    %1579 = vmatprep.subr.mxu0 0.0
    %1580 = vmatpush1.msra.mxu0 0.0
    %1581 = vmatprep.subr.mxu0 0.0
    %1582 = vmatpush1.msra.mxu0 0.0
    %1583 = vmatprep.subr.mxu0 0.0
    %1584 = vmatpush1.msra.mxu0 0.0
    %1585 = vmatprep.subr.mxu0 0.0
    %1586 = vmatpush1.msra.mxu0 0.0
    %1587 = vmatprep.subr.mxu0 0.0
    %1588 = vmatpush1.msra.mxu0 0.0
    %1589 = vmatprep.subr.mxu0 0.0
    %1590 = vmatpush1.msra.mxu0 0.0
    %1591 = vmatprep.mubr.f32.mxu0 0.0
    %1592 = vmatmul.mubr.f32.gmra.mrb[0].mxu0 %v1525
    %v1593 = vpop.f32.mrb[0].mxu0
    %v1594 = vadd.f32 0.0, %v1593
    %v1595 = vpop.f32.mrb[0].mxu0
    %1596 = vdwg.mxu0
    %v1597 = vld [vmem:[#allocation5 + $0x28] sm:$0xff]
    %v1598 = vld [vmem:[#allocation5 + $0x30] sm:$0xff]
    %v1599 = vld [vmem:[#allocation5 + $0x38] sm:$0xff]
    %v1600 = vld [vmem:[#allocation5 + $0x40] sm:$0xff]
    %1601 = vmatprep.subr.mxu0 0.0
    %1602 = vmatpush1.msra.mxu0 %v1597
    %1603 = vmatprep.subr.mxu0 0.0
    %1604 = vmatpush1.msra.mxu0 %v1598
    %1605 = vmatprep.subr.mxu0 0.0
    %1606 = vmatpush1.msra.mxu0 %v1599
    %1607 = vmatprep.subr.mxu0 0.0
    %1608 = vmatpush1.msra.mxu0 %v1600
    %1609 = vmatprep.subr.mxu0 0.0
    %1610 = vmatpush1.msra.mxu0 0.0
    %1611 = vmatprep.subr.mxu0 0.0
    %1612 = vmatpush1.msra.mxu0 0.0
    %1613 = vmatprep.subr.mxu0 0.0
    %1614 = vmatpush1.msra.mxu0 0.0
    %1615 = vmatprep.subr.mxu0 0.0
    %1616 = vmatpush1.msra.mxu0 0.0
    %1617 = vmatprep.subr.mxu0 0.0
    %1618 = vmatpush1.msra.mxu0 0.0
    %1619 = vmatprep.subr.mxu0 0.0
    %1620 = vmatpush1.msra.mxu0 0.0
    %1621 = vmatprep.subr.mxu0 0.0
    %1622 = vmatpush1.msra.mxu0 0.0
    %1623 = vmatprep.subr.mxu0 0.0
    %1624 = vmatpush1.msra.mxu0 0.0
    %1625 = vmatprep.subr.mxu0 0.0
    %1626 = vmatpush1.msra.mxu0 0.0
    %1627 = vmatprep.subr.mxu0 0.0
    %1628 = vmatpush1.msra.mxu0 0.0
    %1629 = vmatprep.subr.mxu0 0.0
    %1630 = vmatpush1.msra.mxu0 0.0
    %1631 = vmatprep.subr.mxu0 0.0
    %1632 = vmatpush1.msra.mxu0 0.0
    %1633 = vmatprep.subr.mxu0 0.0
    %1634 = vmatpush1.msra.mxu0 0.0
    %1635 = vmatprep.subr.mxu0 0.0
    %1636 = vmatpush1.msra.mxu0 0.0
    %1637 = vmatprep.subr.mxu0 0.0
    %1638 = vmatpush1.msra.mxu0 0.0
    %1639 = vmatprep.subr.mxu0 0.0
    %1640 = vmatpush1.msra.mxu0 0.0
    %1641 = vmatprep.subr.mxu0 0.0
    %1642 = vmatpush1.msra.mxu0 0.0
    %1643 = vmatprep.subr.mxu0 0.0
    %1644 = vmatpush1.msra.mxu0 0.0
    %1645 = vmatprep.subr.mxu0 0.0
    %1646 = vmatpush1.msra.mxu0 0.0
    %1647 = vmatprep.subr.mxu0 0.0
    %1648 = vmatpush1.msra.mxu0 0.0
    %1649 = vmatprep.subr.mxu0 0.0
    %1650 = vmatpush1.msra.mxu0 0.0
    %1651 = vmatprep.subr.mxu0 0.0
    %1652 = vmatpush1.msra.mxu0 0.0
    %1653 = vmatprep.subr.mxu0 0.0
    %1654 = vmatpush1.msra.mxu0 0.0
    %1655 = vmatprep.subr.mxu0 0.0
    %1656 = vmatpush1.msra.mxu0 0.0
    %1657 = vmatprep.subr.mxu0 0.0
    %1658 = vmatpush1.msra.mxu0 0.0
    %1659 = vmatprep.subr.mxu0 0.0
    %1660 = vmatpush1.msra.mxu0 0.0
    %1661 = vmatprep.subr.mxu0 0.0
    %1662 = vmatpush1.msra.mxu0 0.0
    %1663 = vmatprep.subr.mxu0 0.0
    %1664 = vmatpush1.msra.mxu0 0.0
    %1665 = vmatprep.mubr.f32.mxu0 0.0
    %1666 = vmatmul.mubr.f32.gmra.mrb[0].mxu0 %v1525
    %v1667 = vpop.f32.mrb[0].mxu0
    %v1668 = vadd.f32 0.0, %v1667
    %v1669 = vpop.f32.mrb[0].mxu0
    %1670 = vdwg.mxu0
    %v1671 = vld [vmem:[#allocation5 + $0xe0] sm:$0xff]
    %v1672 = vld [vmem:[#allocation5 + $0xe8] sm:$0xff]
    %v1674 = vsel %vm192, %v1671, 0
    %v1677 = vsel %vm192, %v1672, 0
    %1679 = vmatprep.subr.mxu0 0.0
    %1680 = vmatpush1.msra.mxu0 %v1594
    %1681 = vmatprep.subr.mxu0 0.0
    %1682 = vmatpush1.msra.mxu0 %v1517
    %1683 = vmatprep.subr.mxu0 0.0
    %1684 = vmatpush1.msra.mxu0 %v1668
    %1685 = vmatprep.subr.mxu0 0.0
    %1686 = vmatpush1.msra.mxu0 0.0
    %1687 = vmatprep.subr.mxu0 0.0
    %1688 = vmatpush1.msra.mxu0 0.0
    %1689 = vmatprep.subr.mxu0 0.0
    %1690 = vmatpush1.msra.mxu0 0.0
    %1691 = vmatprep.subr.mxu0 0.0
    %1692 = vmatpush1.msra.mxu0 0.0
    %1693 = vmatprep.subr.mxu0 0.0
    %1694 = vmatpush1.msra.mxu0 0.0
    %1695 = vmatprep.subr.mxu0 0.0
    %1696 = vmatpush1.msra.mxu0 0.0
    %1697 = vmatprep.subr.mxu0 0.0
    %1698 = vmatpush1.msra.mxu0 0.0
    %1699 = vmatprep.subr.mxu0 0.0
    %1700 = vmatpush1.msra.mxu0 0.0
    %1701 = vmatprep.subr.mxu0 0.0
    %1702 = vmatpush1.msra.mxu0 0.0
    %1703 = vmatprep.subr.mxu0 0.0
    %1704 = vmatpush1.msra.mxu0 0.0
    %1705 = vmatprep.subr.mxu0 0.0
    %1706 = vmatpush1.msra.mxu0 0.0
    %1707 = vmatprep.subr.mxu0 0.0
    %1708 = vmatpush1.msra.mxu0 0.0
    %1709 = vmatprep.subr.mxu0 0.0
    %1710 = vmatpush1.msra.mxu0 0.0
    %1711 = vmatprep.subr.mxu0 0.0
    %1712 = vmatpush1.msra.mxu0 0.0
    %1713 = vmatprep.subr.mxu0 0.0
    %1714 = vmatpush1.msra.mxu0 0.0
    %1715 = vmatprep.subr.mxu0 0.0
    %1716 = vmatpush1.msra.mxu0 0.0
    %1717 = vmatprep.subr.mxu0 0.0
    %1718 = vmatpush1.msra.mxu0 0.0
    %1719 = vmatprep.subr.mxu0 0.0
    %1720 = vmatpush1.msra.mxu0 0.0
    %1721 = vmatprep.subr.mxu0 0.0
    %1722 = vmatpush1.msra.mxu0 0.0
    %1723 = vmatprep.subr.mxu0 0.0
    %1724 = vmatpush1.msra.mxu0 0.0
    %1725 = vmatprep.subr.mxu0 0.0
    %1726 = vmatpush1.msra.mxu0 0.0
    %1727 = vmatprep.subr.mxu0 0.0
    %1728 = vmatpush1.msra.mxu0 0.0
    %1729 = vmatprep.subr.mxu0 0.0
    %1730 = vmatpush1.msra.mxu0 0.0
    %1731 = vmatprep.subr.mxu0 0.0
    %1732 = vmatpush1.msra.mxu0 0.0
    %1733 = vmatprep.subr.mxu0 0.0
    %1734 = vmatpush1.msra.mxu0 0.0
    %1735 = vmatprep.subr.mxu0 0.0
    %1736 = vmatpush1.msra.mxu0 0.0
    %1737 = vmatprep.subr.mxu0 0.0
    %1738 = vmatpush1.msra.mxu0 0.0
    %1739 = vmatprep.subr.mxu0 0.0
    %1740 = vmatpush1.msra.mxu0 0.0
    %1741 = vmatprep.subr.mxu0 0.0
    %1742 = vmatpush1.msra.mxu0 0.0
    %1743 = vmatprep.mubr.f32.mxu0 0.0
    %1744 = vmatmul.mubr.f32.gmra.mrb[0].mxu0 %v1674
    %v1745 = vpop.f32.mrb[0].mxu0
    %v1746 = vadd.f32 0.0, %v1745
    %v1747 = vpop.f32.mrb[0].mxu0
    %1748 = vmatprep.mubr.f32.mxu0 0.0
    %1749 = vmatmul.mubr.f32.gmra.mrb[0].mxu0 %v1677
    %v1750 = vpop.f32.mrb[0].mxu0
    %v1751 = vadd.f32 0.0, %v1750
    %v1752 = vpop.f32.mrb[0].mxu0
    %1753 = vdwg.mxu0
    %v1754 = vld [vmem:[#allocation5 + $0x48] sm:$0xff]
    %v1755 = vld [vmem:[#allocation5 + $0x50] sm:$0xff]
    %v1756 = vld [vmem:[#allocation5 + $0x58] sm:$0xff]
    %v1757 = vld [vmem:[#allocation5 + $0x60] sm:$0xff]
    %v1759 = vsel %vm43, %v1746, 0
    %v1762 = vsel %vm43, %v1751, 0
    %1764 = vmatprep.subr.mxu0 0.0
    %1765 = vmatpush1.msra.mxu0 %v1754
    %1766 = vmatprep.subr.mxu0 0.0
    %1767 = vmatpush1.msra.mxu0 %v1755
    %1768 = vmatprep.subr.mxu0 0.0
    %1769 = vmatpush1.msra.mxu0 %v1756
    %1770 = vmatprep.subr.mxu0 0.0
    %1771 = vmatpush1.msra.mxu0 %v1757
    %1772 = vmatprep.subr.mxu0 0.0
    %1773 = vmatpush1.msra.mxu0 0.0
    %1774 = vmatprep.subr.mxu0 0.0
    %1775 = vmatpush1.msra.mxu0 0.0
    %1776 = vmatprep.subr.mxu0 0.0
    %1777 = vmatpush1.msra.mxu0 0.0
    %1778 = vmatprep.subr.mxu0 0.0
    %1779 = vmatpush1.msra.mxu0 0.0
    %1780 = vmatprep.subr.mxu0 0.0
    %1781 = vmatpush1.msra.mxu0 0.0
    %1782 = vmatprep.subr.mxu0 0.0
    %1783 = vmatpush1.msra.mxu0 0.0
    %1784 = vmatprep.subr.mxu0 0.0
    %1785 = vmatpush1.msra.mxu0 0.0
    %1786 = vmatprep.subr.mxu0 0.0
    %1787 = vmatpush1.msra.mxu0 0.0
    %1788 = vmatprep.subr.mxu0 0.0
    %1789 = vmatpush1.msra.mxu0 0.0
    %1790 = vmatprep.subr.mxu0 0.0
    %1791 = vmatpush1.msra.mxu0 0.0
    %1792 = vmatprep.subr.mxu0 0.0
    %1793 = vmatpush1.msra.mxu0 0.0
    %1794 = vmatprep.subr.mxu0 0.0
    %1795 = vmatpush1.msra.mxu0 0.0
    %1796 = vmatprep.subr.mxu0 0.0
    %1797 = vmatpush1.msra.mxu0 0.0
    %1798 = vmatprep.subr.mxu0 0.0
    %1799 = vmatpush1.msra.mxu0 0.0
    %1800 = vmatprep.subr.mxu0 0.0
    %1801 = vmatpush1.msra.mxu0 0.0
    %1802 = vmatprep.subr.mxu0 0.0
    %1803 = vmatpush1.msra.mxu0 0.0
    %1804 = vmatprep.subr.mxu0 0.0
    %1805 = vmatpush1.msra.mxu0 0.0
    %1806 = vmatprep.subr.mxu0 0.0
    %1807 = vmatpush1.msra.mxu0 0.0
    %1808 = vmatprep.subr.mxu0 0.0
    %1809 = vmatpush1.msra.mxu0 0.0
    %1810 = vmatprep.subr.mxu0 0.0
    %1811 = vmatpush1.msra.mxu0 0.0
    %1812 = vmatprep.subr.mxu0 0.0
    %1813 = vmatpush1.msra.mxu0 0.0
    %1814 = vmatprep.subr.mxu0 0.0
    %1815 = vmatpush1.msra.mxu0 0.0
    %1816 = vmatprep.subr.mxu0 0.0
    %1817 = vmatpush1.msra.mxu0 0.0
    %1818 = vmatprep.subr.mxu0 0.0
    %1819 = vmatpush1.msra.mxu0 0.0
    %1820 = vmatprep.subr.mxu0 0.0
    %1821 = vmatpush1.msra.mxu0 0.0
    %1822 = vmatprep.subr.mxu0 0.0
    %1823 = vmatpush1.msra.mxu0 0.0
    %1824 = vmatprep.subr.mxu0 0.0
    %1825 = vmatpush1.msra.mxu0 0.0
    %1826 = vmatprep.subr.mxu0 0.0
    %1827 = vmatpush1.msra.mxu0 0.0
    %1828 = vmatprep.mubr.f32.mxu0 0.0
    %1829 = vmatmul.mubr.f32.gmra.mrb[0].mxu0 %v1759
    %v1830 = vpop.f32.mrb[0].mxu0
    %v1831 = vadd.f32 0.0, %v1830
    %v1832 = vpop.f32.mrb[0].mxu0
    %1833 = vmatprep.mubr.f32.mxu0 0.0
    %1834 = vmatmul.mubr.f32.gmra.mrb[0].mxu0 %v1762
    %v1835 = vpop.f32.mrb[0].mxu0
    %v1836 = vadd.f32 0.0, %v1835
    %v1837 = vpop.f32.mrb[0].mxu0
    %1838 = vdwg.mxu0
    %v1839 = vsub.f32 %v1746, %v1831
    %v1840 = vsub.f32 %v1751, %v1836
    %v1841 = vmul.f32 %v1839, %v1839
    %v1842 = vmul.f32 %v1840, %v1840
    %v1844 = vsel %vm43, %v1841, 0
    %v1847 = vsel %vm43, %v1842, 0
    %1849 = vmatprep.subr.mxu0 0.0
    %1850 = vmatpush1.msra.mxu0 %v1754
    %1851 = vmatprep.subr.mxu0 0.0
    %1852 = vmatpush1.msra.mxu0 %v1755
    %1853 = vmatprep.subr.mxu0 0.0
    %1854 = vmatpush1.msra.mxu0 %v1756
    %1855 = vmatprep.subr.mxu0 0.0
    %1856 = vmatpush1.msra.mxu0 %v1757
    %1857 = vmatprep.subr.mxu0 0.0
    %1858 = vmatpush1.msra.mxu0 0.0
    %1859 = vmatprep.subr.mxu0 0.0
    %1860 = vmatpush1.msra.mxu0 0.0
    %1861 = vmatprep.subr.mxu0 0.0
    %1862 = vmatpush1.msra.mxu0 0.0
    %1863 = vmatprep.subr.mxu0 0.0
    %1864 = vmatpush1.msra.mxu0 0.0
    %1865 = vmatprep.subr.mxu0 0.0
    %1866 = vmatpush1.msra.mxu0 0.0
    %1867 = vmatprep.subr.mxu0 0.0
    %1868 = vmatpush1.msra.mxu0 0.0
    %1869 = vmatprep.subr.mxu0 0.0
    %1870 = vmatpush1.msra.mxu0 0.0
    %1871 = vmatprep.subr.mxu0 0.0
    %1872 = vmatpush1.msra.mxu0 0.0
    %1873 = vmatprep.subr.mxu0 0.0
    %1874 = vmatpush1.msra.mxu0 0.0
    %1875 = vmatprep.subr.mxu0 0.0
    %1876 = vmatpush1.msra.mxu0 0.0
    %1877 = vmatprep.subr.mxu0 0.0
    %1878 = vmatpush1.msra.mxu0 0.0
    %1879 = vmatprep.subr.mxu0 0.0
    %1880 = vmatpush1.msra.mxu0 0.0
    %1881 = vmatprep.subr.mxu0 0.0
    %1882 = vmatpush1.msra.mxu0 0.0
    %1883 = vmatprep.subr.mxu0 0.0
    %1884 = vmatpush1.msra.mxu0 0.0
    %1885 = vmatprep.subr.mxu0 0.0
    %1886 = vmatpush1.msra.mxu0 0.0
    %1887 = vmatprep.subr.mxu0 0.0
    %1888 = vmatpush1.msra.mxu0 0.0
    %1889 = vmatprep.subr.mxu0 0.0
    %1890 = vmatpush1.msra.mxu0 0.0
    %1891 = vmatprep.subr.mxu0 0.0
    %1892 = vmatpush1.msra.mxu0 0.0
    %1893 = vmatprep.subr.mxu0 0.0
    %1894 = vmatpush1.msra.mxu0 0.0
    %1895 = vmatprep.subr.mxu0 0.0
    %1896 = vmatpush1.msra.mxu0 0.0
    %1897 = vmatprep.subr.mxu0 0.0
    %1898 = vmatpush1.msra.mxu0 0.0
    %1899 = vmatprep.subr.mxu0 0.0
    %1900 = vmatpush1.msra.mxu0 0.0
    %1901 = vmatprep.subr.mxu0 0.0
    %1902 = vmatpush1.msra.mxu0 0.0
    %1903 = vmatprep.subr.mxu0 0.0
    %1904 = vmatpush1.msra.mxu0 0.0
    %1905 = vmatprep.subr.mxu0 0.0
    %1906 = vmatpush1.msra.mxu0 0.0
    %1907 = vmatprep.subr.mxu0 0.0
    %1908 = vmatpush1.msra.mxu0 0.0
    %1909 = vmatprep.subr.mxu0 0.0
    %1910 = vmatpush1.msra.mxu0 0.0
    %1911 = vmatprep.subr.mxu0 0.0
    %1912 = vmatpush1.msra.mxu0 0.0
    %1913 = vmatprep.mubr.f32.mxu0 0.0
    %1914 = vmatmul.mubr.f32.gmra.mrb[0].mxu0 %v1844
    %v1915 = vpop.f32.mrb[0].mxu0
    %v1916 = vadd.f32 1e-05, %v1915
    %v1917 = vpop.f32.mrb[0].mxu0
    %1918 = vmatprep.mubr.f32.mxu0 0.0
    %1919 = vmatmul.mubr.f32.gmra.mrb[0].mxu0 %v1847
    %v1920 = vpop.f32.mrb[0].mxu0
    %v1921 = vadd.f32 1e-05, %v1920
    %v1922 = vpop.f32.mrb[0].mxu0
    %1923 = vdwg.mxu0
    %v1924 = vrsqrt.pop %v1916
    %v1925 = vrsqrt.pop %v1921
    %v1926 = vmul.f32 %v1839, %v1924
    %v1927 = vmul.f32 %v1840, %v1925
    %v1928 = vld [vmem:[#allocation5 + $0xf0] sm:$0xff]
    %v1929 = vld [vmem:[#allocation5 + $0xf8] sm:$0xff]
    %1931 = vset.pattern.permute.xlu0 0
    %1932 = vperm.xlu0 %1931, %v1928
    %v1933 = vpop.permute.xlu0 %1932
    %1936 = vset.pattern.permute.xlu0 0
    %1937 = vperm.xlu0 %1936, %v1929
    %v1938 = vpop.permute.xlu0 %1937
    %v1940 = vmul.f32 %v1926, %v1933
    %v1941 = vmul.f32 %v1927, %v1938
    %v1942 = vld [vmem:[#allocation5 + $0x100] sm:$0xff]
    %v1943 = vld [vmem:[#allocation5 + $0x108] sm:$0xff]
    %1945 = vset.pattern.permute.xlu0 0
    %1946 = vperm.xlu0 %1945, %v1942
    %v1947 = vpop.permute.xlu0 %1946
    %1950 = vset.pattern.permute.xlu0 0
    %1951 = vperm.xlu0 %1950, %v1943
    %v1952 = vpop.permute.xlu0 %1951
    %v1954 = vadd.f32 %v1940, %v1947
    %v1955 = vadd.f32 %v1941, %v1952
    %v1956 = vmul.f32 %v1954, 0.5
    %v1957 = vmul.f32 %v1955, 0.5
    %v1958 = vmul.f32 %v1954, 0.70710677
    %v1959 = vmul.f32 %v1955, 0.70710677
    %v1960 = verf.f32.pop %v1958
    %v1961 = verf.f32.pop %v1959
    %v1962 = vadd.f32 %v1960, 1.0
    %v1963 = vadd.f32 %v1961, 1.0
    %v1964 = vmul.f32 %v1956, %v1962
    %v1965 = vmul.f32 %v1957, %v1963
    %v1966 = vld [vmem:[#allocation5 + $0x170] sm:$0xff]
    %v1967 = vld [vmem:[#allocation5 + $0x178] sm:$0xff]
    %v1968 = vld [vmem:[#allocation5 + $0x180] sm:$0xff]
    %v1969 = vld [vmem:[#allocation5 + $0x188] sm:$0xff]
    %v1971 = vsel %vm43, %v1964, 0
    %v1974 = vsel %vm43, %v1965, 0
    %1976 = vmatprep.subr.mxu0 0.0
    %1977 = vmatpush1.msra.mxu0 %v1966
    %1978 = vmatprep.subr.mxu0 0.0
    %1979 = vmatpush1.msra.mxu0 %v1967
    %1980 = vmatprep.subr.mxu0 0.0
    %1981 = vmatpush1.msra.mxu0 %v1968
    %1982 = vmatprep.subr.mxu0 0.0
    %1983 = vmatpush1.msra.mxu0 %v1969
    %1984 = vmatprep.subr.mxu0 0.0
    %1985 = vmatpush1.msra.mxu0 0.0
    %1986 = vmatprep.subr.mxu0 0.0
    %1987 = vmatpush1.msra.mxu0 0.0
    %1988 = vmatprep.subr.mxu0 0.0
    %1989 = vmatpush1.msra.mxu0 0.0
    %1990 = vmatprep.subr.mxu0 0.0
    %1991 = vmatpush1.msra.mxu0 0.0
    %1992 = vmatprep.subr.mxu0 0.0
    %1993 = vmatpush1.msra.mxu0 0.0
    %1994 = vmatprep.subr.mxu0 0.0
    %1995 = vmatpush1.msra.mxu0 0.0
    %1996 = vmatprep.subr.mxu0 0.0
    %1997 = vmatpush1.msra.mxu0 0.0
    %1998 = vmatprep.subr.mxu0 0.0
    %1999 = vmatpush1.msra.mxu0 0.0
    %2000 = vmatprep.subr.mxu0 0.0
    %2001 = vmatpush1.msra.mxu0 0.0
    %2002 = vmatprep.subr.mxu0 0.0
    %2003 = vmatpush1.msra.mxu0 0.0
    %2004 = vmatprep.subr.mxu0 0.0
    %2005 = vmatpush1.msra.mxu0 0.0
    %2006 = vmatprep.subr.mxu0 0.0
    %2007 = vmatpush1.msra.mxu0 0.0
    %2008 = vmatprep.subr.mxu0 0.0
    %2009 = vmatpush1.msra.mxu0 0.0
    %2010 = vmatprep.subr.mxu0 0.0
    %2011 = vmatpush1.msra.mxu0 0.0
    %2012 = vmatprep.subr.mxu0 0.0
    %2013 = vmatpush1.msra.mxu0 0.0
    %2014 = vmatprep.subr.mxu0 0.0
    %2015 = vmatpush1.msra.mxu0 0.0
    %2016 = vmatprep.subr.mxu0 0.0
    %2017 = vmatpush1.msra.mxu0 0.0
    %2018 = vmatprep.subr.mxu0 0.0
    %2019 = vmatpush1.msra.mxu0 0.0
    %2020 = vmatprep.subr.mxu0 0.0
    %2021 = vmatpush1.msra.mxu0 0.0
    %2022 = vmatprep.subr.mxu0 0.0
    %2023 = vmatpush1.msra.mxu0 0.0
    %2024 = vmatprep.subr.mxu0 0.0
    %2025 = vmatpush1.msra.mxu0 0.0
    %2026 = vmatprep.subr.mxu0 0.0
    %2027 = vmatpush1.msra.mxu0 0.0
    %2028 = vmatprep.subr.mxu0 0.0
    %2029 = vmatpush1.msra.mxu0 0.0
    %2030 = vmatprep.subr.mxu0 0.0
    %2031 = vmatpush1.msra.mxu0 0.0
    %2032 = vmatprep.subr.mxu0 0.0
    %2033 = vmatpush1.msra.mxu0 0.0
    %2034 = vmatprep.subr.mxu0 0.0
    %2035 = vmatpush1.msra.mxu0 0.0
    %2036 = vmatprep.subr.mxu0 0.0
    %2037 = vmatpush1.msra.mxu0 0.0
    %2038 = vmatprep.subr.mxu0 0.0
    %2039 = vmatpush1.msra.mxu0 0.0
    %2040 = vmatprep.mubr.f32.mxu0 0.0
    %2041 = vmatmul.mubr.f32.gmra.mrb[0].mxu0 %v1971
    %v2042 = vpop.f32.mrb[0].mxu0
    %v2043 = vadd.f32 0.0, %v2042
    %v2044 = vpop.f32.mrb[0].mxu0
    %2045 = vmatprep.mubr.f32.mxu0 0.0
    %2046 = vmatmul.mubr.f32.gmra.mrb[0].mxu0 %v1974
    %v2047 = vpop.f32.mrb[0].mxu0
    %v2048 = vadd.f32 0.0, %v2047
    %v2049 = vpop.f32.mrb[0].mxu0
    %2050 = vdwg.mxu0
    %v2051 = vld [vmem:[#allocation5 + $0x190] sm:$0xff]
    %v2052 = vld [vmem:[#allocation5 + $0x198] sm:$0xff]
    %v2053 = vld [vmem:[#allocation5 + $0x1a0] sm:$0xff]
    %v2054 = vld [vmem:[#allocation5 + $0x1a8] sm:$0xff]
    %2055 = vmatprep.subr.mxu0 0.0
    %2056 = vmatpush1.msra.mxu0 %v2051
    %2057 = vmatprep.subr.mxu0 0.0
    %2058 = vmatpush1.msra.mxu0 %v2052
    %2059 = vmatprep.subr.mxu0 0.0
    %2060 = vmatpush1.msra.mxu0 %v2053
    %2061 = vmatprep.subr.mxu0 0.0
    %2062 = vmatpush1.msra.mxu0 %v2054
    %2063 = vmatprep.subr.mxu0 0.0
    %2064 = vmatpush1.msra.mxu0 0.0
    %2065 = vmatprep.subr.mxu0 0.0
    %2066 = vmatpush1.msra.mxu0 0.0
    %2067 = vmatprep.subr.mxu0 0.0
    %2068 = vmatpush1.msra.mxu0 0.0
    %2069 = vmatprep.subr.mxu0 0.0
    %2070 = vmatpush1.msra.mxu0 0.0
    %2071 = vmatprep.subr.mxu0 0.0
    %2072 = vmatpush1.msra.mxu0 0.0
    %2073 = vmatprep.subr.mxu0 0.0
    %2074 = vmatpush1.msra.mxu0 0.0
    %2075 = vmatprep.subr.mxu0 0.0
    %2076 = vmatpush1.msra.mxu0 0.0
    %2077 = vmatprep.subr.mxu0 0.0
    %2078 = vmatpush1.msra.mxu0 0.0
    %2079 = vmatprep.subr.mxu0 0.0
    %2080 = vmatpush1.msra.mxu0 0.0
    %2081 = vmatprep.subr.mxu0 0.0
    %2082 = vmatpush1.msra.mxu0 0.0
    %2083 = vmatprep.subr.mxu0 0.0
    %2084 = vmatpush1.msra.mxu0 0.0
    %2085 = vmatprep.subr.mxu0 0.0
    %2086 = vmatpush1.msra.mxu0 0.0
    %2087 = vmatprep.subr.mxu0 0.0
    %2088 = vmatpush1.msra.mxu0 0.0
    %2089 = vmatprep.subr.mxu0 0.0
    %2090 = vmatpush1.msra.mxu0 0.0
    %2091 = vmatprep.subr.mxu0 0.0
    %2092 = vmatpush1.msra.mxu0 0.0
    %2093 = vmatprep.subr.mxu0 0.0
    %2094 = vmatpush1.msra.mxu0 0.0
    %2095 = vmatprep.subr.mxu0 0.0
    %2096 = vmatpush1.msra.mxu0 0.0
    %2097 = vmatprep.subr.mxu0 0.0
    %2098 = vmatpush1.msra.mxu0 0.0
    %2099 = vmatprep.subr.mxu0 0.0
    %2100 = vmatpush1.msra.mxu0 0.0
    %2101 = vmatprep.subr.mxu0 0.0
    %2102 = vmatpush1.msra.mxu0 0.0
    %2103 = vmatprep.subr.mxu0 0.0
    %2104 = vmatpush1.msra.mxu0 0.0
    %2105 = vmatprep.subr.mxu0 0.0
    %2106 = vmatpush1.msra.mxu0 0.0
    %2107 = vmatprep.subr.mxu0 0.0
    %2108 = vmatpush1.msra.mxu0 0.0
    %2109 = vmatprep.subr.mxu0 0.0
    %2110 = vmatpush1.msra.mxu0 0.0
    %2111 = vmatprep.subr.mxu0 0.0
    %2112 = vmatpush1.msra.mxu0 0.0
    %2113 = vmatprep.subr.mxu0 0.0
    %2114 = vmatpush1.msra.mxu0 0.0
    %2115 = vmatprep.subr.mxu0 0.0
    %2116 = vmatpush1.msra.mxu0 0.0
    %2117 = vmatprep.subr.mxu0 0.0
    %2118 = vmatpush1.msra.mxu0 0.0
    %2119 = vmatprep.mubr.f32.mxu0 0.0
    %2120 = vmatmul.mubr.f32.gmra.mrb[0].mxu0 %v1971
    %v2121 = vpop.f32.mrb[0].mxu0
    %v2122 = vadd.f32 0.0, %v2121
    %v2123 = vpop.f32.mrb[0].mxu0
    %2124 = vmatprep.mubr.f32.mxu0 0.0
    %2125 = vmatmul.mubr.f32.gmra.mrb[0].mxu0 %v1974
    %v2126 = vpop.f32.mrb[0].mxu0
    %v2127 = vadd.f32 0.0, %v2126
    %v2128 = vpop.f32.mrb[0].mxu0
    %2129 = vdwg.mxu0
    %v2130 = vld [vmem:[#allocation5 + $0x1b0] sm:$0xff]
    %v2131 = vld [vmem:[#allocation5 + $0x1b8] sm:$0xff]
    %v2132 = vld [vmem:[#allocation5 + $0x1c0] sm:$0xff]
    %v2133 = vld [vmem:[#allocation5 + $0x1c8] sm:$0xff]
    %2134 = vmatprep.subr.mxu0 0.0
    %2135 = vmatpush1.msra.mxu0 %v2130
    %2136 = vmatprep.subr.mxu0 0.0
    %2137 = vmatpush1.msra.mxu0 %v2131
    %2138 = vmatprep.subr.mxu0 0.0
    %2139 = vmatpush1.msra.mxu0 %v2132
    %2140 = vmatprep.subr.mxu0 0.0
    %2141 = vmatpush1.msra.mxu0 %v2133
    %2142 = vmatprep.subr.mxu0 0.0
    %2143 = vmatpush1.msra.mxu0 0.0
    %2144 = vmatprep.subr.mxu0 0.0
    %2145 = vmatpush1.msra.mxu0 0.0
    %2146 = vmatprep.subr.mxu0 0.0
    %2147 = vmatpush1.msra.mxu0 0.0
    %2148 = vmatprep.subr.mxu0 0.0
    %2149 = vmatpush1.msra.mxu0 0.0
    %2150 = vmatprep.subr.mxu0 0.0
    %2151 = vmatpush1.msra.mxu0 0.0
    %2152 = vmatprep.subr.mxu0 0.0
    %2153 = vmatpush1.msra.mxu0 0.0
    %2154 = vmatprep.subr.mxu0 0.0
    %2155 = vmatpush1.msra.mxu0 0.0
    %2156 = vmatprep.subr.mxu0 0.0
    %2157 = vmatpush1.msra.mxu0 0.0
    %2158 = vmatprep.subr.mxu0 0.0
    %2159 = vmatpush1.msra.mxu0 0.0
    %2160 = vmatprep.subr.mxu0 0.0
    %2161 = vmatpush1.msra.mxu0 0.0
    %2162 = vmatprep.subr.mxu0 0.0
    %2163 = vmatpush1.msra.mxu0 0.0
    %2164 = vmatprep.subr.mxu0 0.0
    %2165 = vmatpush1.msra.mxu0 0.0
    %2166 = vmatprep.subr.mxu0 0.0
    %2167 = vmatpush1.msra.mxu0 0.0
    %2168 = vmatprep.subr.mxu0 0.0
    %2169 = vmatpush1.msra.mxu0 0.0
    %2170 = vmatprep.subr.mxu0 0.0
    %2171 = vmatpush1.msra.mxu0 0.0
    %2172 = vmatprep.subr.mxu0 0.0
    %2173 = vmatpush1.msra.mxu0 0.0
    %2174 = vmatprep.subr.mxu0 0.0
    %2175 = vmatpush1.msra.mxu0 0.0
    %2176 = vmatprep.subr.mxu0 0.0
    %2177 = vmatpush1.msra.mxu0 0.0
    %2178 = vmatprep.subr.mxu0 0.0
    %2179 = vmatpush1.msra.mxu0 0.0
    %2180 = vmatprep.subr.mxu0 0.0
    %2181 = vmatpush1.msra.mxu0 0.0
    %2182 = vmatprep.subr.mxu0 0.0
    %2183 = vmatpush1.msra.mxu0 0.0
    %2184 = vmatprep.subr.mxu0 0.0
    %2185 = vmatpush1.msra.mxu0 0.0
    %2186 = vmatprep.subr.mxu0 0.0
    %2187 = vmatpush1.msra.mxu0 0.0
    %2188 = vmatprep.subr.mxu0 0.0
    %2189 = vmatpush1.msra.mxu0 0.0
    %2190 = vmatprep.subr.mxu0 0.0
    %2191 = vmatpush1.msra.mxu0 0.0
    %2192 = vmatprep.subr.mxu0 0.0
    %2193 = vmatpush1.msra.mxu0 0.0
    %2194 = vmatprep.subr.mxu0 0.0
    %2195 = vmatpush1.msra.mxu0 0.0
    %2196 = vmatprep.subr.mxu0 0.0
    %2197 = vmatpush1.msra.mxu0 0.0
    %2198 = vmatprep.mubr.f32.mxu0 0.0
    %2199 = vmatmul.mubr.f32.gmra.mrb[0].mxu0 %v1971
    %v2200 = vpop.f32.mrb[0].mxu0
    %v2201 = vadd.f32 0.0, %v2200
    %v2202 = vpop.f32.mrb[0].mxu0
    %2203 = vmatprep.mubr.f32.mxu0 0.0
    %2204 = vmatmul.mubr.f32.gmra.mrb[0].mxu0 %v1974
    %v2205 = vpop.f32.mrb[0].mxu0
    %v2206 = vadd.f32 0.0, %v2205
    %v2207 = vpop.f32.mrb[0].mxu0
    %2208 = vdwg.mxu0
    %v2209 = vld [vmem:[#allocation5 + $0x1d0] sm:$0xff]
    %v2210 = vld [vmem:[#allocation5 + $0x1d8] sm:$0xff]
    %v2211 = vld [vmem:[#allocation5 + $0x1e0] sm:$0xff]
    %v2212 = vld [vmem:[#allocation5 + $0x1e8] sm:$0xff]
    %2213 = vmatprep.subr.mxu0 0.0
    %2214 = vmatpush1.msra.mxu0 %v2209
    %2215 = vmatprep.subr.mxu0 0.0
    %2216 = vmatpush1.msra.mxu0 %v2210
    %2217 = vmatprep.subr.mxu0 0.0
    %2218 = vmatpush1.msra.mxu0 %v2211
    %2219 = vmatprep.subr.mxu0 0.0
    %2220 = vmatpush1.msra.mxu0 %v2212
    %2221 = vmatprep.subr.mxu0 0.0
    %2222 = vmatpush1.msra.mxu0 0.0
    %2223 = vmatprep.subr.mxu0 0.0
    %2224 = vmatpush1.msra.mxu0 0.0
    %2225 = vmatprep.subr.mxu0 0.0
    %2226 = vmatpush1.msra.mxu0 0.0
    %2227 = vmatprep.subr.mxu0 0.0
    %2228 = vmatpush1.msra.mxu0 0.0
    %2229 = vmatprep.subr.mxu0 0.0
    %2230 = vmatpush1.msra.mxu0 0.0
    %2231 = vmatprep.subr.mxu0 0.0
    %2232 = vmatpush1.msra.mxu0 0.0
    %2233 = vmatprep.subr.mxu0 0.0
    %2234 = vmatpush1.msra.mxu0 0.0
    %2235 = vmatprep.subr.mxu0 0.0
    %2236 = vmatpush1.msra.mxu0 0.0
    %2237 = vmatprep.subr.mxu0 0.0
    %2238 = vmatpush1.msra.mxu0 0.0
    %2239 = vmatprep.subr.mxu0 0.0
    %2240 = vmatpush1.msra.mxu0 0.0
    %2241 = vmatprep.subr.mxu0 0.0
    %2242 = vmatpush1.msra.mxu0 0.0
    %2243 = vmatprep.subr.mxu0 0.0
    %2244 = vmatpush1.msra.mxu0 0.0
    %2245 = vmatprep.subr.mxu0 0.0
    %2246 = vmatpush1.msra.mxu0 0.0
    %2247 = vmatprep.subr.mxu0 0.0
    %2248 = vmatpush1.msra.mxu0 0.0
    %2249 = vmatprep.subr.mxu0 0.0
    %2250 = vmatpush1.msra.mxu0 0.0
    %2251 = vmatprep.subr.mxu0 0.0
    %2252 = vmatpush1.msra.mxu0 0.0
    %2253 = vmatprep.subr.mxu0 0.0
    %2254 = vmatpush1.msra.mxu0 0.0
    %2255 = vmatprep.subr.mxu0 0.0
    %2256 = vmatpush1.msra.mxu0 0.0
    %2257 = vmatprep.subr.mxu0 0.0
    %2258 = vmatpush1.msra.mxu0 0.0
    %2259 = vmatprep.subr.mxu0 0.0
    %2260 = vmatpush1.msra.mxu0 0.0
    %2261 = vmatprep.subr.mxu0 0.0
    %2262 = vmatpush1.msra.mxu0 0.0
    %2263 = vmatprep.subr.mxu0 0.0
    %2264 = vmatpush1.msra.mxu0 0.0
    %2265 = vmatprep.subr.mxu0 0.0
    %2266 = vmatpush1.msra.mxu0 0.0
    %2267 = vmatprep.subr.mxu0 0.0
    %2268 = vmatpush1.msra.mxu0 0.0
    %2269 = vmatprep.subr.mxu0 0.0
    %2270 = vmatpush1.msra.mxu0 0.0
    %2271 = vmatprep.subr.mxu0 0.0
    %2272 = vmatpush1.msra.mxu0 0.0
    %2273 = vmatprep.subr.mxu0 0.0
    %2274 = vmatpush1.msra.mxu0 0.0
    %2275 = vmatprep.subr.mxu0 0.0
    %2276 = vmatpush1.msra.mxu0 0.0
    %2277 = vmatprep.mubr.f32.mxu0 0.0
    %2278 = vmatmul.mubr.f32.gmra.mrb[0].mxu0 %v1971
    %v2279 = vpop.f32.mrb[0].mxu0
    %v2280 = vadd.f32 0.0, %v2279
    %v2281 = vpop.f32.mrb[0].mxu0
    %2282 = vmatprep.mubr.f32.mxu0 0.0
    %2283 = vmatmul.mubr.f32.gmra.mrb[0].mxu0 %v1974
    %v2284 = vpop.f32.mrb[0].mxu0
    %v2285 = vadd.f32 0.0, %v2284
    %v2286 = vpop.f32.mrb[0].mxu0
    %2287 = vdwg.mxu0
    %v2288 = vld [vmem:[#allocation5 + $0x1f0] sm:$0xff]
    %v2289 = vld [vmem:[#allocation5 + $0x1f8] sm:$0xff]
    %v2290 = vld [vmem:[#allocation5 + $0x200] sm:$0xff]
    %v2291 = vld [vmem:[#allocation5 + $0x208] sm:$0xff]
    %2292 = vmatprep.subr.mxu0 0.0
    %2293 = vmatpush1.msra.mxu0 %v2288
    %2294 = vmatprep.subr.mxu0 0.0
    %2295 = vmatpush1.msra.mxu0 %v2289
    %2296 = vmatprep.subr.mxu0 0.0
    %2297 = vmatpush1.msra.mxu0 %v2290
    %2298 = vmatprep.subr.mxu0 0.0
    %2299 = vmatpush1.msra.mxu0 %v2291
    %2300 = vmatprep.subr.mxu0 0.0
    %2301 = vmatpush1.msra.mxu0 0.0
    %2302 = vmatprep.subr.mxu0 0.0
    %2303 = vmatpush1.msra.mxu0 0.0
    %2304 = vmatprep.subr.mxu0 0.0
    %2305 = vmatpush1.msra.mxu0 0.0
    %2306 = vmatprep.subr.mxu0 0.0
    %2307 = vmatpush1.msra.mxu0 0.0
    %2308 = vmatprep.subr.mxu0 0.0
    %2309 = vmatpush1.msra.mxu0 0.0
    %2310 = vmatprep.subr.mxu0 0.0
    %2311 = vmatpush1.msra.mxu0 0.0
    %2312 = vmatprep.subr.mxu0 0.0
    %2313 = vmatpush1.msra.mxu0 0.0
    %2314 = vmatprep.subr.mxu0 0.0
    %2315 = vmatpush1.msra.mxu0 0.0
    %2316 = vmatprep.subr.mxu0 0.0
    %2317 = vmatpush1.msra.mxu0 0.0
    %2318 = vmatprep.subr.mxu0 0.0
    %2319 = vmatpush1.msra.mxu0 0.0
    %2320 = vmatprep.subr.mxu0 0.0
    %2321 = vmatpush1.msra.mxu0 0.0
    %2322 = vmatprep.subr.mxu0 0.0
    %2323 = vmatpush1.msra.mxu0 0.0
    %2324 = vmatprep.subr.mxu0 0.0
    %2325 = vmatpush1.msra.mxu0 0.0
    %2326 = vmatprep.subr.mxu0 0.0
    %2327 = vmatpush1.msra.mxu0 0.0
    %2328 = vmatprep.subr.mxu0 0.0
    %2329 = vmatpush1.msra.mxu0 0.0
    %2330 = vmatprep.subr.mxu0 0.0
    %2331 = vmatpush1.msra.mxu0 0.0
    %2332 = vmatprep.subr.mxu0 0.0
    %2333 = vmatpush1.msra.mxu0 0.0
    %2334 = vmatprep.subr.mxu0 0.0
    %2335 = vmatpush1.msra.mxu0 0.0
    %2336 = vmatprep.subr.mxu0 0.0
    %2337 = vmatpush1.msra.mxu0 0.0
    %2338 = vmatprep.subr.mxu0 0.0
    %2339 = vmatpush1.msra.mxu0 0.0
    %2340 = vmatprep.subr.mxu0 0.0
    %2341 = vmatpush1.msra.mxu0 0.0
    %2342 = vmatprep.subr.mxu0 0.0
    %2343 = vmatpush1.msra.mxu0 0.0
    %2344 = vmatprep.subr.mxu0 0.0
    %2345 = vmatpush1.msra.mxu0 0.0
    %2346 = vmatprep.subr.mxu0 0.0
    %2347 = vmatpush1.msra.mxu0 0.0
    %2348 = vmatprep.subr.mxu0 0.0
    %2349 = vmatpush1.msra.mxu0 0.0
    %2350 = vmatprep.subr.mxu0 0.0
    %2351 = vmatpush1.msra.mxu0 0.0
    %2352 = vmatprep.subr.mxu0 0.0
    %2353 = vmatpush1.msra.mxu0 0.0
    %2354 = vmatprep.subr.mxu0 0.0
    %2355 = vmatpush1.msra.mxu0 0.0
    %2356 = vmatprep.mubr.f32.mxu0 0.0
    %2357 = vmatmul.mubr.f32.gmra.mrb[0].mxu0 %v1971
    %v2358 = vpop.f32.mrb[0].mxu0
    %v2359 = vadd.f32 0.0, %v2358
    %v2360 = vpop.f32.mrb[0].mxu0
    %2361 = vmatprep.mubr.f32.mxu0 0.0
    %2362 = vmatmul.mubr.f32.gmra.mrb[0].mxu0 %v1974
    %v2363 = vpop.f32.mrb[0].mxu0
    %v2364 = vadd.f32 0.0, %v2363
    %v2365 = vpop.f32.mrb[0].mxu0
    %2366 = vdwg.mxu0
    %v2367 = vld [vmem:[#allocation5 + $0x210] sm:$0xff]
    %v2368 = vld [vmem:[#allocation5 + $0x218] sm:$0xff]
    %v2369 = vld [vmem:[#allocation5 + $0x220] sm:$0xff]
    %v2370 = vld [vmem:[#allocation5 + $0x228] sm:$0xff]
    %2371 = vmatprep.subr.mxu0 0.0
    %2372 = vmatpush1.msra.mxu0 %v2367
    %2373 = vmatprep.subr.mxu0 0.0
    %2374 = vmatpush1.msra.mxu0 %v2368
    %2375 = vmatprep.subr.mxu0 0.0
    %2376 = vmatpush1.msra.mxu0 %v2369
    %2377 = vmatprep.subr.mxu0 0.0
    %2378 = vmatpush1.msra.mxu0 %v2370
    %2379 = vmatprep.subr.mxu0 0.0
    %2380 = vmatpush1.msra.mxu0 0.0
    %2381 = vmatprep.subr.mxu0 0.0
    %2382 = vmatpush1.msra.mxu0 0.0
    %2383 = vmatprep.subr.mxu0 0.0
    %2384 = vmatpush1.msra.mxu0 0.0
    %2385 = vmatprep.subr.mxu0 0.0
    %2386 = vmatpush1.msra.mxu0 0.0
    %2387 = vmatprep.subr.mxu0 0.0
    %2388 = vmatpush1.msra.mxu0 0.0
    %2389 = vmatprep.subr.mxu0 0.0
    %2390 = vmatpush1.msra.mxu0 0.0
    %2391 = vmatprep.subr.mxu0 0.0
    %2392 = vmatpush1.msra.mxu0 0.0
    %2393 = vmatprep.subr.mxu0 0.0
    %2394 = vmatpush1.msra.mxu0 0.0
    %2395 = vmatprep.subr.mxu0 0.0
    %2396 = vmatpush1.msra.mxu0 0.0
    %2397 = vmatprep.subr.mxu0 0.0
    %2398 = vmatpush1.msra.mxu0 0.0
    %2399 = vmatprep.subr.mxu0 0.0
    %2400 = vmatpush1.msra.mxu0 0.0
    %2401 = vmatprep.subr.mxu0 0.0
    %2402 = vmatpush1.msra.mxu0 0.0
    %2403 = vmatprep.subr.mxu0 0.0
    %2404 = vmatpush1.msra.mxu0 0.0
    %2405 = vmatprep.subr.mxu0 0.0
    %2406 = vmatpush1.msra.mxu0 0.0
    %2407 = vmatprep.subr.mxu0 0.0
    %2408 = vmatpush1.msra.mxu0 0.0
    %2409 = vmatprep.subr.mxu0 0.0
    %2410 = vmatpush1.msra.mxu0 0.0
    %2411 = vmatprep.subr.mxu0 0.0
    %2412 = vmatpush1.msra.mxu0 0.0
    %2413 = vmatprep.subr.mxu0 0.0
    %2414 = vmatpush1.msra.mxu0 0.0
    %2415 = vmatprep.subr.mxu0 0.0
    %2416 = vmatpush1.msra.mxu0 0.0
    %2417 = vmatprep.subr.mxu0 0.0
    %2418 = vmatpush1.msra.mxu0 0.0
    %2419 = vmatprep.subr.mxu0 0.0
    %2420 = vmatpush1.msra.mxu0 0.0
    %2421 = vmatprep.subr.mxu0 0.0
    %2422 = vmatpush1.msra.mxu0 0.0
    %2423 = vmatprep.subr.mxu0 0.0
    %2424 = vmatpush1.msra.mxu0 0.0
    %2425 = vmatprep.subr.mxu0 0.0
    %2426 = vmatpush1.msra.mxu0 0.0
    %2427 = vmatprep.subr.mxu0 0.0
    %2428 = vmatpush1.msra.mxu0 0.0
    %2429 = vmatprep.subr.mxu0 0.0
    %2430 = vmatpush1.msra.mxu0 0.0
    %2431 = vmatprep.subr.mxu0 0.0
    %2432 = vmatpush1.msra.mxu0 0.0
    %2433 = vmatprep.subr.mxu0 0.0
    %2434 = vmatpush1.msra.mxu0 0.0
    %2435 = vmatprep.mubr.f32.mxu0 0.0
    %2436 = vmatmul.mubr.f32.gmra.mrb[0].mxu0 %v1971
    %v2437 = vpop.f32.mrb[0].mxu0
    %v2438 = vadd.f32 0.0, %v2437
    %v2439 = vpop.f32.mrb[0].mxu0
    %2440 = vmatprep.mubr.f32.mxu0 0.0
    %2441 = vmatmul.mubr.f32.gmra.mrb[0].mxu0 %v1974
    %v2442 = vpop.f32.mrb[0].mxu0
    %v2443 = vadd.f32 0.0, %v2442
    %v2444 = vpop.f32.mrb[0].mxu0
    %2445 = vdwg.mxu0
    %v2446 = vld [vmem:[#allocation5 + $0x110] sm:$0xff]
    %v2447 = vld [vmem:[#allocation5 + $0x118] sm:$0xff]
    %vm2448 = vcmask 785408
    %v2450 = vsel %vm2448, %v2446, 0
    %v2453 = vsel %vm2448, %v2447, 0
    %2455 = vmatprep.subr.mxu0 0.0
    %2456 = vmatpush1.msra.mxu0 %v2043
    %2457 = vmatprep.subr.mxu0 0.0
    %2458 = vmatpush1.msra.mxu0 %v2048
    %2459 = vmatprep.subr.mxu0 0.0
    %2460 = vmatpush1.msra.mxu0 %v2122
    %2461 = vmatprep.subr.mxu0 0.0
    %2462 = vmatpush1.msra.mxu0 %v2127
    %2463 = vmatprep.subr.mxu0 0.0
    %2464 = vmatpush1.msra.mxu0 %v2201
    %2465 = vmatprep.subr.mxu0 0.0
    %2466 = vmatpush1.msra.mxu0 %v2206
    %2467 = vmatprep.subr.mxu0 0.0
    %2468 = vmatpush1.msra.mxu0 %v2280
    %2469 = vmatprep.subr.mxu0 0.0
    %2470 = vmatpush1.msra.mxu0 %v2285
    %2471 = vmatprep.subr.mxu0 0.0
    %2472 = vmatpush1.msra.mxu0 %v2359
    %2473 = vmatprep.subr.mxu0 0.0
    %2474 = vmatpush1.msra.mxu0 %v2364
    %2475 = vmatprep.subr.mxu0 0.0
    %2476 = vmatpush1.msra.mxu0 %v2438
    %2477 = vmatprep.subr.mxu0 0.0
    %2478 = vmatpush1.msra.mxu0 %v2443
    %2479 = vmatprep.subr.mxu0 0.0
    %2480 = vmatpush1.msra.mxu0 0.0
    %2481 = vmatprep.subr.mxu0 0.0
    %2482 = vmatpush1.msra.mxu0 0.0
    %2483 = vmatprep.subr.mxu0 0.0
    %2484 = vmatpush1.msra.mxu0 0.0
    %2485 = vmatprep.subr.mxu0 0.0
    %2486 = vmatpush1.msra.mxu0 0.0
    %2487 = vmatprep.subr.mxu0 0.0
    %2488 = vmatpush1.msra.mxu0 0.0
    %2489 = vmatprep.subr.mxu0 0.0
    %2490 = vmatpush1.msra.mxu0 0.0
    %2491 = vmatprep.subr.mxu0 0.0
    %2492 = vmatpush1.msra.mxu0 0.0
    %2493 = vmatprep.subr.mxu0 0.0
    %2494 = vmatpush1.msra.mxu0 0.0
    %2495 = vmatprep.subr.mxu0 0.0
    %2496 = vmatpush1.msra.mxu0 0.0
    %2497 = vmatprep.subr.mxu0 0.0
    %2498 = vmatpush1.msra.mxu0 0.0
    %2499 = vmatprep.subr.mxu0 0.0
    %2500 = vmatpush1.msra.mxu0 0.0
    %2501 = vmatprep.subr.mxu0 0.0
    %2502 = vmatpush1.msra.mxu0 0.0
    %2503 = vmatprep.subr.mxu0 0.0
    %2504 = vmatpush1.msra.mxu0 0.0
    %2505 = vmatprep.subr.mxu0 0.0
    %2506 = vmatpush1.msra.mxu0 0.0
    %2507 = vmatprep.subr.mxu0 0.0
    %2508 = vmatpush1.msra.mxu0 0.0
    %2509 = vmatprep.subr.mxu0 0.0
    %2510 = vmatpush1.msra.mxu0 0.0
    %2511 = vmatprep.subr.mxu0 0.0
    %2512 = vmatpush1.msra.mxu0 0.0
    %2513 = vmatprep.subr.mxu0 0.0
    %2514 = vmatpush1.msra.mxu0 0.0
    %2515 = vmatprep.subr.mxu0 0.0
    %2516 = vmatpush1.msra.mxu0 0.0
    %2517 = vmatprep.subr.mxu0 0.0
    %2518 = vmatpush1.msra.mxu0 0.0
    %2519 = vmatprep.mubr.f32.mxu0 0.0
    %2520 = vmatmul.mubr.f32.gmra.mrb[0].mxu0 %v2450
    %v2521 = vpop.f32.mrb[0].mxu0
    %v2522 = vadd.f32 0.0, %v2521
    %v2523 = vpop.f32.mrb[0].mxu0
    %2524 = vmatprep.mubr.f32.mxu0 0.0
    %2525 = vmatmul.mubr.f32.gmra.mrb[0].mxu0 %v2453
    %v2526 = vpop.f32.mrb[0].mxu0
    %v2527 = vadd.f32 0.0, %v2526
    %v2528 = vpop.f32.mrb[0].mxu0
    %2529 = vdwg.mxu0
    %v2530 = vld [vmem:[#allocation5 + $0x250] sm:$0xff]
    %v2531 = vld [vmem:[#allocation5 + $0x258] sm:$0xff]
    %vm2532 = vcmask 130048
    %v2534 = vsel %vm2532, %v2522, 0
    %v2537 = vsel %vm2532, %v2527, 0
    %2539 = vmatprep.subr.mxu0 0.0
    %2540 = vmatpush1.msra.mxu0 %v2530
    %2541 = vmatprep.subr.mxu0 0.0
    %2542 = vmatpush1.msra.mxu0 %v2531
    %2543 = vmatprep.subr.mxu0 0.0
    %2544 = vmatpush1.msra.mxu0 0.0
    %2545 = vmatprep.subr.mxu0 0.0
    %2546 = vmatpush1.msra.mxu0 0.0
    %2547 = vmatprep.subr.mxu0 0.0
    %2548 = vmatpush1.msra.mxu0 0.0
    %2549 = vmatprep.subr.mxu0 0.0
    %2550 = vmatpush1.msra.mxu0 0.0
    %2551 = vmatprep.subr.mxu0 0.0
    %2552 = vmatpush1.msra.mxu0 0.0
    %2553 = vmatprep.subr.mxu0 0.0
    %2554 = vmatpush1.msra.mxu0 0.0
    %2555 = vmatprep.subr.mxu0 0.0
    %2556 = vmatpush1.msra.mxu0 0.0
    %2557 = vmatprep.subr.mxu0 0.0
    %2558 = vmatpush1.msra.mxu0 0.0
    %2559 = vmatprep.subr.mxu0 0.0
    %2560 = vmatpush1.msra.mxu0 0.0
    %2561 = vmatprep.subr.mxu0 0.0
    %2562 = vmatpush1.msra.mxu0 0.0
    %2563 = vmatprep.subr.mxu0 0.0
    %2564 = vmatpush1.msra.mxu0 0.0
    %2565 = vmatprep.subr.mxu0 0.0
    %2566 = vmatpush1.msra.mxu0 0.0
    %2567 = vmatprep.subr.mxu0 0.0
    %2568 = vmatpush1.msra.mxu0 0.0
    %2569 = vmatprep.subr.mxu0 0.0
    %2570 = vmatpush1.msra.mxu0 0.0
    %2571 = vmatprep.subr.mxu0 0.0
    %2572 = vmatpush1.msra.mxu0 0.0
    %2573 = vmatprep.subr.mxu0 0.0
    %2574 = vmatpush1.msra.mxu0 0.0
    %2575 = vmatprep.subr.mxu0 0.0
    %2576 = vmatpush1.msra.mxu0 0.0
    %2577 = vmatprep.subr.mxu0 0.0
    %2578 = vmatpush1.msra.mxu0 0.0
    %2579 = vmatprep.subr.mxu0 0.0
    %2580 = vmatpush1.msra.mxu0 0.0
    %2581 = vmatprep.subr.mxu0 0.0
    %2582 = vmatpush1.msra.mxu0 0.0
    %2583 = vmatprep.subr.mxu0 0.0
    %2584 = vmatpush1.msra.mxu0 0.0
    %2585 = vmatprep.subr.mxu0 0.0
    %2586 = vmatpush1.msra.mxu0 0.0
    %2587 = vmatprep.subr.mxu0 0.0
    %2588 = vmatpush1.msra.mxu0 0.0
    %2589 = vmatprep.subr.mxu0 0.0
    %2590 = vmatpush1.msra.mxu0 0.0
    %2591 = vmatprep.subr.mxu0 0.0
    %2592 = vmatpush1.msra.mxu0 0.0
    %2593 = vmatprep.subr.mxu0 0.0
    %2594 = vmatpush1.msra.mxu0 0.0
    %2595 = vmatprep.subr.mxu0 0.0
    %2596 = vmatpush1.msra.mxu0 0.0
    %2597 = vmatprep.subr.mxu0 0.0
    %2598 = vmatpush1.msra.mxu0 0.0
    %2599 = vmatprep.subr.mxu0 0.0
    %2600 = vmatpush1.msra.mxu0 0.0
    %2601 = vmatprep.subr.mxu0 0.0
    %2602 = vmatpush1.msra.mxu0 0.0
    %2603 = vmatprep.mubr.f32.mxu0 0.0
    %2604 = vmatmul.mubr.f32.gmra.mrb[0].mxu0 %v2534
    %v2605 = vpop.f32.mrb[0].mxu0
    %v2606 = vadd.f32 0.0, %v2605
    %v2607 = vpop.f32.mrb[0].mxu0
    %2608 = vmatprep.mubr.f32.mxu0 0.0
    %2609 = vmatmul.mubr.f32.gmra.mrb[0].mxu0 %v2537
    %v2610 = vpop.f32.mrb[0].mxu0
    %v2611 = vadd.f32 0.0, %v2610
    %v2612 = vpop.f32.mrb[0].mxu0
    %2613 = vdwg.mxu0
    %v2614 = vsub.f32 %v2522, %v2606
    %v2615 = vsub.f32 %v2527, %v2611
    %v2616 = vmul.f32 %v2614, %v2614
    %v2617 = vmul.f32 %v2615, %v2615
    %v2619 = vsel %vm2532, %v2616, 0
    %v2622 = vsel %vm2532, %v2617, 0
    %2624 = vmatprep.subr.mxu0 0.0
    %2625 = vmatpush1.msra.mxu0 %v2530
    %2626 = vmatprep.subr.mxu0 0.0
    %2627 = vmatpush1.msra.mxu0 %v2531
    %2628 = vmatprep.subr.mxu0 0.0
    %2629 = vmatpush1.msra.mxu0 0.0
    %2630 = vmatprep.subr.mxu0 0.0
    %2631 = vmatpush1.msra.mxu0 0.0
    %2632 = vmatprep.subr.mxu0 0.0
    %2633 = vmatpush1.msra.mxu0 0.0
    %2634 = vmatprep.subr.mxu0 0.0
    %2635 = vmatpush1.msra.mxu0 0.0
    %2636 = vmatprep.subr.mxu0 0.0
    %2637 = vmatpush1.msra.mxu0 0.0
    %2638 = vmatprep.subr.mxu0 0.0
    %2639 = vmatpush1.msra.mxu0 0.0
    %2640 = vmatprep.subr.mxu0 0.0
    %2641 = vmatpush1.msra.mxu0 0.0
    %2642 = vmatprep.subr.mxu0 0.0
    %2643 = vmatpush1.msra.mxu0 0.0
    %2644 = vmatprep.subr.mxu0 0.0
    %2645 = vmatpush1.msra.mxu0 0.0
    %2646 = vmatprep.subr.mxu0 0.0
    %2647 = vmatpush1.msra.mxu0 0.0
    %2648 = vmatprep.subr.mxu0 0.0
    %2649 = vmatpush1.msra.mxu0 0.0
    %2650 = vmatprep.subr.mxu0 0.0
    %2651 = vmatpush1.msra.mxu0 0.0
    %2652 = vmatprep.subr.mxu0 0.0
    %2653 = vmatpush1.msra.mxu0 0.0
    %2654 = vmatprep.subr.mxu0 0.0
    %2655 = vmatpush1.msra.mxu0 0.0
    %2656 = vmatprep.subr.mxu0 0.0
    %2657 = vmatpush1.msra.mxu0 0.0
    %2658 = vmatprep.subr.mxu0 0.0
    %2659 = vmatpush1.msra.mxu0 0.0
    %2660 = vmatprep.subr.mxu0 0.0
    %2661 = vmatpush1.msra.mxu0 0.0
    %2662 = vmatprep.subr.mxu0 0.0
    %2663 = vmatpush1.msra.mxu0 0.0
    %2664 = vmatprep.subr.mxu0 0.0
    %2665 = vmatpush1.msra.mxu0 0.0
    %2666 = vmatprep.subr.mxu0 0.0
    %2667 = vmatpush1.msra.mxu0 0.0
    %2668 = vmatprep.subr.mxu0 0.0
    %2669 = vmatpush1.msra.mxu0 0.0
    %2670 = vmatprep.subr.mxu0 0.0
    %2671 = vmatpush1.msra.mxu0 0.0
    %2672 = vmatprep.subr.mxu0 0.0
    %2673 = vmatpush1.msra.mxu0 0.0
    %2674 = vmatprep.subr.mxu0 0.0
    %2675 = vmatpush1.msra.mxu0 0.0
    %2676 = vmatprep.subr.mxu0 0.0
    %2677 = vmatpush1.msra.mxu0 0.0
    %2678 = vmatprep.subr.mxu0 0.0
    %2679 = vmatpush1.msra.mxu0 0.0
    %2680 = vmatprep.subr.mxu0 0.0
    %2681 = vmatpush1.msra.mxu0 0.0
    %2682 = vmatprep.subr.mxu0 0.0
    %2683 = vmatpush1.msra.mxu0 0.0
    %2684 = vmatprep.subr.mxu0 0.0
    %2685 = vmatpush1.msra.mxu0 0.0
    %2686 = vmatprep.subr.mxu0 0.0
    %2687 = vmatpush1.msra.mxu0 0.0
    %2688 = vmatprep.mubr.f32.mxu0 0.0
    %2689 = vmatmul.mubr.f32.gmra.mrb[0].mxu0 %v2619
    %v2690 = vpop.f32.mrb[0].mxu0
    %v2691 = vadd.f32 1e-05, %v2690
    %v2692 = vpop.f32.mrb[0].mxu0
    %2693 = vmatprep.mubr.f32.mxu0 0.0
    %2694 = vmatmul.mubr.f32.gmra.mrb[0].mxu0 %v2622
    %v2695 = vpop.f32.mrb[0].mxu0
    %v2696 = vadd.f32 1e-05, %v2695
    %v2697 = vpop.f32.mrb[0].mxu0
    %2698 = vdwg.mxu0
    %v2699 = vrsqrt.pop %v2691
    %v2700 = vrsqrt.pop %v2696
    %v2701 = vmul.f32 %v2614, %v2699
    %v2702 = vmul.f32 %v2615, %v2700
    %v2703 = vld [vmem:[#allocation5 + $0x120] sm:$0xff]
    %v2704 = vld [vmem:[#allocation5 + $0x128] sm:$0xff]
    %2706 = vset.pattern.permute.xlu0 0
    %2707 = vperm.xlu0 %2706, %v2703
    %v2708 = vpop.permute.xlu0 %2707
    %2711 = vset.pattern.permute.xlu0 0
    %2712 = vperm.xlu0 %2711, %v2704
    %v2713 = vpop.permute.xlu0 %2712
    %v2715 = vmul.f32 %v2701, %v2708
    %v2716 = vmul.f32 %v2702, %v2713
    %v2717 = vld [vmem:[#allocation5 + $0x130] sm:$0xff]
    %v2718 = vld [vmem:[#allocation5 + $0x138] sm:$0xff]
    %2720 = vset.pattern.permute.xlu0 0
    %2721 = vperm.xlu0 %2720, %v2717
    %v2722 = vpop.permute.xlu0 %2721
    %2725 = vset.pattern.permute.xlu0 0
    %2726 = vperm.xlu0 %2725, %v2718
    %v2727 = vpop.permute.xlu0 %2726
    %v2729 = vadd.f32 %v2715, %v2722
    %v2730 = vadd.f32 %v2716, %v2727
    %v2731 = vld [vmem:[#allocation5 + $0x260] sm:$0xff]
    %v2732 = vld [vmem:[#allocation5 + $0x268] sm:$0xff]
    %v2734 = vsel %vm2532, %v2729, 0
    %v2737 = vsel %vm2532, %v2730, 0
    %2739 = vmatprep.subr.mxu0 0.0
    %2740 = vmatpush1.msra.mxu0 %v2731
    %2741 = vmatprep.subr.mxu0 0.0
    %2742 = vmatpush1.msra.mxu0 %v2732
    %2743 = vmatprep.subr.mxu0 0.0
    %2744 = vmatpush1.msra.mxu0 0.0
    %2745 = vmatprep.subr.mxu0 0.0
    %2746 = vmatpush1.msra.mxu0 0.0
    %2747 = vmatprep.subr.mxu0 0.0
    %2748 = vmatpush1.msra.mxu0 0.0
    %2749 = vmatprep.subr.mxu0 0.0
    %2750 = vmatpush1.msra.mxu0 0.0
    %2751 = vmatprep.subr.mxu0 0.0
    %2752 = vmatpush1.msra.mxu0 0.0
    %2753 = vmatprep.subr.mxu0 0.0
    %2754 = vmatpush1.msra.mxu0 0.0
    %2755 = vmatprep.subr.mxu0 0.0
    %2756 = vmatpush1.msra.mxu0 0.0
    %2757 = vmatprep.subr.mxu0 0.0
    %2758 = vmatpush1.msra.mxu0 0.0
    %2759 = vmatprep.subr.mxu0 0.0
    %2760 = vmatpush1.msra.mxu0 0.0
    %2761 = vmatprep.subr.mxu0 0.0
    %2762 = vmatpush1.msra.mxu0 0.0
    %2763 = vmatprep.subr.mxu0 0.0
    %2764 = vmatpush1.msra.mxu0 0.0
    %2765 = vmatprep.subr.mxu0 0.0
    %2766 = vmatpush1.msra.mxu0 0.0
    %2767 = vmatprep.subr.mxu0 0.0
    %2768 = vmatpush1.msra.mxu0 0.0
    %2769 = vmatprep.subr.mxu0 0.0
    %2770 = vmatpush1.msra.mxu0 0.0
    %2771 = vmatprep.subr.mxu0 0.0
    %2772 = vmatpush1.msra.mxu0 0.0
    %2773 = vmatprep.subr.mxu0 0.0
    %2774 = vmatpush1.msra.mxu0 0.0
    %2775 = vmatprep.subr.mxu0 0.0
    %2776 = vmatpush1.msra.mxu0 0.0
    %2777 = vmatprep.subr.mxu0 0.0
    %2778 = vmatpush1.msra.mxu0 0.0
    %2779 = vmatprep.subr.mxu0 0.0
    %2780 = vmatpush1.msra.mxu0 0.0
    %2781 = vmatprep.subr.mxu0 0.0
    %2782 = vmatpush1.msra.mxu0 0.0
    %2783 = vmatprep.subr.mxu0 0.0
    %2784 = vmatpush1.msra.mxu0 0.0
    %2785 = vmatprep.subr.mxu0 0.0
    %2786 = vmatpush1.msra.mxu0 0.0
    %2787 = vmatprep.subr.mxu0 0.0
    %2788 = vmatpush1.msra.mxu0 0.0
    %2789 = vmatprep.subr.mxu0 0.0
    %2790 = vmatpush1.msra.mxu0 0.0
    %2791 = vmatprep.subr.mxu0 0.0
    %2792 = vmatpush1.msra.mxu0 0.0
    %2793 = vmatprep.subr.mxu0 0.0
    %2794 = vmatpush1.msra.mxu0 0.0
    %2795 = vmatprep.subr.mxu0 0.0
    %2796 = vmatpush1.msra.mxu0 0.0
    %2797 = vmatprep.subr.mxu0 0.0
    %2798 = vmatpush1.msra.mxu0 0.0
    %2799 = vmatprep.subr.mxu0 0.0
    %2800 = vmatpush1.msra.mxu0 0.0
    %2801 = vmatprep.subr.mxu0 0.0
    %2802 = vmatpush1.msra.mxu0 0.0
    %2803 = vmatprep.mubr.f32.mxu0 0.0
    %2804 = vmatmul.mubr.f32.gmra.mrb[0].mxu0 %v2734
    %v2805 = vpop.f32.mrb[0].mxu0
    %v2806 = vadd.f32 0.0, %v2805
    %v2807 = vpop.f32.mrb[0].mxu0
    %2808 = vmatprep.mubr.f32.mxu0 0.0
    %2809 = vmatmul.mubr.f32.gmra.mrb[0].mxu0 %v2737
    %v2810 = vpop.f32.mrb[0].mxu0
    %v2811 = vadd.f32 0.0, %v2810
    %v2812 = vpop.f32.mrb[0].mxu0
    %2813 = vdwg.mxu0
    %v2814 = vld [vmem:[#allocation5 + $0x140] sm:$0xff]
    %v2815 = vld [vmem:[#allocation5 + $0x148] sm:$0xff]
    %2817 = vset.pattern.permute.xlu0 0
    %2818 = vperm.xlu0 %2817, %v2815
    %v2819 = vpop.permute.xlu0 %2818
    %v2822 = vsel %vm2532, %v2814, 0
    %2824 = vmatprep.subr.mxu0 0.0
    %2825 = vmatpush1.msra.mxu0 %v2806
    %2826 = vmatprep.subr.mxu0 0.0
    %2827 = vmatpush1.msra.mxu0 %v2811
    %2828 = vmatprep.subr.mxu0 0.0
    %2829 = vmatpush1.msra.mxu0 0.0
    %2830 = vmatprep.subr.mxu0 0.0
    %2831 = vmatpush1.msra.mxu0 0.0
    %2832 = vmatprep.subr.mxu0 0.0
    %2833 = vmatpush1.msra.mxu0 0.0
    %2834 = vmatprep.subr.mxu0 0.0
    %2835 = vmatpush1.msra.mxu0 0.0
    %2836 = vmatprep.subr.mxu0 0.0
    %2837 = vmatpush1.msra.mxu0 0.0
    %2838 = vmatprep.subr.mxu0 0.0
    %2839 = vmatpush1.msra.mxu0 0.0
    %2840 = vmatprep.subr.mxu0 0.0
    %2841 = vmatpush1.msra.mxu0 0.0
    %2842 = vmatprep.subr.mxu0 0.0
    %2843 = vmatpush1.msra.mxu0 0.0
    %2844 = vmatprep.subr.mxu0 0.0
    %2845 = vmatpush1.msra.mxu0 0.0
    %2846 = vmatprep.subr.mxu0 0.0
    %2847 = vmatpush1.msra.mxu0 0.0
    %2848 = vmatprep.subr.mxu0 0.0
    %2849 = vmatpush1.msra.mxu0 0.0
    %2850 = vmatprep.subr.mxu0 0.0
    %2851 = vmatpush1.msra.mxu0 0.0
    %2852 = vmatprep.subr.mxu0 0.0
    %2853 = vmatpush1.msra.mxu0 0.0
    %2854 = vmatprep.subr.mxu0 0.0
    %2855 = vmatpush1.msra.mxu0 0.0
    %2856 = vmatprep.subr.mxu0 0.0
    %2857 = vmatpush1.msra.mxu0 0.0
    %2858 = vmatprep.subr.mxu0 0.0
    %2859 = vmatpush1.msra.mxu0 0.0
    %2860 = vmatprep.subr.mxu0 0.0
    %2861 = vmatpush1.msra.mxu0 0.0
    %2862 = vmatprep.subr.mxu0 0.0
    %2863 = vmatpush1.msra.mxu0 0.0
    %2864 = vmatprep.subr.mxu0 0.0
    %2865 = vmatpush1.msra.mxu0 0.0
    %2866 = vmatprep.subr.mxu0 0.0
    %2867 = vmatpush1.msra.mxu0 0.0
    %2868 = vmatprep.subr.mxu0 0.0
    %2869 = vmatpush1.msra.mxu0 0.0
    %2870 = vmatprep.subr.mxu0 0.0
    %2871 = vmatpush1.msra.mxu0 0.0
    %2872 = vmatprep.subr.mxu0 0.0
    %2873 = vmatpush1.msra.mxu0 0.0
    %2874 = vmatprep.subr.mxu0 0.0
    %2875 = vmatpush1.msra.mxu0 0.0
    %2876 = vmatprep.subr.mxu0 0.0
    %2877 = vmatpush1.msra.mxu0 0.0
    %2878 = vmatprep.subr.mxu0 0.0
    %2879 = vmatpush1.msra.mxu0 0.0
    %2880 = vmatprep.subr.mxu0 0.0
    %2881 = vmatpush1.msra.mxu0 0.0
    %2882 = vmatprep.subr.mxu0 0.0
    %2883 = vmatpush1.msra.mxu0 0.0
    %2884 = vmatprep.subr.mxu0 0.0
    %2885 = vmatpush1.msra.mxu0 0.0
    %2886 = vmatprep.subr.mxu0 0.0
    %2887 = vmatpush1.msra.mxu0 0.0
    %2888 = vmatprep.mubr.f32.mxu0 0.0
    %2889 = vmatmul.mubr.f32.gmra.mrb[0].mxu0 %v2822
    %v2890 = vpop.f32.mrb[0].mxu0
    %v2891 = vadd.f32 %v2819, %v2890
    %v2892 = vpop.f32.mrb[0].mxu0
    %2893 = vdwg.mxu0
    %v2894 = vmax.f32 %v2891, 0.0
    %v2895 = vld [vmem:[#allocation5 + $0x150] sm:$0xff]
    %v2896 = vld [vmem:[#allocation5 + $0x158] sm:$0xff]
    %v2897 = vld [vmem:[#allocation5 + $0x160] sm:$0xff]
    %v2898 = vld [vmem:[#allocation5 + $0x168] sm:$0xff]
    %2900 = vset.pattern.permute.xlu0 0
    %2901 = vperm.xlu0 %2900, %v2897
    %v2902 = vpop.permute.xlu0 %2901
    %2905 = vset.pattern.permute.xlu0 0
    %2906 = vperm.xlu0 %2905, %v2898
    %v2907 = vpop.permute.xlu0 %2906
    %v2910 = vsel %vm1276, %v2895, 0
    %v2913 = vsel %vm1276, %v2896, 0
    %2915 = vmatprep.subr.mxu0 0.0
    %2916 = vmatpush1.msra.mxu0 %v2894
    %2917 = vmatprep.subr.mxu0 0.0
    %2918 = vmatpush1.msra.mxu0 0.0
    %2919 = vmatprep.subr.mxu0 0.0
    %2920 = vmatpush1.msra.mxu0 0.0
    %2921 = vmatprep.subr.mxu0 0.0
    %2922 = vmatpush1.msra.mxu0 0.0
    %2923 = vmatprep.subr.mxu0 0.0
    %2924 = vmatpush1.msra.mxu0 0.0
    %2925 = vmatprep.subr.mxu0 0.0
    %2926 = vmatpush1.msra.mxu0 0.0
    %2927 = vmatprep.subr.mxu0 0.0
    %2928 = vmatpush1.msra.mxu0 0.0
    %2929 = vmatprep.subr.mxu0 0.0
    %2930 = vmatpush1.msra.mxu0 0.0
    %2931 = vmatprep.subr.mxu0 0.0
    %2932 = vmatpush1.msra.mxu0 0.0
    %2933 = vmatprep.subr.mxu0 0.0
    %2934 = vmatpush1.msra.mxu0 0.0
    %2935 = vmatprep.subr.mxu0 0.0
    %2936 = vmatpush1.msra.mxu0 0.0
    %2937 = vmatprep.subr.mxu0 0.0
    %2938 = vmatpush1.msra.mxu0 0.0
    %2939 = vmatprep.subr.mxu0 0.0
    %2940 = vmatpush1.msra.mxu0 0.0
    %2941 = vmatprep.subr.mxu0 0.0
    %2942 = vmatpush1.msra.mxu0 0.0
    %2943 = vmatprep.subr.mxu0 0.0
    %2944 = vmatpush1.msra.mxu0 0.0
    %2945 = vmatprep.subr.mxu0 0.0
    %2946 = vmatpush1.msra.mxu0 0.0
    %2947 = vmatprep.subr.mxu0 0.0
    %2948 = vmatpush1.msra.mxu0 0.0
    %2949 = vmatprep.subr.mxu0 0.0
    %2950 = vmatpush1.msra.mxu0 0.0
    %2951 = vmatprep.subr.mxu0 0.0
    %2952 = vmatpush1.msra.mxu0 0.0
    %2953 = vmatprep.subr.mxu0 0.0
    %2954 = vmatpush1.msra.mxu0 0.0
    %2955 = vmatprep.subr.mxu0 0.0
    %2956 = vmatpush1.msra.mxu0 0.0
    %2957 = vmatprep.subr.mxu0 0.0
    %2958 = vmatpush1.msra.mxu0 0.0
    %2959 = vmatprep.subr.mxu0 0.0
    %2960 = vmatpush1.msra.mxu0 0.0
    %2961 = vmatprep.subr.mxu0 0.0
    %2962 = vmatpush1.msra.mxu0 0.0
    %2963 = vmatprep.subr.mxu0 0.0
    %2964 = vmatpush1.msra.mxu0 0.0
    %2965 = vmatprep.subr.mxu0 0.0
    %2966 = vmatpush1.msra.mxu0 0.0
    %2967 = vmatprep.subr.mxu0 0.0
    %2968 = vmatpush1.msra.mxu0 0.0
    %2969 = vmatprep.subr.mxu0 0.0
    %2970 = vmatpush1.msra.mxu0 0.0
    %2971 = vmatprep.subr.mxu0 0.0
    %2972 = vmatpush1.msra.mxu0 0.0
    %2973 = vmatprep.subr.mxu0 0.0
    %2974 = vmatpush1.msra.mxu0 0.0
    %2975 = vmatprep.subr.mxu0 0.0
    %2976 = vmatpush1.msra.mxu0 0.0
    %2977 = vmatprep.subr.mxu0 0.0
    %2978 = vmatpush1.msra.mxu0 0.0
    %2979 = vmatprep.mubr.f32.mxu0 0.0
    %2980 = vmatmul.mubr.f32.gmra.mrb[0].mxu0 %v2910
    %v2981 = vpop.f32.mrb[0].mxu0
    %v2982 = vadd.f32 %v2902, %v2981
    %v2983 = vpop.f32.mrb[0].mxu0
    %2984 = vmatprep.mubr.f32.mxu0 0.0
    %2985 = vmatmul.mubr.f32.gmra.mrb[0].mxu0 %v2913
    %v2986 = vpop.f32.mrb[0].mxu0
    %v2987 = vadd.f32 %v2907, %v2986
    %v2988 = vpop.f32.mrb[0].mxu0
    %2989 = vdwg.mxu0
    %v2990 = vxor.u32 %v2982, 2147483648
    %v2991 = vxor.u32 %v2987, 2147483648
    %v2992 = vmul.f32 %v2990, 1.442695
    %v2993 = vpow.pop %v2992
    %v2994 = vmul.f32 %v2991, 1.442695
    %v2995 = vpow.pop %v2994
    %v2996 = vadd.f32 %v2993, 1.0
    %v2997 = vadd.f32 %v2995, 1.0
    %v2998 = vrcp.pop %v2996
    %v2999 = vmul.f32 1.0, %v2998
    %v3000 = vrcp.pop %v2997
    %v3001 = vmul.f32 1.0, %v3000
    %v3002 = vld [vmem:[#allocation5 + $0x270] sm:$0xff]
    %v3004 = vsel %vm1276, %v2999, 0
    %v3007 = vsel %vm1276, %v3001, 0
    %3009 = vmatprep.subr.mxu0 0.0
    %3010 = vmatpush1.msra.mxu0 %v3002
    %3011 = vmatprep.subr.mxu0 0.0
    %3012 = vmatpush1.msra.mxu0 0.0
    %3013 = vmatprep.subr.mxu0 0.0
    %3014 = vmatpush1.msra.mxu0 0.0
    %3015 = vmatprep.subr.mxu0 0.0
    %3016 = vmatpush1.msra.mxu0 0.0
    %3017 = vmatprep.subr.mxu0 0.0
    %3018 = vmatpush1.msra.mxu0 0.0
    %3019 = vmatprep.subr.mxu0 0.0
    %3020 = vmatpush1.msra.mxu0 0.0
    %3021 = vmatprep.subr.mxu0 0.0
    %3022 = vmatpush1.msra.mxu0 0.0
    %3023 = vmatprep.subr.mxu0 0.0
    %3024 = vmatpush1.msra.mxu0 0.0
    %3025 = vmatprep.subr.mxu0 0.0
    %3026 = vmatpush1.msra.mxu0 0.0
    %3027 = vmatprep.subr.mxu0 0.0
    %3028 = vmatpush1.msra.mxu0 0.0
    %3029 = vmatprep.subr.mxu0 0.0
    %3030 = vmatpush1.msra.mxu0 0.0
    %3031 = vmatprep.subr.mxu0 0.0
    %3032 = vmatpush1.msra.mxu0 0.0
    %3033 = vmatprep.subr.mxu0 0.0
    %3034 = vmatpush1.msra.mxu0 0.0
    %3035 = vmatprep.subr.mxu0 0.0
    %3036 = vmatpush1.msra.mxu0 0.0
    %3037 = vmatprep.subr.mxu0 0.0
    %3038 = vmatpush1.msra.mxu0 0.0
    %3039 = vmatprep.subr.mxu0 0.0
    %3040 = vmatpush1.msra.mxu0 0.0
    %3041 = vmatprep.subr.mxu0 0.0
    %3042 = vmatpush1.msra.mxu0 0.0
    %3043 = vmatprep.subr.mxu0 0.0
    %3044 = vmatpush1.msra.mxu0 0.0
    %3045 = vmatprep.subr.mxu0 0.0
    %3046 = vmatpush1.msra.mxu0 0.0
    %3047 = vmatprep.subr.mxu0 0.0
    %3048 = vmatpush1.msra.mxu0 0.0
    %3049 = vmatprep.subr.mxu0 0.0
    %3050 = vmatpush1.msra.mxu0 0.0
    %3051 = vmatprep.subr.mxu0 0.0
    %3052 = vmatpush1.msra.mxu0 0.0
    %3053 = vmatprep.subr.mxu0 0.0
    %3054 = vmatpush1.msra.mxu0 0.0
    %3055 = vmatprep.subr.mxu0 0.0
    %3056 = vmatpush1.msra.mxu0 0.0
    %3057 = vmatprep.subr.mxu0 0.0
    %3058 = vmatpush1.msra.mxu0 0.0
    %3059 = vmatprep.subr.mxu0 0.0
    %3060 = vmatpush1.msra.mxu0 0.0
    %3061 = vmatprep.subr.mxu0 0.0
    %3062 = vmatpush1.msra.mxu0 0.0
    %3063 = vmatprep.subr.mxu0 0.0
    %3064 = vmatpush1.msra.mxu0 0.0
    %3065 = vmatprep.subr.mxu0 0.0
    %3066 = vmatpush1.msra.mxu0 0.0
    %3067 = vmatprep.subr.mxu0 0.0
    %3068 = vmatpush1.msra.mxu0 0.0
    %3069 = vmatprep.subr.mxu0 0.0
    %3070 = vmatpush1.msra.mxu0 0.0
    %3071 = vmatprep.subr.mxu0 0.0
    %3072 = vmatpush1.msra.mxu0 0.0
    %3073 = vmatprep.mubr.f32.mxu0 0.0
    %3074 = vmatmul.mubr.f32.gmra.mrb[0].mxu0 %v3004
    %v3075 = vpop.f32.mrb[0].mxu0
    %v3076 = vadd.f32 0.0, %v3075
    %v3077 = vpop.f32.mrb[0].mxu0
    %3078 = vmatprep.mubr.f32.mxu0 0.0
    %3079 = vmatmul.mubr.f32.gmra.mrb[0].mxu0 %v3007
    %v3080 = vpop.f32.mrb[0].mxu0
    %v3081 = vadd.f32 0.0, %v3080
    %v3082 = vpop.f32.mrb[0].mxu0
    %3083 = vdwg.mxu0
    %v3084 = vmul.f32 %v2729, %v3076
    %v3085 = vmul.f32 %v2730, %v3081
    %v3086 = vld [vmem:[#allocation5 + $0x230] sm:$0xff]
    %v3087 = vld [vmem:[#allocation5 + $0x238] sm:$0xff]
    %v3088 = vld [vmem:[#allocation5 + $0x240] sm:$0xff]
    %v3089 = vld [vmem:[#allocation5 + $0x248] sm:$0xff]
    %v3091 = vsel %vm43, 0.0, 0
    %3093 = vmatprep.subr.mxu0 0.0
    %3094 = vmatpush1.msra.mxu0 %v3086
    %3095 = vmatprep.subr.mxu0 0.0
    %3096 = vmatpush1.msra.mxu0 %v3087
    %3097 = vmatprep.subr.mxu0 0.0
    %3098 = vmatpush1.msra.mxu0 %v3088
    %3099 = vmatprep.subr.mxu0 0.0
    %3100 = vmatpush1.msra.mxu0 %v3089
    %3101 = vmatprep.subr.mxu0 0.0
    %3102 = vmatpush1.msra.mxu0 0.0
    %3103 = vmatprep.subr.mxu0 0.0
    %3104 = vmatpush1.msra.mxu0 0.0
    %3105 = vmatprep.subr.mxu0 0.0
    %3106 = vmatpush1.msra.mxu0 0.0
    %3107 = vmatprep.subr.mxu0 0.0
    %3108 = vmatpush1.msra.mxu0 0.0
    %3109 = vmatprep.subr.mxu0 0.0
    %3110 = vmatpush1.msra.mxu0 0.0
    %3111 = vmatprep.subr.mxu0 0.0
    %3112 = vmatpush1.msra.mxu0 0.0
    %3113 = vmatprep.subr.mxu0 0.0
    %3114 = vmatpush1.msra.mxu0 0.0
    %3115 = vmatprep.subr.mxu0 0.0
    %3116 = vmatpush1.msra.mxu0 0.0
    %3117 = vmatprep.subr.mxu0 0.0
    %3118 = vmatpush1.msra.mxu0 0.0
    %3119 = vmatprep.subr.mxu0 0.0
    %3120 = vmatpush1.msra.mxu0 0.0
    %3121 = vmatprep.subr.mxu0 0.0
    %3122 = vmatpush1.msra.mxu0 0.0
    %3123 = vmatprep.subr.mxu0 0.0
    %3124 = vmatpush1.msra.mxu0 0.0
    %3125 = vmatprep.subr.mxu0 0.0
    %3126 = vmatpush1.msra.mxu0 0.0
    %3127 = vmatprep.subr.mxu0 0.0
    %3128 = vmatpush1.msra.mxu0 0.0
    %3129 = vmatprep.subr.mxu0 0.0
    %3130 = vmatpush1.msra.mxu0 0.0
    %3131 = vmatprep.subr.mxu0 0.0
    %3132 = vmatpush1.msra.mxu0 0.0
    %3133 = vmatprep.subr.mxu0 0.0
    %3134 = vmatpush1.msra.mxu0 0.0
    %3135 = vmatprep.subr.mxu0 0.0
    %3136 = vmatpush1.msra.mxu0 0.0
    %3137 = vmatprep.subr.mxu0 0.0
    %3138 = vmatpush1.msra.mxu0 0.0
    %3139 = vmatprep.subr.mxu0 0.0
    %3140 = vmatpush1.msra.mxu0 0.0
    %3141 = vmatprep.subr.mxu0 0.0
    %3142 = vmatpush1.msra.mxu0 0.0
    %3143 = vmatprep.subr.mxu0 0.0
    %3144 = vmatpush1.msra.mxu0 0.0
    %3145 = vmatprep.subr.mxu0 0.0
    %3146 = vmatpush1.msra.mxu0 0.0
    %3147 = vmatprep.subr.mxu0 0.0
    %3148 = vmatpush1.msra.mxu0 0.0
    %3149 = vmatprep.subr.mxu0 0.0
    %3150 = vmatpush1.msra.mxu0 0.0
    %3151 = vmatprep.subr.mxu0 0.0
    %3152 = vmatpush1.msra.mxu0 0.0
    %3153 = vmatprep.subr.mxu0 0.0
    %3154 = vmatpush1.msra.mxu0 0.0
    %3155 = vmatprep.subr.mxu0 0.0
    %3156 = vmatpush1.msra.mxu0 0.0
    %3157 = vmatprep.mubr.f32.mxu0 0.0
    %3158 = vmatmul.mubr.f32.gmra.mrb[0].mxu0 %v1525
    %v3159 = vpop.f32.mrb[0].mxu0
    %v3160 = vadd.f32 0.0, %v3159
    %v3161 = vpop.f32.mrb[0].mxu0
    %3162 = vmatprep.mubr.f32.mxu0 0.0
    %3163 = vmatmul.mubr.f32.gmra.mrb[0].mxu0 %v3091
    %v3164 = vpop.f32.mrb[0].mxu0
    %v3165 = vadd.f32 0.0, %v3164
    %v3166 = vpop.f32.mrb[0].mxu0
    %3167 = vdwg.mxu0
    %v3168 = vadd.f32 %v3084, %v3160
    %v3169 = vadd.f32 %v3085, %v3165
    %v3170 = vmul.f32 %v3168, 0.5
    %v3171 = vmul.f32 %v3169, 0.5
    %v3172 = vmul.f32 %v3168, 0.70710677
    %v3173 = vmul.f32 %v3169, 0.70710677
    %v3174 = verf.f32.pop %v3172
    %v3175 = verf.f32.pop %v3173
    %v3176 = vadd.f32 %v3174, 1.0
    %v3177 = vadd.f32 %v3175, 1.0
    %v3178 = vmul.f32 %v3170, %v3176
    %v3179 = vmul.f32 %v3171, %v3177
    %v3180 = vld [vmem:[#allocation5 + $0x2d8] sm:$0xff]
    %v3181 = vld [vmem:[#allocation5 + $0x2e0] sm:$0xff]
    %v3183 = vsel %vm2532, %v3178, 0
    %v3186 = vsel %vm2532, %v3179, 0
    %3188 = vmatprep.subr.mxu0 0.0
    %3189 = vmatpush1.msra.mxu0 %v3180
    %3190 = vmatprep.subr.mxu0 0.0
    %3191 = vmatpush1.msra.mxu0 %v3181
    %3192 = vmatprep.subr.mxu0 0.0
    %3193 = vmatpush1.msra.mxu0 0.0
    %3194 = vmatprep.subr.mxu0 0.0
    %3195 = vmatpush1.msra.mxu0 0.0
    %3196 = vmatprep.subr.mxu0 0.0
    %3197 = vmatpush1.msra.mxu0 0.0
    %3198 = vmatprep.subr.mxu0 0.0
    %3199 = vmatpush1.msra.mxu0 0.0
    %3200 = vmatprep.subr.mxu0 0.0
    %3201 = vmatpush1.msra.mxu0 0.0
    %3202 = vmatprep.subr.mxu0 0.0
    %3203 = vmatpush1.msra.mxu0 0.0
    %3204 = vmatprep.subr.mxu0 0.0
    %3205 = vmatpush1.msra.mxu0 0.0
    %3206 = vmatprep.subr.mxu0 0.0
    %3207 = vmatpush1.msra.mxu0 0.0
    %3208 = vmatprep.subr.mxu0 0.0
    %3209 = vmatpush1.msra.mxu0 0.0
    %3210 = vmatprep.subr.mxu0 0.0
    %3211 = vmatpush1.msra.mxu0 0.0
    %3212 = vmatprep.subr.mxu0 0.0
    %3213 = vmatpush1.msra.mxu0 0.0
    %3214 = vmatprep.subr.mxu0 0.0
    %3215 = vmatpush1.msra.mxu0 0.0
    %3216 = vmatprep.subr.mxu0 0.0
    %3217 = vmatpush1.msra.mxu0 0.0
    %3218 = vmatprep.subr.mxu0 0.0
    %3219 = vmatpush1.msra.mxu0 0.0
    %3220 = vmatprep.subr.mxu0 0.0
    %3221 = vmatpush1.msra.mxu0 0.0
    %3222 = vmatprep.subr.mxu0 0.0
    %3223 = vmatpush1.msra.mxu0 0.0
    %3224 = vmatprep.subr.mxu0 0.0
    %3225 = vmatpush1.msra.mxu0 0.0
    %3226 = vmatprep.subr.mxu0 0.0
    %3227 = vmatpush1.msra.mxu0 0.0
    %3228 = vmatprep.subr.mxu0 0.0
    %3229 = vmatpush1.msra.mxu0 0.0
    %3230 = vmatprep.subr.mxu0 0.0
    %3231 = vmatpush1.msra.mxu0 0.0
    %3232 = vmatprep.subr.mxu0 0.0
    %3233 = vmatpush1.msra.mxu0 0.0
    %3234 = vmatprep.subr.mxu0 0.0
    %3235 = vmatpush1.msra.mxu0 0.0
    %3236 = vmatprep.subr.mxu0 0.0
    %3237 = vmatpush1.msra.mxu0 0.0
    %3238 = vmatprep.subr.mxu0 0.0
    %3239 = vmatpush1.msra.mxu0 0.0
    %3240 = vmatprep.subr.mxu0 0.0
    %3241 = vmatpush1.msra.mxu0 0.0
    %3242 = vmatprep.subr.mxu0 0.0
    %3243 = vmatpush1.msra.mxu0 0.0
    %3244 = vmatprep.subr.mxu0 0.0
    %3245 = vmatpush1.msra.mxu0 0.0
    %3246 = vmatprep.subr.mxu0 0.0
    %3247 = vmatpush1.msra.mxu0 0.0
    %3248 = vmatprep.subr.mxu0 0.0
    %3249 = vmatpush1.msra.mxu0 0.0
    %3250 = vmatprep.subr.mxu0 0.0
    %3251 = vmatpush1.msra.mxu0 0.0
    %3252 = vmatprep.mubr.f32.mxu0 0.0
    %3253 = vmatmul.mubr.f32.gmra.mrb[0].mxu0 %v3183
    %v3254 = vpop.f32.mrb[0].mxu0
    %v3255 = vadd.f32 0.0, %v3254
    %v3256 = vpop.f32.mrb[0].mxu0
    %3257 = vmatprep.mubr.f32.mxu0 0.0
    %3258 = vmatmul.mubr.f32.gmra.mrb[0].mxu0 %v3186
    %v3259 = vpop.f32.mrb[0].mxu0
    %v3260 = vadd.f32 0.0, %v3259
    %v3261 = vpop.f32.mrb[0].mxu0
    %3262 = vdwg.mxu0
    %v3263 = vld [vmem:[#allocation5 + $0x2e8] sm:$0xff]
    %v3264 = vld [vmem:[#allocation5 + $0x2f0] sm:$0xff]
    %3265 = vmatprep.subr.mxu0 0.0
    %3266 = vmatpush1.msra.mxu0 %v3263
    %3267 = vmatprep.subr.mxu0 0.0
    %3268 = vmatpush1.msra.mxu0 %v3264
    %3269 = vmatprep.subr.mxu0 0.0
    %3270 = vmatpush1.msra.mxu0 0.0
    %3271 = vmatprep.subr.mxu0 0.0
    %3272 = vmatpush1.msra.mxu0 0.0
    %3273 = vmatprep.subr.mxu0 0.0
    %3274 = vmatpush1.msra.mxu0 0.0
    %3275 = vmatprep.subr.mxu0 0.0
    %3276 = vmatpush1.msra.mxu0 0.0
    %3277 = vmatprep.subr.mxu0 0.0
    %3278 = vmatpush1.msra.mxu0 0.0
    %3279 = vmatprep.subr.mxu0 0.0
    %3280 = vmatpush1.msra.mxu0 0.0
    %3281 = vmatprep.subr.mxu0 0.0
    %3282 = vmatpush1.msra.mxu0 0.0
    %3283 = vmatprep.subr.mxu0 0.0
    %3284 = vmatpush1.msra.mxu0 0.0
    %3285 = vmatprep.subr.mxu0 0.0
    %3286 = vmatpush1.msra.mxu0 0.0
    %3287 = vmatprep.subr.mxu0 0.0
    %3288 = vmatpush1.msra.mxu0 0.0
    %3289 = vmatprep.subr.mxu0 0.0
    %3290 = vmatpush1.msra.mxu0 0.0
    %3291 = vmatprep.subr.mxu0 0.0
    %3292 = vmatpush1.msra.mxu0 0.0
    %3293 = vmatprep.subr.mxu0 0.0
    %3294 = vmatpush1.msra.mxu0 0.0
    %3295 = vmatprep.subr.mxu0 0.0
    %3296 = vmatpush1.msra.mxu0 0.0
    %3297 = vmatprep.subr.mxu0 0.0
    %3298 = vmatpush1.msra.mxu0 0.0
    %3299 = vmatprep.subr.mxu0 0.0
    %3300 = vmatpush1.msra.mxu0 0.0
    %3301 = vmatprep.subr.mxu0 0.0
    %3302 = vmatpush1.msra.mxu0 0.0
    %3303 = vmatprep.subr.mxu0 0.0
    %3304 = vmatpush1.msra.mxu0 0.0
    %3305 = vmatprep.subr.mxu0 0.0
    %3306 = vmatpush1.msra.mxu0 0.0
    %3307 = vmatprep.subr.mxu0 0.0
    %3308 = vmatpush1.msra.mxu0 0.0
    %3309 = vmatprep.subr.mxu0 0.0
    %3310 = vmatpush1.msra.mxu0 0.0
    %3311 = vmatprep.subr.mxu0 0.0
    %3312 = vmatpush1.msra.mxu0 0.0
    %3313 = vmatprep.subr.mxu0 0.0
    %3314 = vmatpush1.msra.mxu0 0.0
    %3315 = vmatprep.subr.mxu0 0.0
    %3316 = vmatpush1.msra.mxu0 0.0
    %3317 = vmatprep.subr.mxu0 0.0
    %3318 = vmatpush1.msra.mxu0 0.0
    %3319 = vmatprep.subr.mxu0 0.0
    %3320 = vmatpush1.msra.mxu0 0.0
    %3321 = vmatprep.subr.mxu0 0.0
    %3322 = vmatpush1.msra.mxu0 0.0
    %3323 = vmatprep.subr.mxu0 0.0
    %3324 = vmatpush1.msra.mxu0 0.0
    %3325 = vmatprep.subr.mxu0 0.0
    %3326 = vmatpush1.msra.mxu0 0.0
    %3327 = vmatprep.subr.mxu0 0.0
    %3328 = vmatpush1.msra.mxu0 0.0
    %3329 = vmatprep.mubr.f32.mxu0 0.0
    %3330 = vmatmul.mubr.f32.gmra.mrb[0].mxu0 %v3183
    %v3331 = vpop.f32.mrb[0].mxu0
    %v3332 = vadd.f32 0.0, %v3331
    %v3333 = vpop.f32.mrb[0].mxu0
    %3334 = vmatprep.mubr.f32.mxu0 0.0
    %3335 = vmatmul.mubr.f32.gmra.mrb[0].mxu0 %v3186
    %v3336 = vpop.f32.mrb[0].mxu0
    %v3337 = vadd.f32 0.0, %v3336
    %v3338 = vpop.f32.mrb[0].mxu0
    %3339 = vdwg.mxu0
    %v3340 = vld [vmem:[#allocation5 + $0x278] sm:$0xff]
    %v3341 = vld [vmem:[#allocation5 + $0x280] sm:$0xff]
    %vm3342 = vcmask 392192
    %v3344 = vsel %vm3342, %v3340, 0
    %v3347 = vsel %vm3342, %v3341, 0
    %3349 = vmatprep.subr.mxu0 0.0
    %3350 = vmatpush1.msra.mxu0 %v3255
    %3351 = vmatprep.subr.mxu0 0.0
    %3352 = vmatpush1.msra.mxu0 %v3260
    %3353 = vmatprep.subr.mxu0 0.0
    %3354 = vmatpush1.msra.mxu0 %v3178
    %3355 = vmatprep.subr.mxu0 0.0
    %3356 = vmatpush1.msra.mxu0 %v3179
    %3357 = vmatprep.subr.mxu0 0.0
    %3358 = vmatpush1.msra.mxu0 %v3332
    %3359 = vmatprep.subr.mxu0 0.0
    %3360 = vmatpush1.msra.mxu0 %v3337
    %3361 = vmatprep.subr.mxu0 0.0
    %3362 = vmatpush1.msra.mxu0 0.0
    %3363 = vmatprep.subr.mxu0 0.0
    %3364 = vmatpush1.msra.mxu0 0.0
    %3365 = vmatprep.subr.mxu0 0.0
    %3366 = vmatpush1.msra.mxu0 0.0
    %3367 = vmatprep.subr.mxu0 0.0
    %3368 = vmatpush1.msra.mxu0 0.0
    %3369 = vmatprep.subr.mxu0 0.0
    %3370 = vmatpush1.msra.mxu0 0.0
    %3371 = vmatprep.subr.mxu0 0.0
    %3372 = vmatpush1.msra.mxu0 0.0
    %3373 = vmatprep.subr.mxu0 0.0
    %3374 = vmatpush1.msra.mxu0 0.0
    %3375 = vmatprep.subr.mxu0 0.0
    %3376 = vmatpush1.msra.mxu0 0.0
    %3377 = vmatprep.subr.mxu0 0.0
    %3378 = vmatpush1.msra.mxu0 0.0
    %3379 = vmatprep.subr.mxu0 0.0
    %3380 = vmatpush1.msra.mxu0 0.0
    %3381 = vmatprep.subr.mxu0 0.0
    %3382 = vmatpush1.msra.mxu0 0.0
    %3383 = vmatprep.subr.mxu0 0.0
    %3384 = vmatpush1.msra.mxu0 0.0
    %3385 = vmatprep.subr.mxu0 0.0
    %3386 = vmatpush1.msra.mxu0 0.0
    %3387 = vmatprep.subr.mxu0 0.0
    %3388 = vmatpush1.msra.mxu0 0.0
    %3389 = vmatprep.subr.mxu0 0.0
    %3390 = vmatpush1.msra.mxu0 0.0
    %3391 = vmatprep.subr.mxu0 0.0
    %3392 = vmatpush1.msra.mxu0 0.0
    %3393 = vmatprep.subr.mxu0 0.0
    %3394 = vmatpush1.msra.mxu0 0.0
    %3395 = vmatprep.subr.mxu0 0.0
    %3396 = vmatpush1.msra.mxu0 0.0
    %3397 = vmatprep.subr.mxu0 0.0
    %3398 = vmatpush1.msra.mxu0 0.0
    %3399 = vmatprep.subr.mxu0 0.0
    %3400 = vmatpush1.msra.mxu0 0.0
    %3401 = vmatprep.subr.mxu0 0.0
    %3402 = vmatpush1.msra.mxu0 0.0
    %3403 = vmatprep.subr.mxu0 0.0
    %3404 = vmatpush1.msra.mxu0 0.0
    %3405 = vmatprep.subr.mxu0 0.0
    %3406 = vmatpush1.msra.mxu0 0.0
    %3407 = vmatprep.subr.mxu0 0.0
    %3408 = vmatpush1.msra.mxu0 0.0
    %3409 = vmatprep.subr.mxu0 0.0
    %3410 = vmatpush1.msra.mxu0 0.0
    %3411 = vmatprep.subr.mxu0 0.0
    %3412 = vmatpush1.msra.mxu0 0.0
    %3413 = vmatprep.mubr.f32.mxu0 0.0
    %3414 = vmatmul.mubr.f32.gmra.mrb[0].mxu0 %v3344
    %v3415 = vpop.f32.mrb[0].mxu0
    %v3416 = vadd.f32 0.0, %v3415
    %v3417 = vpop.f32.mrb[0].mxu0
    %3418 = vmatprep.mubr.f32.mxu0 0.0
    %3419 = vmatmul.mubr.f32.gmra.mrb[0].mxu0 %v3347
    %v3420 = vpop.f32.mrb[0].mxu0
    %v3421 = vadd.f32 0.0, %v3420
    %v3422 = vpop.f32.mrb[0].mxu0
    %3423 = vdwg.mxu0
    %v3425 = vsel %vm2532, %v3416, 0
    %v3428 = vsel %vm2532, %v3421, 0
    %3430 = vmatprep.subr.mxu0 0.0
    %3431 = vmatpush1.msra.mxu0 %v2530
    %3432 = vmatprep.subr.mxu0 0.0
    %3433 = vmatpush1.msra.mxu0 %v2531
    %3434 = vmatprep.subr.mxu0 0.0
    %3435 = vmatpush1.msra.mxu0 0.0
    %3436 = vmatprep.subr.mxu0 0.0
    %3437 = vmatpush1.msra.mxu0 0.0
    %3438 = vmatprep.subr.mxu0 0.0
    %3439 = vmatpush1.msra.mxu0 0.0
    %3440 = vmatprep.subr.mxu0 0.0
    %3441 = vmatpush1.msra.mxu0 0.0
    %3442 = vmatprep.subr.mxu0 0.0
    %3443 = vmatpush1.msra.mxu0 0.0
    %3444 = vmatprep.subr.mxu0 0.0
    %3445 = vmatpush1.msra.mxu0 0.0
    %3446 = vmatprep.subr.mxu0 0.0
    %3447 = vmatpush1.msra.mxu0 0.0
    %3448 = vmatprep.subr.mxu0 0.0
    %3449 = vmatpush1.msra.mxu0 0.0
    %3450 = vmatprep.subr.mxu0 0.0
    %3451 = vmatpush1.msra.mxu0 0.0
    %3452 = vmatprep.subr.mxu0 0.0
    %3453 = vmatpush1.msra.mxu0 0.0
    %3454 = vmatprep.subr.mxu0 0.0
    %3455 = vmatpush1.msra.mxu0 0.0
    %3456 = vmatprep.subr.mxu0 0.0
    %3457 = vmatpush1.msra.mxu0 0.0
    %3458 = vmatprep.subr.mxu0 0.0
    %3459 = vmatpush1.msra.mxu0 0.0
    %3460 = vmatprep.subr.mxu0 0.0
    %3461 = vmatpush1.msra.mxu0 0.0
    %3462 = vmatprep.subr.mxu0 0.0
    %3463 = vmatpush1.msra.mxu0 0.0
    %3464 = vmatprep.subr.mxu0 0.0
    %3465 = vmatpush1.msra.mxu0 0.0
    %3466 = vmatprep.subr.mxu0 0.0
    %3467 = vmatpush1.msra.mxu0 0.0
    %3468 = vmatprep.subr.mxu0 0.0
    %3469 = vmatpush1.msra.mxu0 0.0
    %3470 = vmatprep.subr.mxu0 0.0
    %3471 = vmatpush1.msra.mxu0 0.0
    %3472 = vmatprep.subr.mxu0 0.0
    %3473 = vmatpush1.msra.mxu0 0.0
    %3474 = vmatprep.subr.mxu0 0.0
    %3475 = vmatpush1.msra.mxu0 0.0
    %3476 = vmatprep.subr.mxu0 0.0
    %3477 = vmatpush1.msra.mxu0 0.0
    %3478 = vmatprep.subr.mxu0 0.0
    %3479 = vmatpush1.msra.mxu0 0.0
    %3480 = vmatprep.subr.mxu0 0.0
    %3481 = vmatpush1.msra.mxu0 0.0
    %3482 = vmatprep.subr.mxu0 0.0
    %3483 = vmatpush1.msra.mxu0 0.0
    %3484 = vmatprep.subr.mxu0 0.0
    %3485 = vmatpush1.msra.mxu0 0.0
    %3486 = vmatprep.subr.mxu0 0.0
    %3487 = vmatpush1.msra.mxu0 0.0
    %3488 = vmatprep.subr.mxu0 0.0
    %3489 = vmatpush1.msra.mxu0 0.0
    %3490 = vmatprep.subr.mxu0 0.0
    %3491 = vmatpush1.msra.mxu0 0.0
    %3492 = vmatprep.subr.mxu0 0.0
    %3493 = vmatpush1.msra.mxu0 0.0
    %3494 = vmatprep.mubr.f32.mxu0 0.0
    %3495 = vmatmul.mubr.f32.gmra.mrb[0].mxu0 %v3425
    %v3496 = vpop.f32.mrb[0].mxu0
    %v3497 = vadd.f32 0.0, %v3496
    %v3498 = vpop.f32.mrb[0].mxu0
    %3499 = vmatprep.mubr.f32.mxu0 0.0
    %3500 = vmatmul.mubr.f32.gmra.mrb[0].mxu0 %v3428
    %v3501 = vpop.f32.mrb[0].mxu0
    %v3502 = vadd.f32 0.0, %v3501
    %v3503 = vpop.f32.mrb[0].mxu0
    %3504 = vdwg.mxu0
    %v3505 = vsub.f32 %v3416, %v3497
    %v3506 = vsub.f32 %v3421, %v3502
    %v3507 = vmul.f32 %v3505, %v3505
    %v3508 = vmul.f32 %v3506, %v3506
    %v3510 = vsel %vm2532, %v3507, 0
    %v3513 = vsel %vm2532, %v3508, 0
    %3515 = vmatprep.subr.mxu0 0.0
    %3516 = vmatpush1.msra.mxu0 %v2530
    %3517 = vmatprep.subr.mxu0 0.0
    %3518 = vmatpush1.msra.mxu0 %v2531
    %3519 = vmatprep.subr.mxu0 0.0
    %3520 = vmatpush1.msra.mxu0 0.0
    %3521 = vmatprep.subr.mxu0 0.0
    %3522 = vmatpush1.msra.mxu0 0.0
    %3523 = vmatprep.subr.mxu0 0.0
    %3524 = vmatpush1.msra.mxu0 0.0
    %3525 = vmatprep.subr.mxu0 0.0
    %3526 = vmatpush1.msra.mxu0 0.0
    %3527 = vmatprep.subr.mxu0 0.0
    %3528 = vmatpush1.msra.mxu0 0.0
    %3529 = vmatprep.subr.mxu0 0.0
    %3530 = vmatpush1.msra.mxu0 0.0
    %3531 = vmatprep.subr.mxu0 0.0
    %3532 = vmatpush1.msra.mxu0 0.0
    %3533 = vmatprep.subr.mxu0 0.0
    %3534 = vmatpush1.msra.mxu0 0.0
    %3535 = vmatprep.subr.mxu0 0.0
    %3536 = vmatpush1.msra.mxu0 0.0
    %3537 = vmatprep.subr.mxu0 0.0
    %3538 = vmatpush1.msra.mxu0 0.0
    %3539 = vmatprep.subr.mxu0 0.0
    %3540 = vmatpush1.msra.mxu0 0.0
    %3541 = vmatprep.subr.mxu0 0.0
    %3542 = vmatpush1.msra.mxu0 0.0
    %3543 = vmatprep.subr.mxu0 0.0
    %3544 = vmatpush1.msra.mxu0 0.0
    %3545 = vmatprep.subr.mxu0 0.0
    %3546 = vmatpush1.msra.mxu0 0.0
    %3547 = vmatprep.subr.mxu0 0.0
    %3548 = vmatpush1.msra.mxu0 0.0
    %3549 = vmatprep.subr.mxu0 0.0
    %3550 = vmatpush1.msra.mxu0 0.0
    %3551 = vmatprep.subr.mxu0 0.0
    %3552 = vmatpush1.msra.mxu0 0.0
    %3553 = vmatprep.subr.mxu0 0.0
    %3554 = vmatpush1.msra.mxu0 0.0
    %3555 = vmatprep.subr.mxu0 0.0
    %3556 = vmatpush1.msra.mxu0 0.0
    %3557 = vmatprep.subr.mxu0 0.0
    %3558 = vmatpush1.msra.mxu0 0.0
    %3559 = vmatprep.subr.mxu0 0.0
    %3560 = vmatpush1.msra.mxu0 0.0
    %3561 = vmatprep.subr.mxu0 0.0
    %3562 = vmatpush1.msra.mxu0 0.0
    %3563 = vmatprep.subr.mxu0 0.0
    %3564 = vmatpush1.msra.mxu0 0.0
    %3565 = vmatprep.subr.mxu0 0.0
    %3566 = vmatpush1.msra.mxu0 0.0
    %3567 = vmatprep.subr.mxu0 0.0
    %3568 = vmatpush1.msra.mxu0 0.0
    %3569 = vmatprep.subr.mxu0 0.0
    %3570 = vmatpush1.msra.mxu0 0.0
    %3571 = vmatprep.subr.mxu0 0.0
    %3572 = vmatpush1.msra.mxu0 0.0
    %3573 = vmatprep.subr.mxu0 0.0
    %3574 = vmatpush1.msra.mxu0 0.0
    %3575 = vmatprep.subr.mxu0 0.0
    %3576 = vmatpush1.msra.mxu0 0.0
    %3577 = vmatprep.subr.mxu0 0.0
    %3578 = vmatpush1.msra.mxu0 0.0
    %3579 = vmatprep.mubr.f32.mxu0 0.0
    %3580 = vmatmul.mubr.f32.gmra.mrb[0].mxu0 %v3510
    %v3581 = vpop.f32.mrb[0].mxu0
    %v3582 = vadd.f32 1e-05, %v3581
    %v3583 = vpop.f32.mrb[0].mxu0
    %3584 = vmatprep.mubr.f32.mxu0 0.0
    %3585 = vmatmul.mubr.f32.gmra.mrb[0].mxu0 %v3513
    %v3586 = vpop.f32.mrb[0].mxu0
    %v3587 = vadd.f32 1e-05, %v3586
    %v3588 = vpop.f32.mrb[0].mxu0
    %3589 = vdwg.mxu0
    %v3590 = vrsqrt.pop %v3582
    %v3591 = vrsqrt.pop %v3587
    %v3592 = vmul.f32 %v3505, %v3590
    %v3593 = vmul.f32 %v3506, %v3591
    %v3594 = vld [vmem:[#allocation5 + $0x288] sm:$0xff]
    %v3595 = vld [vmem:[#allocation5 + $0x290] sm:$0xff]
    %3597 = vset.pattern.permute.xlu0 0
    %3598 = vperm.xlu0 %3597, %v3594
    %v3599 = vpop.permute.xlu0 %3598
    %3602 = vset.pattern.permute.xlu0 0
    %3603 = vperm.xlu0 %3602, %v3595
    %v3604 = vpop.permute.xlu0 %3603
    %v3606 = vmul.f32 %v3592, %v3599
    %v3607 = vmul.f32 %v3593, %v3604
    %v3608 = vld [vmem:[#allocation5 + $0x298] sm:$0xff]
    %v3609 = vld [vmem:[#allocation5 + $0x2a0] sm:$0xff]
    %3611 = vset.pattern.permute.xlu0 0
    %3612 = vperm.xlu0 %3611, %v3608
    %v3613 = vpop.permute.xlu0 %3612
    %3616 = vset.pattern.permute.xlu0 0
    %3617 = vperm.xlu0 %3616, %v3609
    %v3618 = vpop.permute.xlu0 %3617
    %v3620 = vadd.f32 %v3606, %v3613
    %v3621 = vadd.f32 %v3607, %v3618
    %v3622 = vmul.f32 %v3620, 0.5
    %v3623 = vmul.f32 %v3621, 0.5
    %v3624 = vmul.f32 %v3620, 0.70710677
    %v3625 = vmul.f32 %v3621, 0.70710677
    %v3626 = verf.f32.pop %v3624
    %v3627 = verf.f32.pop %v3625
    %v3628 = vadd.f32 %v3626, 1.0
    %v3629 = vadd.f32 %v3627, 1.0
    %v3630 = vmul.f32 %v3622, %v3628
    %v3631 = vmul.f32 %v3623, %v3629
    %v3633 = vsel %vm2532, %v3630, 0
    %v3636 = vsel %vm2532, %v3631, 0
    %3638 = vmatprep.subr.mxu0 0.0
    %3639 = vmatpush1.msra.mxu0 %v3180
    %3640 = vmatprep.subr.mxu0 0.0
    %3641 = vmatpush1.msra.mxu0 %v3181
    %3642 = vmatprep.subr.mxu0 0.0
    %3643 = vmatpush1.msra.mxu0 0.0
    %3644 = vmatprep.subr.mxu0 0.0
    %3645 = vmatpush1.msra.mxu0 0.0
    %3646 = vmatprep.subr.mxu0 0.0
    %3647 = vmatpush1.msra.mxu0 0.0
    %3648 = vmatprep.subr.mxu0 0.0
    %3649 = vmatpush1.msra.mxu0 0.0
    %3650 = vmatprep.subr.mxu0 0.0
    %3651 = vmatpush1.msra.mxu0 0.0
    %3652 = vmatprep.subr.mxu0 0.0
    %3653 = vmatpush1.msra.mxu0 0.0
    %3654 = vmatprep.subr.mxu0 0.0
    %3655 = vmatpush1.msra.mxu0 0.0
    %3656 = vmatprep.subr.mxu0 0.0
    %3657 = vmatpush1.msra.mxu0 0.0
    %3658 = vmatprep.subr.mxu0 0.0
    %3659 = vmatpush1.msra.mxu0 0.0
    %3660 = vmatprep.subr.mxu0 0.0
    %3661 = vmatpush1.msra.mxu0 0.0
    %3662 = vmatprep.subr.mxu0 0.0
    %3663 = vmatpush1.msra.mxu0 0.0
    %3664 = vmatprep.subr.mxu0 0.0
    %3665 = vmatpush1.msra.mxu0 0.0
    %3666 = vmatprep.subr.mxu0 0.0
    %3667 = vmatpush1.msra.mxu0 0.0
    %3668 = vmatprep.subr.mxu0 0.0
    %3669 = vmatpush1.msra.mxu0 0.0
    %3670 = vmatprep.subr.mxu0 0.0
    %3671 = vmatpush1.msra.mxu0 0.0
    %3672 = vmatprep.subr.mxu0 0.0
    %3673 = vmatpush1.msra.mxu0 0.0
    %3674 = vmatprep.subr.mxu0 0.0
    %3675 = vmatpush1.msra.mxu0 0.0
    %3676 = vmatprep.subr.mxu0 0.0
    %3677 = vmatpush1.msra.mxu0 0.0
    %3678 = vmatprep.subr.mxu0 0.0
    %3679 = vmatpush1.msra.mxu0 0.0
    %3680 = vmatprep.subr.mxu0 0.0
    %3681 = vmatpush1.msra.mxu0 0.0
    %3682 = vmatprep.subr.mxu0 0.0
    %3683 = vmatpush1.msra.mxu0 0.0
    %3684 = vmatprep.subr.mxu0 0.0
    %3685 = vmatpush1.msra.mxu0 0.0
    %3686 = vmatprep.subr.mxu0 0.0
    %3687 = vmatpush1.msra.mxu0 0.0
    %3688 = vmatprep.subr.mxu0 0.0
    %3689 = vmatpush1.msra.mxu0 0.0
    %3690 = vmatprep.subr.mxu0 0.0
    %3691 = vmatpush1.msra.mxu0 0.0
    %3692 = vmatprep.subr.mxu0 0.0
    %3693 = vmatpush1.msra.mxu0 0.0
    %3694 = vmatprep.subr.mxu0 0.0
    %3695 = vmatpush1.msra.mxu0 0.0
    %3696 = vmatprep.subr.mxu0 0.0
    %3697 = vmatpush1.msra.mxu0 0.0
    %3698 = vmatprep.subr.mxu0 0.0
    %3699 = vmatpush1.msra.mxu0 0.0
    %3700 = vmatprep.subr.mxu0 0.0
    %3701 = vmatpush1.msra.mxu0 0.0
    %3702 = vmatprep.mubr.f32.mxu0 0.0
    %3703 = vmatmul.mubr.f32.gmra.mrb[0].mxu0 %v3633
    %v3704 = vpop.f32.mrb[0].mxu0
    %v3705 = vadd.f32 0.0, %v3704
    %v3706 = vpop.f32.mrb[0].mxu0
    %3707 = vmatprep.mubr.f32.mxu0 0.0
    %3708 = vmatmul.mubr.f32.gmra.mrb[0].mxu0 %v3636
    %v3709 = vpop.f32.mrb[0].mxu0
    %v3710 = vadd.f32 0.0, %v3709
    %v3711 = vpop.f32.mrb[0].mxu0
    %3712 = vdwg.mxu0
    %3713 = vmatprep.subr.mxu0 0.0
    %3714 = vmatpush1.msra.mxu0 %v3263
    %3715 = vmatprep.subr.mxu0 0.0
    %3716 = vmatpush1.msra.mxu0 %v3264
    %3717 = vmatprep.subr.mxu0 0.0
    %3718 = vmatpush1.msra.mxu0 0.0
    %3719 = vmatprep.subr.mxu0 0.0
    %3720 = vmatpush1.msra.mxu0 0.0
    %3721 = vmatprep.subr.mxu0 0.0
    %3722 = vmatpush1.msra.mxu0 0.0
    %3723 = vmatprep.subr.mxu0 0.0
    %3724 = vmatpush1.msra.mxu0 0.0
    %3725 = vmatprep.subr.mxu0 0.0
    %3726 = vmatpush1.msra.mxu0 0.0
    %3727 = vmatprep.subr.mxu0 0.0
    %3728 = vmatpush1.msra.mxu0 0.0
    %3729 = vmatprep.subr.mxu0 0.0
    %3730 = vmatpush1.msra.mxu0 0.0
    %3731 = vmatprep.subr.mxu0 0.0
    %3732 = vmatpush1.msra.mxu0 0.0
    %3733 = vmatprep.subr.mxu0 0.0
    %3734 = vmatpush1.msra.mxu0 0.0
    %3735 = vmatprep.subr.mxu0 0.0
    %3736 = vmatpush1.msra.mxu0 0.0
    %3737 = vmatprep.subr.mxu0 0.0
    %3738 = vmatpush1.msra.mxu0 0.0
    %3739 = vmatprep.subr.mxu0 0.0
    %3740 = vmatpush1.msra.mxu0 0.0
    %3741 = vmatprep.subr.mxu0 0.0
    %3742 = vmatpush1.msra.mxu0 0.0
    %3743 = vmatprep.subr.mxu0 0.0
    %3744 = vmatpush1.msra.mxu0 0.0
    %3745 = vmatprep.subr.mxu0 0.0
    %3746 = vmatpush1.msra.mxu0 0.0
    %3747 = vmatprep.subr.mxu0 0.0
    %3748 = vmatpush1.msra.mxu0 0.0
    %3749 = vmatprep.subr.mxu0 0.0
    %3750 = vmatpush1.msra.mxu0 0.0
    %3751 = vmatprep.subr.mxu0 0.0
    %3752 = vmatpush1.msra.mxu0 0.0
    %3753 = vmatprep.subr.mxu0 0.0
    %3754 = vmatpush1.msra.mxu0 0.0
    %3755 = vmatprep.subr.mxu0 0.0
    %3756 = vmatpush1.msra.mxu0 0.0
    %3757 = vmatprep.subr.mxu0 0.0
    %3758 = vmatpush1.msra.mxu0 0.0
    %3759 = vmatprep.subr.mxu0 0.0
    %3760 = vmatpush1.msra.mxu0 0.0
    %3761 = vmatprep.subr.mxu0 0.0
    %3762 = vmatpush1.msra.mxu0 0.0
    %3763 = vmatprep.subr.mxu0 0.0
    %3764 = vmatpush1.msra.mxu0 0.0
    %3765 = vmatprep.subr.mxu0 0.0
    %3766 = vmatpush1.msra.mxu0 0.0
    %3767 = vmatprep.subr.mxu0 0.0
    %3768 = vmatpush1.msra.mxu0 0.0
    %3769 = vmatprep.subr.mxu0 0.0
    %3770 = vmatpush1.msra.mxu0 0.0
    %3771 = vmatprep.subr.mxu0 0.0
    %3772 = vmatpush1.msra.mxu0 0.0
    %3773 = vmatprep.subr.mxu0 0.0
    %3774 = vmatpush1.msra.mxu0 0.0
    %3775 = vmatprep.subr.mxu0 0.0
    %3776 = vmatpush1.msra.mxu0 0.0
    %3777 = vmatprep.mubr.f32.mxu0 0.0
    %3778 = vmatmul.mubr.f32.gmra.mrb[0].mxu0 %v3633
    %v3779 = vpop.f32.mrb[0].mxu0
    %v3780 = vadd.f32 0.0, %v3779
    %v3781 = vpop.f32.mrb[0].mxu0
    %3782 = vmatprep.mubr.f32.mxu0 0.0
    %3783 = vmatmul.mubr.f32.gmra.mrb[0].mxu0 %v3636
    %v3784 = vpop.f32.mrb[0].mxu0
    %v3785 = vadd.f32 0.0, %v3784
    %v3786 = vpop.f32.mrb[0].mxu0
    %3787 = vdwg.mxu0
    %v3788 = vld [vmem:[#allocation5 + $0x2a8] sm:$0xff]
    %v3789 = vld [vmem:[#allocation5 + $0x2b0] sm:$0xff]
    %v3791 = vsel %vm3342, %v3788, 0
    %v3794 = vsel %vm3342, %v3789, 0
    %3796 = vmatprep.subr.mxu0 0.0
    %3797 = vmatpush1.msra.mxu0 %v3705
    %3798 = vmatprep.subr.mxu0 0.0
    %3799 = vmatpush1.msra.mxu0 %v3710
    %3800 = vmatprep.subr.mxu0 0.0
    %3801 = vmatpush1.msra.mxu0 %v3630
    %3802 = vmatprep.subr.mxu0 0.0
    %3803 = vmatpush1.msra.mxu0 %v3631
    %3804 = vmatprep.subr.mxu0 0.0
    %3805 = vmatpush1.msra.mxu0 %v3780
    %3806 = vmatprep.subr.mxu0 0.0
    %3807 = vmatpush1.msra.mxu0 %v3785
    %3808 = vmatprep.subr.mxu0 0.0
    %3809 = vmatpush1.msra.mxu0 0.0
    %3810 = vmatprep.subr.mxu0 0.0
    %3811 = vmatpush1.msra.mxu0 0.0
    %3812 = vmatprep.subr.mxu0 0.0
    %3813 = vmatpush1.msra.mxu0 0.0
    %3814 = vmatprep.subr.mxu0 0.0
    %3815 = vmatpush1.msra.mxu0 0.0
    %3816 = vmatprep.subr.mxu0 0.0
    %3817 = vmatpush1.msra.mxu0 0.0
    %3818 = vmatprep.subr.mxu0 0.0
    %3819 = vmatpush1.msra.mxu0 0.0
    %3820 = vmatprep.subr.mxu0 0.0
    %3821 = vmatpush1.msra.mxu0 0.0
    %3822 = vmatprep.subr.mxu0 0.0
    %3823 = vmatpush1.msra.mxu0 0.0
    %3824 = vmatprep.subr.mxu0 0.0
    %3825 = vmatpush1.msra.mxu0 0.0
    %3826 = vmatprep.subr.mxu0 0.0
    %3827 = vmatpush1.msra.mxu0 0.0
    %3828 = vmatprep.subr.mxu0 0.0
    %3829 = vmatpush1.msra.mxu0 0.0
    %3830 = vmatprep.subr.mxu0 0.0
    %3831 = vmatpush1.msra.mxu0 0.0
    %3832 = vmatprep.subr.mxu0 0.0
    %3833 = vmatpush1.msra.mxu0 0.0
    %3834 = vmatprep.subr.mxu0 0.0
    %3835 = vmatpush1.msra.mxu0 0.0
    %3836 = vmatprep.subr.mxu0 0.0
    %3837 = vmatpush1.msra.mxu0 0.0
    %3838 = vmatprep.subr.mxu0 0.0
    %3839 = vmatpush1.msra.mxu0 0.0
    %3840 = vmatprep.subr.mxu0 0.0
    %3841 = vmatpush1.msra.mxu0 0.0
    %3842 = vmatprep.subr.mxu0 0.0
    %3843 = vmatpush1.msra.mxu0 0.0
    %3844 = vmatprep.subr.mxu0 0.0
    %3845 = vmatpush1.msra.mxu0 0.0
    %3846 = vmatprep.subr.mxu0 0.0
    %3847 = vmatpush1.msra.mxu0 0.0
    %3848 = vmatprep.subr.mxu0 0.0
    %3849 = vmatpush1.msra.mxu0 0.0
    %3850 = vmatprep.subr.mxu0 0.0
    %3851 = vmatpush1.msra.mxu0 0.0
    %3852 = vmatprep.subr.mxu0 0.0
    %3853 = vmatpush1.msra.mxu0 0.0
    %3854 = vmatprep.subr.mxu0 0.0
    %3855 = vmatpush1.msra.mxu0 0.0
    %3856 = vmatprep.subr.mxu0 0.0
    %3857 = vmatpush1.msra.mxu0 0.0
    %3858 = vmatprep.subr.mxu0 0.0
    %3859 = vmatpush1.msra.mxu0 0.0
    %3860 = vmatprep.mubr.f32.mxu0 0.0
    %3861 = vmatmul.mubr.f32.gmra.mrb[0].mxu0 %v3791
    %v3862 = vpop.f32.mrb[0].mxu0
    %v3863 = vadd.f32 0.0, %v3862
    %v3864 = vpop.f32.mrb[0].mxu0
    %3865 = vmatprep.mubr.f32.mxu0 0.0
    %3866 = vmatmul.mubr.f32.gmra.mrb[0].mxu0 %v3794
    %v3867 = vpop.f32.mrb[0].mxu0
    %v3868 = vadd.f32 0.0, %v3867
    %v3869 = vpop.f32.mrb[0].mxu0
    %3870 = vdwg.mxu0
    %v3872 = vsel %vm2532, %v3863, 0
    %v3875 = vsel %vm2532, %v3868, 0
    %3877 = vmatprep.subr.mxu0 0.0
    %3878 = vmatpush1.msra.mxu0 %v2530
    %3879 = vmatprep.subr.mxu0 0.0
    %3880 = vmatpush1.msra.mxu0 %v2531
    %3881 = vmatprep.subr.mxu0 0.0
    %3882 = vmatpush1.msra.mxu0 0.0
    %3883 = vmatprep.subr.mxu0 0.0
    %3884 = vmatpush1.msra.mxu0 0.0
    %3885 = vmatprep.subr.mxu0 0.0
    %3886 = vmatpush1.msra.mxu0 0.0
    %3887 = vmatprep.subr.mxu0 0.0
    %3888 = vmatpush1.msra.mxu0 0.0
    %3889 = vmatprep.subr.mxu0 0.0
    %3890 = vmatpush1.msra.mxu0 0.0
    %3891 = vmatprep.subr.mxu0 0.0
    %3892 = vmatpush1.msra.mxu0 0.0
    %3893 = vmatprep.subr.mxu0 0.0
    %3894 = vmatpush1.msra.mxu0 0.0
    %3895 = vmatprep.subr.mxu0 0.0
    %3896 = vmatpush1.msra.mxu0 0.0
    %3897 = vmatprep.subr.mxu0 0.0
    %3898 = vmatpush1.msra.mxu0 0.0
    %3899 = vmatprep.subr.mxu0 0.0
    %3900 = vmatpush1.msra.mxu0 0.0
    %3901 = vmatprep.subr.mxu0 0.0
    %3902 = vmatpush1.msra.mxu0 0.0
    %3903 = vmatprep.subr.mxu0 0.0
    %3904 = vmatpush1.msra.mxu0 0.0
    %3905 = vmatprep.subr.mxu0 0.0
    %3906 = vmatpush1.msra.mxu0 0.0
    %3907 = vmatprep.subr.mxu0 0.0
    %3908 = vmatpush1.msra.mxu0 0.0
    %3909 = vmatprep.subr.mxu0 0.0
    %3910 = vmatpush1.msra.mxu0 0.0
    %3911 = vmatprep.subr.mxu0 0.0
    %3912 = vmatpush1.msra.mxu0 0.0
    %3913 = vmatprep.subr.mxu0 0.0
    %3914 = vmatpush1.msra.mxu0 0.0
    %3915 = vmatprep.subr.mxu0 0.0
    %3916 = vmatpush1.msra.mxu0 0.0
    %3917 = vmatprep.subr.mxu0 0.0
    %3918 = vmatpush1.msra.mxu0 0.0
    %3919 = vmatprep.subr.mxu0 0.0
    %3920 = vmatpush1.msra.mxu0 0.0
    %3921 = vmatprep.subr.mxu0 0.0
    %3922 = vmatpush1.msra.mxu0 0.0
    %3923 = vmatprep.subr.mxu0 0.0
    %3924 = vmatpush1.msra.mxu0 0.0
    %3925 = vmatprep.subr.mxu0 0.0
    %3926 = vmatpush1.msra.mxu0 0.0
    %3927 = vmatprep.subr.mxu0 0.0
    %3928 = vmatpush1.msra.mxu0 0.0
    %3929 = vmatprep.subr.mxu0 0.0
    %3930 = vmatpush1.msra.mxu0 0.0
    %3931 = vmatprep.subr.mxu0 0.0
    %3932 = vmatpush1.msra.mxu0 0.0
    %3933 = vmatprep.subr.mxu0 0.0
    %3934 = vmatpush1.msra.mxu0 0.0
    %3935 = vmatprep.subr.mxu0 0.0
    %3936 = vmatpush1.msra.mxu0 0.0
    %3937 = vmatprep.subr.mxu0 0.0
    %3938 = vmatpush1.msra.mxu0 0.0
    %3939 = vmatprep.subr.mxu0 0.0
    %3940 = vmatpush1.msra.mxu0 0.0
    %3941 = vmatprep.mubr.f32.mxu0 0.0
    %3942 = vmatmul.mubr.f32.gmra.mrb[0].mxu0 %v3872
    %v3943 = vpop.f32.mrb[0].mxu0
    %v3944 = vadd.f32 0.0, %v3943
    %v3945 = vpop.f32.mrb[0].mxu0
    %3946 = vmatprep.mubr.f32.mxu0 0.0
    %3947 = vmatmul.mubr.f32.gmra.mrb[0].mxu0 %v3875
    %v3948 = vpop.f32.mrb[0].mxu0
    %v3949 = vadd.f32 0.0, %v3948
    %v3950 = vpop.f32.mrb[0].mxu0
    %3951 = vdwg.mxu0
    %v3952 = vsub.f32 %v3863, %v3944
    %v3953 = vsub.f32 %v3868, %v3949
    %v3954 = vmul.f32 %v3952, %v3952
    %v3955 = vmul.f32 %v3953, %v3953
    %v3957 = vsel %vm2532, %v3954, 0
    %v3960 = vsel %vm2532, %v3955, 0
    %3962 = vmatprep.subr.mxu0 0.0
    %3963 = vmatpush1.msra.mxu0 %v2530
    %3964 = vmatprep.subr.mxu0 0.0
    %3965 = vmatpush1.msra.mxu0 %v2531
    %3966 = vmatprep.subr.mxu0 0.0
    %3967 = vmatpush1.msra.mxu0 0.0
    %3968 = vmatprep.subr.mxu0 0.0
    %3969 = vmatpush1.msra.mxu0 0.0
    %3970 = vmatprep.subr.mxu0 0.0
    %3971 = vmatpush1.msra.mxu0 0.0
    %3972 = vmatprep.subr.mxu0 0.0
    %3973 = vmatpush1.msra.mxu0 0.0
    %3974 = vmatprep.subr.mxu0 0.0
    %3975 = vmatpush1.msra.mxu0 0.0
    %3976 = vmatprep.subr.mxu0 0.0
    %3977 = vmatpush1.msra.mxu0 0.0
    %3978 = vmatprep.subr.mxu0 0.0
    %3979 = vmatpush1.msra.mxu0 0.0
    %3980 = vmatprep.subr.mxu0 0.0
    %3981 = vmatpush1.msra.mxu0 0.0
    %3982 = vmatprep.subr.mxu0 0.0
    %3983 = vmatpush1.msra.mxu0 0.0
    %3984 = vmatprep.subr.mxu0 0.0
    %3985 = vmatpush1.msra.mxu0 0.0
    %3986 = vmatprep.subr.mxu0 0.0
    %3987 = vmatpush1.msra.mxu0 0.0
    %3988 = vmatprep.subr.mxu0 0.0
    %3989 = vmatpush1.msra.mxu0 0.0
    %3990 = vmatprep.subr.mxu0 0.0
    %3991 = vmatpush1.msra.mxu0 0.0
    %3992 = vmatprep.subr.mxu0 0.0
    %3993 = vmatpush1.msra.mxu0 0.0
    %3994 = vmatprep.subr.mxu0 0.0
    %3995 = vmatpush1.msra.mxu0 0.0
    %3996 = vmatprep.subr.mxu0 0.0
    %3997 = vmatpush1.msra.mxu0 0.0
    %3998 = vmatprep.subr.mxu0 0.0
    %3999 = vmatpush1.msra.mxu0 0.0
    %4000 = vmatprep.subr.mxu0 0.0
    %4001 = vmatpush1.msra.mxu0 0.0
    %4002 = vmatprep.subr.mxu0 0.0
    %4003 = vmatpush1.msra.mxu0 0.0
    %4004 = vmatprep.subr.mxu0 0.0
    %4005 = vmatpush1.msra.mxu0 0.0
    %4006 = vmatprep.subr.mxu0 0.0
    %4007 = vmatpush1.msra.mxu0 0.0
    %4008 = vmatprep.subr.mxu0 0.0
    %4009 = vmatpush1.msra.mxu0 0.0
    %4010 = vmatprep.subr.mxu0 0.0
    %4011 = vmatpush1.msra.mxu0 0.0
    %4012 = vmatprep.subr.mxu0 0.0
    %4013 = vmatpush1.msra.mxu0 0.0
    %4014 = vmatprep.subr.mxu0 0.0
    %4015 = vmatpush1.msra.mxu0 0.0
    %4016 = vmatprep.subr.mxu0 0.0
    %4017 = vmatpush1.msra.mxu0 0.0
    %4018 = vmatprep.subr.mxu0 0.0
    %4019 = vmatpush1.msra.mxu0 0.0
    %4020 = vmatprep.subr.mxu0 0.0
    %4021 = vmatpush1.msra.mxu0 0.0
    %4022 = vmatprep.subr.mxu0 0.0
    %4023 = vmatpush1.msra.mxu0 0.0
    %4024 = vmatprep.subr.mxu0 0.0
    %4025 = vmatpush1.msra.mxu0 0.0
    %4026 = vmatprep.mubr.f32.mxu0 0.0
    %4027 = vmatmul.mubr.f32.gmra.mrb[0].mxu0 %v3957
    %v4028 = vpop.f32.mrb[0].mxu0
    %v4029 = vadd.f32 1e-05, %v4028
    %v4030 = vpop.f32.mrb[0].mxu0
    %4031 = vmatprep.mubr.f32.mxu0 0.0
    %4032 = vmatmul.mubr.f32.gmra.mrb[0].mxu0 %v3960
    %v4033 = vpop.f32.mrb[0].mxu0
    %v4034 = vadd.f32 1e-05, %v4033
    %v4035 = vpop.f32.mrb[0].mxu0
    %4036 = vdwg.mxu0
    %v4037 = vrsqrt.pop %v4029
    %v4038 = vrsqrt.pop %v4034
    %v4039 = vmul.f32 %v3952, %v4037
    %v4040 = vmul.f32 %v3953, %v4038
    %v4041 = vld [vmem:[#allocation5 + $0x2b8] sm:$0xff]
    %v4042 = vld [vmem:[#allocation5 + $0x2c0] sm:$0xff]
    %4044 = vset.pattern.permute.xlu0 0
    %4045 = vperm.xlu0 %4044, %v4041
    %v4046 = vpop.permute.xlu0 %4045
    %4049 = vset.pattern.permute.xlu0 0
    %4050 = vperm.xlu0 %4049, %v4042
    %v4051 = vpop.permute.xlu0 %4050
    %v4053 = vmul.f32 %v4039, %v4046
    %v4054 = vmul.f32 %v4040, %v4051
    %v4055 = vld [vmem:[#allocation5 + $0x2c8] sm:$0xff]
    %v4056 = vld [vmem:[#allocation5 + $0x2d0] sm:$0xff]
    %4058 = vset.pattern.permute.xlu0 0
    %4059 = vperm.xlu0 %4058, %v4055
    %v4060 = vpop.permute.xlu0 %4059
    %4063 = vset.pattern.permute.xlu0 0
    %4064 = vperm.xlu0 %4063, %v4056
    %v4065 = vpop.permute.xlu0 %4064
    %v4067 = vadd.f32 %v4053, %v4060
    %v4068 = vadd.f32 %v4054, %v4065
    %v4070 = vsel %vm2532, %v4067, 0
    %v4073 = vsel %vm2532, %v4068, 0
    %4075 = vmatprep.subr.mxu0 0.0
    %4076 = vmatpush1.msra.mxu0 %v2731
    %4077 = vmatprep.subr.mxu0 0.0
    %4078 = vmatpush1.msra.mxu0 %v2732
    %4079 = vmatprep.subr.mxu0 0.0
    %4080 = vmatpush1.msra.mxu0 0.0
    %4081 = vmatprep.subr.mxu0 0.0
    %4082 = vmatpush1.msra.mxu0 0.0
    %4083 = vmatprep.subr.mxu0 0.0
    %4084 = vmatpush1.msra.mxu0 0.0
    %4085 = vmatprep.subr.mxu0 0.0
    %4086 = vmatpush1.msra.mxu0 0.0
    %4087 = vmatprep.subr.mxu0 0.0
    %4088 = vmatpush1.msra.mxu0 0.0
    %4089 = vmatprep.subr.mxu0 0.0
    %4090 = vmatpush1.msra.mxu0 0.0
    %4091 = vmatprep.subr.mxu0 0.0
    %4092 = vmatpush1.msra.mxu0 0.0
    %4093 = vmatprep.subr.mxu0 0.0
    %4094 = vmatpush1.msra.mxu0 0.0
    %4095 = vmatprep.subr.mxu0 0.0
    %4096 = vmatpush1.msra.mxu0 0.0
    %4097 = vmatprep.subr.mxu0 0.0
    %4098 = vmatpush1.msra.mxu0 0.0
    %4099 = vmatprep.subr.mxu0 0.0
    %4100 = vmatpush1.msra.mxu0 0.0
    %4101 = vmatprep.subr.mxu0 0.0
    %4102 = vmatpush1.msra.mxu0 0.0
    %4103 = vmatprep.subr.mxu0 0.0
    %4104 = vmatpush1.msra.mxu0 0.0
    %4105 = vmatprep.subr.mxu0 0.0
    %4106 = vmatpush1.msra.mxu0 0.0
    %4107 = vmatprep.subr.mxu0 0.0
    %4108 = vmatpush1.msra.mxu0 0.0
    %4109 = vmatprep.subr.mxu0 0.0
    %4110 = vmatpush1.msra.mxu0 0.0
    %4111 = vmatprep.subr.mxu0 0.0
    %4112 = vmatpush1.msra.mxu0 0.0
    %4113 = vmatprep.subr.mxu0 0.0
    %4114 = vmatpush1.msra.mxu0 0.0
    %4115 = vmatprep.subr.mxu0 0.0
    %4116 = vmatpush1.msra.mxu0 0.0
    %4117 = vmatprep.subr.mxu0 0.0
    %4118 = vmatpush1.msra.mxu0 0.0
    %4119 = vmatprep.subr.mxu0 0.0
    %4120 = vmatpush1.msra.mxu0 0.0
    %4121 = vmatprep.subr.mxu0 0.0
    %4122 = vmatpush1.msra.mxu0 0.0
    %4123 = vmatprep.subr.mxu0 0.0
    %4124 = vmatpush1.msra.mxu0 0.0
    %4125 = vmatprep.subr.mxu0 0.0
    %4126 = vmatpush1.msra.mxu0 0.0
    %4127 = vmatprep.subr.mxu0 0.0
    %4128 = vmatpush1.msra.mxu0 0.0
    %4129 = vmatprep.subr.mxu0 0.0
    %4130 = vmatpush1.msra.mxu0 0.0
    %4131 = vmatprep.subr.mxu0 0.0
    %4132 = vmatpush1.msra.mxu0 0.0
    %4133 = vmatprep.subr.mxu0 0.0
    %4134 = vmatpush1.msra.mxu0 0.0
    %4135 = vmatprep.subr.mxu0 0.0
    %4136 = vmatpush1.msra.mxu0 0.0
    %4137 = vmatprep.subr.mxu0 0.0
    %4138 = vmatpush1.msra.mxu0 0.0
    %4139 = vmatprep.mubr.f32.mxu0 0.0
    %4140 = vmatmul.mubr.f32.gmra.mrb[0].mxu0 %v4070
    %v4141 = vpop.f32.mrb[0].mxu0
    %v4142 = vadd.f32 0.0, %v4141
    %v4143 = vpop.f32.mrb[0].mxu0
    %4144 = vmatprep.mubr.f32.mxu0 0.0
    %4145 = vmatmul.mubr.f32.gmra.mrb[0].mxu0 %v4073
    %v4146 = vpop.f32.mrb[0].mxu0
    %v4147 = vadd.f32 0.0, %v4146
    %v4148 = vpop.f32.mrb[0].mxu0
    %4149 = vdwg.mxu0
    %v4150 = vld [vmem:[#allocation5 + $0x2f8] sm:$0xff]
    %v4151 = vld [vmem:[#allocation5 + $0x300] sm:$0xff]
    %4153 = vset.pattern.permute.xlu0 0
    %4154 = vperm.xlu0 %4153, %v4151
    %v4155 = vpop.permute.xlu0 %4154
    %v4158 = vsel %vm2532, %v4150, 0
    %4160 = vmatprep.subr.mxu0 0.0
    %4161 = vmatpush1.msra.mxu0 %v4142
    %4162 = vmatprep.subr.mxu0 0.0
    %4163 = vmatpush1.msra.mxu0 %v4147
    %4164 = vmatprep.subr.mxu0 0.0
    %4165 = vmatpush1.msra.mxu0 0.0
    %4166 = vmatprep.subr.mxu0 0.0
    %4167 = vmatpush1.msra.mxu0 0.0
    %4168 = vmatprep.subr.mxu0 0.0
    %4169 = vmatpush1.msra.mxu0 0.0
    %4170 = vmatprep.subr.mxu0 0.0
    %4171 = vmatpush1.msra.mxu0 0.0
    %4172 = vmatprep.subr.mxu0 0.0
    %4173 = vmatpush1.msra.mxu0 0.0
    %4174 = vmatprep.subr.mxu0 0.0
    %4175 = vmatpush1.msra.mxu0 0.0
    %4176 = vmatprep.subr.mxu0 0.0
    %4177 = vmatpush1.msra.mxu0 0.0
    %4178 = vmatprep.subr.mxu0 0.0
    %4179 = vmatpush1.msra.mxu0 0.0
    %4180 = vmatprep.subr.mxu0 0.0
    %4181 = vmatpush1.msra.mxu0 0.0
    %4182 = vmatprep.subr.mxu0 0.0
    %4183 = vmatpush1.msra.mxu0 0.0
    %4184 = vmatprep.subr.mxu0 0.0
    %4185 = vmatpush1.msra.mxu0 0.0
    %4186 = vmatprep.subr.mxu0 0.0
    %4187 = vmatpush1.msra.mxu0 0.0
    %4188 = vmatprep.subr.mxu0 0.0
    %4189 = vmatpush1.msra.mxu0 0.0
    %4190 = vmatprep.subr.mxu0 0.0
    %4191 = vmatpush1.msra.mxu0 0.0
    %4192 = vmatprep.subr.mxu0 0.0
    %4193 = vmatpush1.msra.mxu0 0.0
    %4194 = vmatprep.subr.mxu0 0.0
    %4195 = vmatpush1.msra.mxu0 0.0
    %4196 = vmatprep.subr.mxu0 0.0
    %4197 = vmatpush1.msra.mxu0 0.0
    %4198 = vmatprep.subr.mxu0 0.0
    %4199 = vmatpush1.msra.mxu0 0.0
    %4200 = vmatprep.subr.mxu0 0.0
    %4201 = vmatpush1.msra.mxu0 0.0
    %4202 = vmatprep.subr.mxu0 0.0
    %4203 = vmatpush1.msra.mxu0 0.0
    %4204 = vmatprep.subr.mxu0 0.0
    %4205 = vmatpush1.msra.mxu0 0.0
    %4206 = vmatprep.subr.mxu0 0.0
    %4207 = vmatpush1.msra.mxu0 0.0
    %4208 = vmatprep.subr.mxu0 0.0
    %4209 = vmatpush1.msra.mxu0 0.0
    %4210 = vmatprep.subr.mxu0 0.0
    %4211 = vmatpush1.msra.mxu0 0.0
    %4212 = vmatprep.subr.mxu0 0.0
    %4213 = vmatpush1.msra.mxu0 0.0
    %4214 = vmatprep.subr.mxu0 0.0
    %4215 = vmatpush1.msra.mxu0 0.0
    %4216 = vmatprep.subr.mxu0 0.0
    %4217 = vmatpush1.msra.mxu0 0.0
    %4218 = vmatprep.subr.mxu0 0.0
    %4219 = vmatpush1.msra.mxu0 0.0
    %4220 = vmatprep.subr.mxu0 0.0
    %4221 = vmatpush1.msra.mxu0 0.0
    %4222 = vmatprep.subr.mxu0 0.0
    %4223 = vmatpush1.msra.mxu0 0.0
    %4224 = vmatprep.mubr.f32.mxu0 0.0
    %4225 = vmatmul.mubr.f32.gmra.mrb[0].mxu0 %v4158
    %v4226 = vpop.f32.mrb[0].mxu0
    %v4227 = vadd.f32 %v4155, %v4226
    %v4228 = vpop.f32.mrb[0].mxu0
    %4229 = vdwg.mxu0
    %v4230 = vmax.f32 %v4227, 0.0
    %v4231 = vld [vmem:[#allocation5 + $0x308] sm:$0xff]
    %v4232 = vld [vmem:[#allocation5 + $0x310] sm:$0xff]
    %v4233 = vld [vmem:[#allocation5 + $0x318] sm:$0xff]
    %v4234 = vld [vmem:[#allocation5 + $0x320] sm:$0xff]
    %4236 = vset.pattern.permute.xlu0 0
    %4237 = vperm.xlu0 %4236, %v4233
    %v4238 = vpop.permute.xlu0 %4237
    %4241 = vset.pattern.permute.xlu0 0
    %4242 = vperm.xlu0 %4241, %v4234
    %v4243 = vpop.permute.xlu0 %4242
    %v4246 = vsel %vm1276, %v4231, 0
    %v4249 = vsel %vm1276, %v4232, 0
    %4251 = vmatprep.subr.mxu0 0.0
    %4252 = vmatpush1.msra.mxu0 %v4230
    %4253 = vmatprep.subr.mxu0 0.0
    %4254 = vmatpush1.msra.mxu0 0.0
    %4255 = vmatprep.subr.mxu0 0.0
    %4256 = vmatpush1.msra.mxu0 0.0
    %4257 = vmatprep.subr.mxu0 0.0
    %4258 = vmatpush1.msra.mxu0 0.0
    %4259 = vmatprep.subr.mxu0 0.0
    %4260 = vmatpush1.msra.mxu0 0.0
    %4261 = vmatprep.subr.mxu0 0.0
    %4262 = vmatpush1.msra.mxu0 0.0
    %4263 = vmatprep.subr.mxu0 0.0
    %4264 = vmatpush1.msra.mxu0 0.0
    %4265 = vmatprep.subr.mxu0 0.0
    %4266 = vmatpush1.msra.mxu0 0.0
    %4267 = vmatprep.subr.mxu0 0.0
    %4268 = vmatpush1.msra.mxu0 0.0
    %4269 = vmatprep.subr.mxu0 0.0
    %4270 = vmatpush1.msra.mxu0 0.0
    %4271 = vmatprep.subr.mxu0 0.0
    %4272 = vmatpush1.msra.mxu0 0.0
    %4273 = vmatprep.subr.mxu0 0.0
    %4274 = vmatpush1.msra.mxu0 0.0
    %4275 = vmatprep.subr.mxu0 0.0
    %4276 = vmatpush1.msra.mxu0 0.0
    %4277 = vmatprep.subr.mxu0 0.0
    %4278 = vmatpush1.msra.mxu0 0.0
    %4279 = vmatprep.subr.mxu0 0.0
    %4280 = vmatpush1.msra.mxu0 0.0
    %4281 = vmatprep.subr.mxu0 0.0
    %4282 = vmatpush1.msra.mxu0 0.0
    %4283 = vmatprep.subr.mxu0 0.0
    %4284 = vmatpush1.msra.mxu0 0.0
    %4285 = vmatprep.subr.mxu0 0.0
    %4286 = vmatpush1.msra.mxu0 0.0
    %4287 = vmatprep.subr.mxu0 0.0
    %4288 = vmatpush1.msra.mxu0 0.0
    %4289 = vmatprep.subr.mxu0 0.0
    %4290 = vmatpush1.msra.mxu0 0.0
    %4291 = vmatprep.subr.mxu0 0.0
    %4292 = vmatpush1.msra.mxu0 0.0
    %4293 = vmatprep.subr.mxu0 0.0
    %4294 = vmatpush1.msra.mxu0 0.0
    %4295 = vmatprep.subr.mxu0 0.0
    %4296 = vmatpush1.msra.mxu0 0.0
    %4297 = vmatprep.subr.mxu0 0.0
    %4298 = vmatpush1.msra.mxu0 0.0
    %4299 = vmatprep.subr.mxu0 0.0
    %4300 = vmatpush1.msra.mxu0 0.0
    %4301 = vmatprep.subr.mxu0 0.0
    %4302 = vmatpush1.msra.mxu0 0.0
    %4303 = vmatprep.subr.mxu0 0.0
    %4304 = vmatpush1.msra.mxu0 0.0
    %4305 = vmatprep.subr.mxu0 0.0
    %4306 = vmatpush1.msra.mxu0 0.0
    %4307 = vmatprep.subr.mxu0 0.0
    %4308 = vmatpush1.msra.mxu0 0.0
    %4309 = vmatprep.subr.mxu0 0.0
    %4310 = vmatpush1.msra.mxu0 0.0
    %4311 = vmatprep.subr.mxu0 0.0
    %4312 = vmatpush1.msra.mxu0 0.0
    %4313 = vmatprep.subr.mxu0 0.0
    %4314 = vmatpush1.msra.mxu0 0.0
    %4315 = vmatprep.mubr.f32.mxu0 0.0
    %4316 = vmatmul.mubr.f32.gmra.mrb[0].mxu0 %v4246
    %v4317 = vpop.f32.mrb[0].mxu0
    %v4318 = vadd.f32 %v4238, %v4317
    %v4319 = vpop.f32.mrb[0].mxu0
    %4320 = vmatprep.mubr.f32.mxu0 0.0
    %4321 = vmatmul.mubr.f32.gmra.mrb[0].mxu0 %v4249
    %v4322 = vpop.f32.mrb[0].mxu0
    %v4323 = vadd.f32 %v4243, %v4322
    %v4324 = vpop.f32.mrb[0].mxu0
    %4325 = vdwg.mxu0
    %v4326 = vxor.u32 %v4318, 2147483648
    %v4327 = vxor.u32 %v4323, 2147483648
    %v4328 = vmul.f32 %v4326, 1.442695
    %v4329 = vpow.pop %v4328
    %v4330 = vmul.f32 %v4327, 1.442695
    %v4331 = vpow.pop %v4330
    %v4332 = vadd.f32 %v4329, 1.0
    %v4333 = vadd.f32 %v4331, 1.0
    %v4334 = vrcp.pop %v4332
    %v4335 = vmul.f32 1.0, %v4334
    %v4336 = vrcp.pop %v4333
    %v4337 = vmul.f32 1.0, %v4336
    %v4339 = vsel %vm1276, %v4335, 0
    %v4342 = vsel %vm1276, %v4337, 0
    %4344 = vmatprep.subr.mxu0 0.0
    %4345 = vmatpush1.msra.mxu0 %v3002
    %4346 = vmatprep.subr.mxu0 0.0
    %4347 = vmatpush1.msra.mxu0 0.0
    %4348 = vmatprep.subr.mxu0 0.0
    %4349 = vmatpush1.msra.mxu0 0.0
    %4350 = vmatprep.subr.mxu0 0.0
    %4351 = vmatpush1.msra.mxu0 0.0
    %4352 = vmatprep.subr.mxu0 0.0
    %4353 = vmatpush1.msra.mxu0 0.0
    %4354 = vmatprep.subr.mxu0 0.0
    %4355 = vmatpush1.msra.mxu0 0.0
    %4356 = vmatprep.subr.mxu0 0.0
    %4357 = vmatpush1.msra.mxu0 0.0
    %4358 = vmatprep.subr.mxu0 0.0
    %4359 = vmatpush1.msra.mxu0 0.0
    %4360 = vmatprep.subr.mxu0 0.0
    %4361 = vmatpush1.msra.mxu0 0.0
    %4362 = vmatprep.subr.mxu0 0.0
    %4363 = vmatpush1.msra.mxu0 0.0
    %4364 = vmatprep.subr.mxu0 0.0
    %4365 = vmatpush1.msra.mxu0 0.0
    %4366 = vmatprep.subr.mxu0 0.0
    %4367 = vmatpush1.msra.mxu0 0.0
    %4368 = vmatprep.subr.mxu0 0.0
    %4369 = vmatpush1.msra.mxu0 0.0
    %4370 = vmatprep.subr.mxu0 0.0
    %4371 = vmatpush1.msra.mxu0 0.0
    %4372 = vmatprep.subr.mxu0 0.0
    %4373 = vmatpush1.msra.mxu0 0.0
    %4374 = vmatprep.subr.mxu0 0.0
    %4375 = vmatpush1.msra.mxu0 0.0
    %4376 = vmatprep.subr.mxu0 0.0
    %4377 = vmatpush1.msra.mxu0 0.0
    %4378 = vmatprep.subr.mxu0 0.0
    %4379 = vmatpush1.msra.mxu0 0.0
    %4380 = vmatprep.subr.mxu0 0.0
    %4381 = vmatpush1.msra.mxu0 0.0
    %4382 = vmatprep.subr.mxu0 0.0
    %4383 = vmatpush1.msra.mxu0 0.0
    %4384 = vmatprep.subr.mxu0 0.0
    %4385 = vmatpush1.msra.mxu0 0.0
    %4386 = vmatprep.subr.mxu0 0.0
    %4387 = vmatpush1.msra.mxu0 0.0
    %4388 = vmatprep.subr.mxu0 0.0
    %4389 = vmatpush1.msra.mxu0 0.0
    %4390 = vmatprep.subr.mxu0 0.0
    %4391 = vmatpush1.msra.mxu0 0.0
    %4392 = vmatprep.subr.mxu0 0.0
    %4393 = vmatpush1.msra.mxu0 0.0
    %4394 = vmatprep.subr.mxu0 0.0
    %4395 = vmatpush1.msra.mxu0 0.0
    %4396 = vmatprep.subr.mxu0 0.0
    %4397 = vmatpush1.msra.mxu0 0.0
    %4398 = vmatprep.subr.mxu0 0.0
    %4399 = vmatpush1.msra.mxu0 0.0
    %4400 = vmatprep.subr.mxu0 0.0
    %4401 = vmatpush1.msra.mxu0 0.0
    %4402 = vmatprep.subr.mxu0 0.0
    %4403 = vmatpush1.msra.mxu0 0.0
    %4404 = vmatprep.subr.mxu0 0.0
    %4405 = vmatpush1.msra.mxu0 0.0
    %4406 = vmatprep.subr.mxu0 0.0
    %4407 = vmatpush1.msra.mxu0 0.0
    %4408 = vmatprep.mubr.f32.mxu0 0.0
    %4409 = vmatmul.mubr.f32.gmra.mrb[0].mxu0 %v4339
    %v4410 = vpop.f32.mrb[0].mxu0
    %v4411 = vadd.f32 0.0, %v4410
    %v4412 = vpop.f32.mrb[0].mxu0
    %4413 = vmatprep.mubr.f32.mxu0 0.0
    %4414 = vmatmul.mubr.f32.gmra.mrb[0].mxu0 %v4342
    %v4415 = vpop.f32.mrb[0].mxu0
    %v4416 = vadd.f32 0.0, %v4415
    %v4417 = vpop.f32.mrb[0].mxu0
    %4418 = vdwg.mxu0
    %v4419 = vmul.f32 %v4067, %v4411
    %v4420 = vmul.f32 %v4068, %v4416
    %v4421 = vadd.f32 %v4419, %v3178
    %v4422 = vadd.f32 %v4420, %v3179
    %v4423 = vmul.f32 %v4421, 0.5
    %v4424 = vmul.f32 %v4422, 0.5
    %v4425 = vmul.f32 %v4421, 0.70710677
    %v4426 = vmul.f32 %v4422, 0.70710677
    %v4427 = verf.f32.pop %v4425
    %v4428 = verf.f32.pop %v4426
    %v4429 = vadd.f32 %v4427, 1.0
    %v4430 = vadd.f32 %v4428, 1.0
    %v4431 = vmul.f32 %v4423, %v4429
    %v4432 = vmul.f32 %v4424, %v4430
    %v4433 = vsel %vm2532, %v4431, 0.0
    %v4434 = vsel %vm2532, %v4432, 0.0
    %4435 = vst [vmem:[#allocation7 + $0x8] sm:$0xff] %v4433
    %4436 = vst [vmem:[#allocation7 + $0x10] sm:$0xff] %v4434
    // Predicated region
    $region18: #{tpu_custom_call.1} parent=1 // pred_check
      _
    $region19: #{tpu_custom_call.1} parent=1 // pred_check_branch
      %4438 = sbr.rel (0) target = $region21
    $region20: #{tpu_custom_call.1} parent=1 // pred_region
      %s4440 = ssub.s32 384, 384
      %4441 = vsyncadd [#allocation4], %s4440
      %s4442 = sshll.u32 [#allocation7], 4
      %s4443 = int_to_ptr.vmem [resolvable:$true] %s4442
      %4448 = dma.vmem_to_hbm [thread:$0]  %s4443, 384, %s2, [#allocation4], 128, 128, 8
    $region21: #{tpu_custom_call.1} parent=1 // pred_fallthru
      _
    // Predicated region
    $region22: #{tpu_custom_call.1} parent=1 // pred_check
      _
    $region23: #{tpu_custom_call.1} parent=1 // pred_check_branch
      %4450 = sbr.rel (0) target = $region25
    $region24: #{tpu_custom_call.1} parent=1 // pred_region
      %4451 = dma.done [#allocation4], 384
    $region25: #{tpu_custom_call.1} parent=1 // pred_fallthru
      _
    %4452 = vsyncpa [#allocation3], 1
    %4453 = vsyncpa [#allocation6], 1
    %4454 = vsyncpa [#allocation4], 1

</llo_original>
